<compile_context>
chip_gen: v5e
topology: v5e:2x2
jax: 0.10.0
libtpu: 0.0.40
codegen_flags: <defaults>
</compile_context>

<pallas_src>
import jax
import jax.numpy as jnp
from jax.experimental import pallas as pl
from jax.experimental.pallas import tpu as pltpu


# ----------------------------------------------------------------------------
# Pallas kernel: one (direction, time-chunk) grid step of the fused bi-GRU.
# ----------------------------------------------------------------------------
def _bigru_chunk_kernel(xg_ref, whh_ref, bhn_ref, out_ref, hfin_ref, h_scr):
    """Process Tc timesteps of one direction.

    xg_ref:   (Tc*B, 3H) bf16  precomputed x@W_ih + folded biases (this chunk)
    whh_ref:  (H, 3H)    bf16  hidden->gate weights (this direction)
    bhn_ref:  (1, H)     f32   b_hh for the 'n' gate (stays inside r*(...))
    out_ref:  (Tc*B, H)  f32   this direction's half of the layer output
    hfin_ref: (B, H)     f32   final hidden state for this direction (resident)
    h_scr:    (B, H)     f32   hidden state carried across chunks
    """
    d = pl.program_id(0)            # 0 = forward, 1 = backward
    c = pl.program_id(1)
    n_chunks = pl.num_programs(1)

    batch, hidden = h_scr.shape
    tc = xg_ref.shape[0] // batch

    @pl.when(c == 0)
    def _init():
        h_scr[...] = jnp.zeros_like(h_scr)

    # Hoisted once per chunk (JAX does not CSE broadcast_in_dim).
    bhn = jnp.broadcast_to(bhn_ref[...].astype(jnp.float32), (batch, hidden))

    def step(t, h_prev):
        # t is a compile-time Python int -> static, aligned loads/stores.
        lo = t * batch
        xg = xg_ref[pl.ds(lo, batch), :].astype(jnp.float32)          # (B, 3H)
        # Re-read the weight tile from VMEM per step: the allocator is free
        # not to keep the whole (H, 3H) tile live across the unroll.
        hg = jnp.dot(h_prev.astype(whh_ref.dtype), whh_ref[...],
                     preferred_element_type=jnp.float32)              # (B, 3H)
        r = jax.nn.sigmoid(xg[:, :hidden] + hg[:, :hidden])
        z = jax.nn.sigmoid(xg[:, hidden:2 * hidden] + hg[:, hidden:2 * hidden])
        n = jnp.tanh(xg[:, 2 * hidden:] + r * (hg[:, 2 * hidden:] + bhn))
        h_new = (1.0 - z) * n + z * h_prev
        out_ref[pl.ds(lo, batch), :] = h_new.astype(out_ref.dtype)
        return h_new

    # The direction-dependent walk is split into two statically indexed
    # branches so no runtime scalar enters the per-step addressing.
    @pl.when(d == 0)
    def _forward():
        h = h_scr[...]
        for i in range(tc):                 # static unroll
            h = step(i, h)
        h_scr[...] = h

    @pl.when(d == 1)
    def _backward():
        h = h_scr[...]
        for i in range(tc):                 # static unroll, reversed walk
            h = step(tc - 1 - i, h)
        h_scr[...] = h

    @pl.when(c == n_chunks - 1)
    def _finalize():
        hfin_ref[...] = h_scr[...].astype(hfin_ref.dtype)


def _pick_chunk(T, B, target=32):
    """Timesteps per grid step.

    Largest divisor of T <= target whose flattened (tc*B) row count is
    sublane (8) aligned; small sequences run in a single chunk (grid=(2,1)),
    which also keeps the static unroll bounded.
    """
    if T <= target:
        return T
    for tc in range(target, 0, -1):
        if T % tc == 0 and (tc * B) % 8 == 0:
            return tc
    # TODO(synk): pad T up to a multiple of `target` instead of this fallback.
    return T


def bigru_layer(x_tbd, w_ih_s, w_hh_s, b_x_s, b_hn_s, *, chunk=32):
    """One bidirectional GRU layer.

    x_tbd:  (T, B, D_in) time-major input
    w_ih_s: (2, D_in, 3H) bf16  stacked [fwd, bwd] input->gate weights
    w_hh_s: (2, H, 3H)    bf16  stacked hidden->gate weights
    b_x_s:  (2, 3H)       f32   folded bias for the hoisted x-projection
    b_hn_s: (2, 1, H)     f32   b_hh 'n'-gate bias (stays inside the kernel)
    Returns (layer output (T, B, 2H) f32, final hidden (2, B, H) [fwd, bwd]).
    """
    T, B, _ = x_tbd.shape
    H = w_hh_s.shape[1]

    # Hoisted input projection for BOTH directions: one large bf16 MXU matmul
    # per direction (M = T*B), outside the sequential recurrence.
    xg = jnp.einsum("tbd,kdg->ktbg", x_tbd.astype(jnp.bfloat16), w_ih_s,
                    preferred_element_type=jnp.float32)
    xg = xg + b_x_s[:, None, None, :]                        # (2, T, B, 3H) f32
    xg = xg.reshape(2, T * B, 3 * H).astype(jnp.bfloat16)    # lane/sublane dense

    tc = _pick_chunk(T, B, chunk)
    n_chunks = T // tc

    def xg_map(d, c):
        # Backward direction (d == 1) walks the chunks in reverse order.
        return (d, c + d * (n_chunks - 1 - 2 * c), 0)

    def out_map(d, c):
        # Each direction writes its own H-wide half of the (T*B, 2H) output.
        return (c + d * (n_chunks - 1 - 2 * c), d)

    grid_spec = pltpu.PrefetchScalarGridSpec(
        num_scalar_prefetch=0,
        grid=(2, n_chunks),
        in_specs=[
            pl.BlockSpec((None, tc * B, 3 * H), xg_map),
            pl.BlockSpec((None, H, 3 * H), lambda d, c: (d, 0, 0)),
            pl.BlockSpec((None, 1, H), lambda d, c: (d, 0, 0)),
        ],
        out_specs=[
            pl.BlockSpec((tc * B, H), out_map),
            pl.BlockSpec((None, B, H), lambda d, c: (d, 0, 0)),
        ],
        scratch_shapes=[pltpu.VMEM((B, H), jnp.float32)],
    )

    out_flat, h_fin = pl.pallas_call(
        _bigru_chunk_kernel,
        out_shape=(
            jax.ShapeDtypeStruct((T * B, 2 * H), jnp.float32),
            jax.ShapeDtypeStruct((2, B, H), jnp.float32),
        ),
        grid_spec=grid_spec,
        compiler_params=pltpu.CompilerParams(
            # direction axis is independent (megacore split on v7x);
            # time-chunk axis carries the sequential recurrence.
            dimension_semantics=("parallel", "arbitrary")),
    )(xg, w_hh_s, b_hn_s)

    # (T*B, 2H) -> (T, B, 2H) is a free, contiguous reshape.
    return out_flat.reshape(T, B, 2 * H), h_fin


# ----------------------------------------------------------------------------
# BiRNN module (GRU branch) in JAX, deterministic parameter init.
# ----------------------------------------------------------------------------
class BiRNNPallas:
    HIDDEN_SIZE = 128

    def __init__(self, model, max_seq_len, dropout_rate, merge_mode=None,
                 embedding_dim=100, *, key):
        assert model == "gru", "only the GRU branch is implemented"
        self.model = model
        self.embedding_dim = embedding_dim
        self.hidden_size = self.HIDDEN_SIZE
        self.max_seq_len = max_seq_len          # == num_layers in the module
        self.dropout_rate = dropout_rate        # eval mode -> identity
        self.merge_mode = merge_mode

        H = self.hidden_size
        bound = 1.0 / (H ** 0.5)                # PyTorch default uniform init
        self.layers = []                        # per-layer stacked params
        for layer in range(self.max_seq_len):
            d_in = embedding_dim if layer == 0 else 2 * H
            w_ih, w_hh, b_x, b_hn = [], [], [], []
            for _direction in range(2):
                key, k1, k2, k3, k4 = jax.random.split(key, 5)
                w_ih_t = jax.random.uniform(k1, (d_in, 3 * H), jnp.float32,
                                            -bound, bound)
                w_hh_t = jax.random.uniform(k2, (H, 3 * H), jnp.float32,
                                            -bound, bound)
                b_ih = jax.random.uniform(k3, (3 * H,), jnp.float32,
                                          -bound, bound)
                b_hh = jax.random.uniform(k4, (3 * H,), jnp.float32,
                                          -bound, bound)
                # Fold biases: all of b_ih plus the r/z parts of b_hh go into
                # the hoisted x-projection; only b_hh_n stays in the kernel
                # (it sits inside the r*(...) term and cannot be folded).
                b_fold = b_ih.at[:2 * H].add(b_hh[:2 * H])
                w_ih.append(w_ih_t)
                w_hh.append(w_hh_t)
                b_x.append(b_fold)
                b_hn.append(b_hh[2 * H:][None, :])
            self.layers.append((
                jnp.stack(w_ih).astype(jnp.bfloat16),   # MXU operands in bf16
                jnp.stack(w_hh).astype(jnp.bfloat16),
                jnp.stack(b_x),                          # biases stay f32
                jnp.stack(b_hn),
            ))

    def __call__(self, x):
        """x: (batch, seq, embedding_dim) — batch_first, like the PyTorch module."""
        B, T, _ = x.shape
        H = self.hidden_size
        L = self.max_seq_len

        layer_in = jnp.transpose(x, (1, 0, 2))  # time-major (T, B, D)
        h_finals = []
        for (w_ih_s, w_hh_s, b_x_s, b_hn_s) in self.layers:
            layer_in, h_fin = bigru_layer(layer_in, w_ih_s, w_hh_s,
                                          b_x_s, b_hn_s)
            h_finals.append(h_fin[0])           # forward final hidden
            h_finals.append(h_fin[1])           # backward final hidden
            # dropout between layers skipped (eval-mode semantics)

        # PyTorch h_n layout: (num_layers * 2, B, H), layer-major.
        h_n = jnp.stack(h_finals, axis=0)       # (2L, B, H)

        # Reproduce: hidden.view(2, max_seq_len, B, H)[0] / [1]
        h_view = h_n.reshape(2, L, B, H)
        if self.merge_mode == "add":
            return h_view[0] + h_view[1]        # (L, B, H)
        # merge_mode None (or the invalid 'mean' path) -> raw hidden
        return h_n


# ----------------------------------------------------------------------------
if __name__ == "__main__":
    key = jax.random.PRNGKey(0)
    key, k_x, k_p = jax.random.split(key, 3)

    BATCH, SEQ, EMB = 2, 8, 32
    NUM_LAYERS = 2          # module's max_seq_len -> GRU num_layers

    model = BiRNNPallas("gru", max_seq_len=NUM_LAYERS, dropout_rate=0.1,
                        merge_mode="add", embedding_dim=EMB, key=k_p)

    x = jax.random.normal(k_x, (BATCH, SEQ, EMB), dtype=jnp.float32)

    out = model(x)
    out = jax.block_until_ready(out)

    assert out.shape == (NUM_LAYERS, BATCH, model.hidden_size), out.shape
    assert bool(jnp.all(jnp.isfinite(out)))
    print("KERNEL_OK")
</pallas_src>

<mosaic_0001>
module attributes {stable_mosaic.version = 11 : i64} {
  func.func @_bigru_chunk_kernel(%arg0: i32, %arg1: i32, %arg2: memref<1x16x384xbf16, #tpu.memory_space<vmem>>, %arg3: memref<1x128x384xbf16, #tpu.memory_space<vmem>>, %arg4: memref<1x1x128xf32, #tpu.memory_space<vmem>>, %arg5: memref<16x128xf32, #tpu.memory_space<vmem>>, %arg6: memref<1x2x128xf32, #tpu.memory_space<vmem>>, %arg7: memref<2x128xf32, #tpu.memory_space<vmem>>) attributes {dimension_semantics = [#tpu.dimension_semantics<parallel>, #tpu.dimension_semantics<arbitrary>], iteration_bounds = array<i64: 2, 1>, scalar_prefetch = 0 : i64, scratch_operands = 1 : i64, tpu.core_type = #tpu.core_type<tc>, window_params = [{transform_indices = @transform_0, window_bounds = array<i64: 1, 16, 384>}, {transform_indices = @transform_1, window_bounds = array<i64: 1, 128, 384>}, {transform_indices = @transform_2, window_bounds = array<i64: 1, 1, 128>}, {transform_indices = @transform_3, window_bounds = array<i64: 16, 128>}, {transform_indices = @transform_4, window_bounds = array<i64: 1, 2, 128>}]} {
    %c0_i32 = arith.constant 0 : i32
    %0 = arith.cmpi eq, %arg1, %c0_i32 : i32
    %1 = arith.extui %0 : i1 to i32
    %c0_i32_0 = arith.constant 0 : i32
    %2 = arith.cmpi ne, %1, %c0_i32_0 : i32
    scf.if %2 {
      %cst = arith.constant 0.000000e+00 : f32
      %16 = vector.broadcast %cst : f32 to vector<2x128xf32>
      %c0_8 = arith.constant 0 : index
      %c0_9 = arith.constant 0 : index
      %17 = vector.load %arg7[%c0_8, %c0_9] : memref<2x128xf32, #tpu.memory_space<vmem>>, vector<2x128xf32>
      tpu.vector_store %arg7[%c0_8, %c0_9], %16 {strides = array<i32>} : memref<2x128xf32, #tpu.memory_space<vmem>>, vector<2x128xf32>,
    } else {
    }
    %c0 = arith.constant 0 : index
    %c0_1 = arith.constant 0 : index
    %c0_2 = arith.constant 0 : index
    %3 = vector.load %arg4[%c0, %c0_1, %c0_2] : memref<1x1x128xf32, #tpu.memory_space<vmem>>, vector<1x1x128xf32>
    %4 = vector.shape_cast %3 : vector<1x1x128xf32> to vector<1x128xf32>
    %5 = vector.shape_cast %4 : vector<1x128xf32> to vector<1x128xf32>
    %6 = vector.broadcast %5 : vector<1x128xf32> to vector<2x128xf32>
    %c0_i32_3 = arith.constant 0 : i32
    %7 = arith.cmpi eq, %arg0, %c0_i32_3 : i32
    %8 = arith.extui %7 : i1 to i32
    %c0_i32_4 = arith.constant 0 : i32
    %9 = arith.cmpi ne, %8, %c0_i32_4 : i32
    scf.if %9 {
      %c0_8 = arith.constant 0 : index
      %c0_9 = arith.constant 0 : index
      %16 = vector.load %arg7[%c0_8, %c0_9] : memref<2x128xf32, #tpu.memory_space<vmem>>, vector<2x128xf32>
      %c0_10 = arith.constant 0 : index
      %c0_11 = arith.constant 0 : index
      %c0_12 = arith.constant 0 : index
      %17 = vector.load %arg2[%c0_10, %c0_11, %c0_12] : memref<1x16x384xbf16, #tpu.memory_space<vmem>>, vector<1x2x384xbf16>
      %18 = vector.shape_cast %17 : vector<1x2x384xbf16> to vector<2x384xbf16>
      %19 = arith.extf %18 : vector<2x384xbf16> to vector<2x384xf32>
      %20 = arith.truncf %16 : vector<2x128xf32> to vector<2x128xbf16>
      %c0_13 = arith.constant 0 : index
      %c0_14 = arith.constant 0 : index
      %c0_15 = arith.constant 0 : index
      %21 = vector.load %arg3[%c0_13, %c0_14, %c0_15] : memref<1x128x384xbf16, #tpu.memory_space<vmem>>, vector<1x128x384xbf16>
      %22 = vector.shape_cast %21 : vector<1x128x384xbf16> to vector<128x384xbf16>
      %cst = arith.constant dense<0.000000e+00> : vector<2x384xf32>
      %23 = tpu.matmul %20, %22, %cst {dimension_numbers = #tpu.dot_dimension_numbers<[1], [0], [0], [1], [0, 0, 1, 1], [], []>} : vector<2x128xbf16>, vector<128x384xbf16>, vector<2x384xf32> -> vector<2x384xf32>
      %24 = vector.extract_strided_slice %19 {offsets = [0, 0], sizes = [2, 128], strides = [1, 1]} : vector<2x384xf32> to vector<2x128xf32>
      %25 = vector.extract_strided_slice %23 {offsets = [0, 0], sizes = [2, 128], strides = [1, 1]} : vector<2x384xf32> to vector<2x128xf32>
      %26 = arith.addf %24, %25 : vector<2x128xf32>
      %27 = arith.negf %26 : vector<2x128xf32>
      %28 = math.exp %27 : vector<2x128xf32>
      %cst_16 = arith.constant 1.000000e+00 : f32
      %29 = vector.broadcast %cst_16 : f32 to vector<2x128xf32>
      %30 = arith.addf %29, %28 : vector<2x128xf32>
      %31 = arith.divf %29, %30 : vector<2x128xf32>
      %32 = vector.extract_strided_slice %19 {offsets = [0, 128], sizes = [2, 128], strides = [1, 1]} : vector<2x384xf32> to vector<2x128xf32>
      %33 = vector.extract_strided_slice %23 {offsets = [0, 128], sizes = [2, 128], strides = [1, 1]} : vector<2x384xf32> to vector<2x128xf32>
      %34 = arith.addf %32, %33 : vector<2x128xf32>
      %35 = arith.negf %34 : vector<2x128xf32>
      %36 = math.exp %35 : vector<2x128xf32>
      %cst_17 = arith.constant 1.000000e+00 : f32
      %37 = vector.broadcast %cst_17 : f32 to vector<2x128xf32>
      %38 = arith.addf %37, %36 : vector<2x128xf32>
      %39 = arith.divf %37, %38 : vector<2x128xf32>
      %40 = vector.extract_strided_slice %19 {offsets = [0, 256], sizes = [2, 128], strides = [1, 1]} : vector<2x384xf32> to vector<2x128xf32>
      %41 = vector.extract_strided_slice %23 {offsets = [0, 256], sizes = [2, 128], strides = [1, 1]} : vector<2x384xf32> to vector<2x128xf32>
      %42 = arith.addf %41, %6 : vector<2x128xf32>
      %43 = arith.mulf %31, %42 : vector<2x128xf32>
      %44 = arith.addf %40, %43 : vector<2x128xf32>
      %45 = math.tanh %44 : vector<2x128xf32>
      %cst_18 = arith.constant 1.000000e+00 : f32
      %46 = vector.broadcast %cst_18 : f32 to vector<2x128xf32>
      %47 = arith.subf %46, %39 : vector<2x128xf32>
      %48 = arith.mulf %47, %45 : vector<2x128xf32>
      %49 = arith.mulf %39, %16 : vector<2x128xf32>
      %50 = arith.addf %48, %49 : vector<2x128xf32>
      %c0_19 = arith.constant 0 : index
      %c0_20 = arith.constant 0 : index
      %51 = vector.load %arg5[%c0_19, %c0_20] : memref<16x128xf32, #tpu.memory_space<vmem>>, vector<2x128xf32>
      tpu.vector_store %arg5[%c0_19, %c0_20], %50 {strides = array<i32>} : memref<16x128xf32, #tpu.memory_space<vmem>>, vector<2x128xf32>,
      %c0_21 = arith.constant 0 : index
      %c2 = arith.constant 2 : index
      %c0_22 = arith.constant 0 : index
      %52 = vector.load %arg2[%c0_21, %c2, %c0_22] : memref<1x16x384xbf16, #tpu.memory_space<vmem>>, vector<1x2x384xbf16>
      %53 = vector.shape_cast %52 : vector<1x2x384xbf16> to vector<2x384xbf16>
      %54 = arith.extf %53 : vector<2x384xbf16> to vector<2x384xf32>
      %55 = arith.truncf %50 : vector<2x128xf32> to vector<2x128xbf16>
      %c0_23 = arith.constant 0 : index
      %c0_24 = arith.constant 0 : index
      %c0_25 = arith.constant 0 : index
      %56 = vector.load %arg3[%c0_23, %c0_24, %c0_25] : memref<1x128x384xbf16, #tpu.memory_space<vmem>>, vector<1x128x384xbf16>
      %57 = vector.shape_cast %56 : vector<1x128x384xbf16> to vector<128x384xbf16>
      %cst_26 = arith.constant dense<0.000000e+00> : vector<2x384xf32>
      %58 = tpu.matmul %55, %57, %cst_26 {dimension_numbers = #tpu.dot_dimension_numbers<[1], [0], [0], [1], [0, 0, 1, 1], [], []>} : vector<2x128xbf16>, vector<128x384xbf16>, vector<2x384xf32> -> vector<2x384xf32>
      %59 = vector.extract_strided_slice %54 {offsets = [0, 0], sizes = [2, 128], strides = [1, 1]} : vector<2x384xf32> to vector<2x128xf32>
      %60 = vector.extract_strided_slice %58 {offsets = [0, 0], sizes = [2, 128], strides = [1, 1]} : vector<2x384xf32> to vector<2x128xf32>
      %61 = arith.addf %59, %60 : vector<2x128xf32>
      %62 = arith.negf %61 : vector<2x128xf32>
      %63 = math.exp %62 : vector<2x128xf32>
      %cst_27 = arith.constant 1.000000e+00 : f32
      %64 = vector.broadcast %cst_27 : f32 to vector<2x128xf32>
      %65 = arith.addf %64, %63 : vector<2x128xf32>
      %66 = arith.divf %64, %65 : vector<2x128xf32>
      %67 = vector.extract_strided_slice %54 {offsets = [0, 128], sizes = [2, 128], strides = [1, 1]} : vector<2x384xf32> to vector<2x128xf32>
      %68 = vector.extract_strided_slice %58 {offsets = [0, 128], sizes = [2, 128], strides = [1, 1]} : vector<2x384xf32> to vector<2x128xf32>
      %69 = arith.addf %67, %68 : vector<2x128xf32>
      %70 = arith.negf %69 : vector<2x128xf32>
      %71 = math.exp %70 : vector<2x128xf32>
      %cst_28 = arith.constant 1.000000e+00 : f32
      %72 = vector.broadcast %cst_28 : f32 to vector<2x128xf32>
      %73 = arith.addf %72, %71 : vector<2x128xf32>
      %74 = arith.divf %72, %73 : vector<2x128xf32>
      %75 = vector.extract_strided_slice %54 {offsets = [0, 256], sizes = [2, 128], strides = [1, 1]} : vector<2x384xf32> to vector<2x128xf32>
      %76 = vector.extract_strided_slice %58 {offsets = [0, 256], sizes = [2, 128], strides = [1, 1]} : vector<2x384xf32> to vector<2x128xf32>
      %77 = arith.addf %76, %6 : vector<2x128xf32>
      %78 = arith.mulf %66, %77 : vector<2x128xf32>
      %79 = arith.addf %75, %78 : vector<2x128xf32>
      %80 = math.tanh %79 : vector<2x128xf32>
      %cst_29 = arith.constant 1.000000e+00 : f32
      %81 = vector.broadcast %cst_29 : f32 to vector<2x128xf32>
      %82 = arith.subf %81, %74 : vector<2x128xf32>
      %83 = arith.mulf %82, %80 : vector<2x128xf32>
      %84 = arith.mulf %74, %50 : vector<2x128xf32>
      %85 = arith.addf %83, %84 : vector<2x128xf32>
      %c2_30 = arith.constant 2 : index
      %c0_31 = arith.constant 0 : index
      %86 = vector.load %arg5[%c2_30, %c0_31] : memref<16x128xf32, #tpu.memory_space<vmem>>, vector<2x128xf32>
      tpu.vector_store %arg5[%c2_30, %c0_31], %85 {strides = array<i32>} : memref<16x128xf32, #tpu.memory_space<vmem>>, vector<2x128xf32>,
      %c0_32 = arith.constant 0 : index
      %c4 = arith.constant 4 : index
      %c0_33 = arith.constant 0 : index
      %87 = vector.load %arg2[%c0_32, %c4, %c0_33] : memref<1x16x384xbf16, #tpu.memory_space<vmem>>, vector<1x2x384xbf16>
      %88 = vector.shape_cast %87 : vector<1x2x384xbf16> to vector<2x384xbf16>
      %89 = arith.extf %88 : vector<2x384xbf16> to vector<2x384xf32>
      %90 = arith.truncf %85 : vector<2x128xf32> to vector<2x128xbf16>
      %c0_34 = arith.constant 0 : index
      %c0_35 = arith.constant 0 : index
      %c0_36 = arith.constant 0 : index
      %91 = vector.load %arg3[%c0_34, %c0_35, %c0_36] : memref<1x128x384xbf16, #tpu.memory_space<vmem>>, vector<1x128x384xbf16>
      %92 = vector.shape_cast %91 : vector<1x128x384xbf16> to vector<128x384xbf16>
      %cst_37 = arith.constant dense<0.000000e+00> : vector<2x384xf32>
      %93 = tpu.matmul %90, %92, %cst_37 {dimension_numbers = #tpu.dot_dimension_numbers<[1], [0], [0], [1], [0, 0, 1, 1], [], []>} : vector<2x128xbf16>, vector<128x384xbf16>, vector<2x384xf32> -> vector<2x384xf32>
      %94 = vector.extract_strided_slice %89 {offsets = [0, 0], sizes = [2, 128], strides = [1, 1]} : vector<2x384xf32> to vector<2x128xf32>
      %95 = vector.extract_strided_slice %93 {offsets = [0, 0], sizes = [2, 128], strides = [1, 1]} : vector<2x384xf32> to vector<2x128xf32>
      %96 = arith.addf %94, %95 : vector<2x128xf32>
      %97 = arith.negf %96 : vector<2x128xf32>
      %98 = math.exp %97 : vector<2x128xf32>
      %cst_38 = arith.constant 1.000000e+00 : f32
      %99 = vector.broadcast %cst_38 : f32 to vector<2x128xf32>
      %100 = arith.addf %99, %98 : vector<2x128xf32>
      %101 = arith.divf %99, %100 : vector<2x128xf32>
      %102 = vector.extract_strided_slice %89 {offsets = [0, 128], sizes = [2, 128], strides = [1, 1]} : vector<2x384xf32> to vector<2x128xf32>
      %103 = vector.extract_strided_slice %93 {offsets = [0, 128], sizes = [2, 128], strides = [1, 1]} : vector<2x384xf32> to vector<2x128xf32>
      %104 = arith.addf %102, %103 : vector<2x128xf32>
      %105 = arith.negf %104 : vector<2x128xf32>
      %106 = math.exp %105 : vector<2x128xf32>
      %cst_39 = arith.constant 1.000000e+00 : f32
      %107 = vector.broadcast %cst_39 : f32 to vector<2x128xf32>
      %108 = arith.addf %107, %106 : vector<2x128xf32>
      %109 = arith.divf %107, %108 : vector<2x128xf32>
      %110 = vector.extract_strided_slice %89 {offsets = [0, 256], sizes = [2, 128], strides = [1, 1]} : vector<2x384xf32> to vector<2x128xf32>
      %111 = vector.extract_strided_slice %93 {offsets = [0, 256], sizes = [2, 128], strides = [1, 1]} : vector<2x384xf32> to vector<2x128xf32>
      %112 = arith.addf %111, %6 : vector<2x128xf32>
      %113 = arith.mulf %101, %112 : vector<2x128xf32>
      %114 = arith.addf %110, %113 : vector<2x128xf32>
      %115 = math.tanh %114 : vector<2x128xf32>
      %cst_40 = arith.constant 1.000000e+00 : f32
      %116 = vector.broadcast %cst_40 : f32 to vector<2x128xf32>
      %117 = arith.subf %116, %109 : vector<2x128xf32>
      %118 = arith.mulf %117, %115 : vector<2x128xf32>
      %119 = arith.mulf %109, %85 : vector<2x128xf32>
      %120 = arith.addf %118, %119 : vector<2x128xf32>
      %c4_41 = arith.constant 4 : index
      %c0_42 = arith.constant 0 : index
      %121 = vector.load %arg5[%c4_41, %c0_42] : memref<16x128xf32, #tpu.memory_space<vmem>>, vector<2x128xf32>
      tpu.vector_store %arg5[%c4_41, %c0_42], %120 {strides = array<i32>} : memref<16x128xf32, #tpu.memory_space<vmem>>, vector<2x128xf32>,
      %c0_43 = arith.constant 0 : index
      %c6 = arith.constant 6 : index
      %c0_44 = arith.constant 0 : index
      %122 = vector.load %arg2[%c0_43, %c6, %c0_44] : memref<1x16x384xbf16, #tpu.memory_space<vmem>>, vector<1x2x384xbf16>
      %123 = vector.shape_cast %122 : vector<1x2x384xbf16> to vector<2x384xbf16>
      %124 = arith.extf %123 : vector<2x384xbf16> to vector<2x384xf32>
      %125 = arith.truncf %120 : vector<2x128xf32> to vector<2x128xbf16>
      %c0_45 = arith.constant 0 : index
      %c0_46 = arith.constant 0 : index
      %c0_47 = arith.constant 0 : index
      %126 = vector.load %arg3[%c0_45, %c0_46, %c0_47] : memref<1x128x384xbf16, #tpu.memory_space<vmem>>, vector<1x128x384xbf16>
      %127 = vector.shape_cast %126 : vector<1x128x384xbf16> to vector<128x384xbf16>
      %cst_48 = arith.constant dense<0.000000e+00> : vector<2x384xf32>
      %128 = tpu.matmul %125, %127, %cst_48 {dimension_numbers = #tpu.dot_dimension_numbers<[1], [0], [0], [1], [0, 0, 1, 1], [], []>} : vector<2x128xbf16>, vector<128x384xbf16>, vector<2x384xf32> -> vector<2x384xf32>
      %129 = vector.extract_strided_slice %124 {offsets = [0, 0], sizes = [2, 128], strides = [1, 1]} : vector<2x384xf32> to vector<2x128xf32>
      %130 = vector.extract_strided_slice %128 {offsets = [0, 0], sizes = [2, 128], strides = [1, 1]} : vector<2x384xf32> to vector<2x128xf32>
      %131 = arith.addf %129, %130 : vector<2x128xf32>
      %132 = arith.negf %131 : vector<2x128xf32>
      %133 = math.exp %132 : vector<2x128xf32>
      %cst_49 = arith.constant 1.000000e+00 : f32
      %134 = vector.broadcast %cst_49 : f32 to vector<2x128xf32>
      %135 = arith.addf %134, %133 : vector<2x128xf32>
      %136 = arith.divf %134, %135 : vector<2x128xf32>
      %137 = vector.extract_strided_slice %124 {offsets = [0, 128], sizes = [2, 128], strides = [1, 1]} : vector<2x384xf32> to vector<2x128xf32>
      %138 = vector.extract_strided_slice %128 {offsets = [0, 128], sizes = [2, 128], strides = [1, 1]} : vector<2x384xf32> to vector<2x128xf32>
      %139 = arith.addf %137, %138 : vector<2x128xf32>
      %140 = arith.negf %139 : vector<2x128xf32>
      %141 = math.exp %140 : vector<2x128xf32>
      %cst_50 = arith.constant 1.000000e+00 : f32
      %142 = vector.broadcast %cst_50 : f32 to vector<2x128xf32>
      %143 = arith.addf %142, %141 : vector<2x128xf32>
      %144 = arith.divf %142, %143 : vector<2x128xf32>
      %145 = vector.extract_strided_slice %124 {offsets = [0, 256], sizes = [2, 128], strides = [1, 1]} : vector<2x384xf32> to vector<2x128xf32>
      %146 = vector.extract_strided_slice %128 {offsets = [0, 256], sizes = [2, 128], strides = [1, 1]} : vector<2x384xf32> to vector<2x128xf32>
      %147 = arith.addf %146, %6 : vector<2x128xf32>
      %148 = arith.mulf %136, %147 : vector<2x128xf32>
      %149 = arith.addf %145, %148 : vector<2x128xf32>
      %150 = math.tanh %149 : vector<2x128xf32>
      %cst_51 = arith.constant 1.000000e+00 : f32
      %151 = vector.broadcast %cst_51 : f32 to vector<2x128xf32>
      %152 = arith.subf %151, %144 : vector<2x128xf32>
      %153 = arith.mulf %152, %150 : vector<2x128xf32>
      %154 = arith.mulf %144, %120 : vector<2x128xf32>
      %155 = arith.addf %153, %154 : vector<2x128xf32>
      %c6_52 = arith.constant 6 : index
      %c0_53 = arith.constant 0 : index
      %156 = vector.load %arg5[%c6_52, %c0_53] : memref<16x128xf32, #tpu.memory_space<vmem>>, vector<2x128xf32>
      tpu.vector_store %arg5[%c6_52, %c0_53], %155 {strides = array<i32>} : memref<16x128xf32, #tpu.memory_space<vmem>>, vector<2x128xf32>,
      %c0_54 = arith.constant 0 : index
      %c8 = arith.constant 8 : index
      %c0_55 = arith.constant 0 : index
      %157 = vector.load %arg2[%c0_54, %c8, %c0_55] : memref<1x16x384xbf16, #tpu.memory_space<vmem>>, vector<1x2x384xbf16>
      %158 = vector.shape_cast %157 : vector<1x2x384xbf16> to vector<2x384xbf16>
      %159 = arith.extf %158 : vector<2x384xbf16> to vector<2x384xf32>
      %160 = arith.truncf %155 : vector<2x128xf32> to vector<2x128xbf16>
      %c0_56 = arith.constant 0 : index
      %c0_57 = arith.constant 0 : index
      %c0_58 = arith.constant 0 : index
      %161 = vector.load %arg3[%c0_56, %c0_57, %c0_58] : memref<1x128x384xbf16, #tpu.memory_space<vmem>>, vector<1x128x384xbf16>
      %162 = vector.shape_cast %161 : vector<1x128x384xbf16> to vector<128x384xbf16>
      %cst_59 = arith.constant dense<0.000000e+00> : vector<2x384xf32>
      %163 = tpu.matmul %160, %162, %cst_59 {dimension_numbers = #tpu.dot_dimension_numbers<[1], [0], [0], [1], [0, 0, 1, 1], [], []>} : vector<2x128xbf16>, vector<128x384xbf16>, vector<2x384xf32> -> vector<2x384xf32>
      %164 = vector.extract_strided_slice %159 {offsets = [0, 0], sizes = [2, 128], strides = [1, 1]} : vector<2x384xf32> to vector<2x128xf32>
      %165 = vector.extract_strided_slice %163 {offsets = [0, 0], sizes = [2, 128], strides = [1, 1]} : vector<2x384xf32> to vector<2x128xf32>
      %166 = arith.addf %164, %165 : vector<2x128xf32>
      %167 = arith.negf %166 : vector<2x128xf32>
      %168 = math.exp %167 : vector<2x128xf32>
      %cst_60 = arith.constant 1.000000e+00 : f32
      %169 = vector.broadcast %cst_60 : f32 to vector<2x128xf32>
      %170 = arith.addf %169, %168 : vector<2x128xf32>
      %171 = arith.divf %169, %170 : vector<2x128xf32>
      %172 = vector.extract_strided_slice %159 {offsets = [0, 128], sizes = [2, 128], strides = [1, 1]} : vector<2x384xf32> to vector<2x128xf32>
      %173 = vector.extract_strided_slice %163 {offsets = [0, 128], sizes = [2, 128], strides = [1, 1]} : vector<2x384xf32> to vector<2x128xf32>
      %174 = arith.addf %172, %173 : vector<2x128xf32>
      %175 = arith.negf %174 : vector<2x128xf32>
      %176 = math.exp %175 : vector<2x128xf32>
      %cst_61 = arith.constant 1.000000e+00 : f32
      %177 = vector.broadcast %cst_61 : f32 to vector<2x128xf32>
      %178 = arith.addf %177, %176 : vector<2x128xf32>
      %179 = arith.divf %177, %178 : vector<2x128xf32>
      %180 = vector.extract_strided_slice %159 {offsets = [0, 256], sizes = [2, 128], strides = [1, 1]} : vector<2x384xf32> to vector<2x128xf32>
      %181 = vector.extract_strided_slice %163 {offsets = [0, 256], sizes = [2, 128], strides = [1, 1]} : vector<2x384xf32> to vector<2x128xf32>
      %182 = arith.addf %181, %6 : vector<2x128xf32>
      %183 = arith.mulf %171, %182 : vector<2x128xf32>
      %184 = arith.addf %180, %183 : vector<2x128xf32>
      %185 = math.tanh %184 : vector<2x128xf32>
      %cst_62 = arith.constant 1.000000e+00 : f32
      %186 = vector.broadcast %cst_62 : f32 to vector<2x128xf32>
      %187 = arith.subf %186, %179 : vector<2x128xf32>
      %188 = arith.mulf %187, %185 : vector<2x128xf32>
      %189 = arith.mulf %179, %155 : vector<2x128xf32>
      %190 = arith.addf %188, %189 : vector<2x128xf32>
      %c8_63 = arith.constant 8 : index
      %c0_64 = arith.constant 0 : index
      %191 = vector.load %arg5[%c8_63, %c0_64] : memref<16x128xf32, #tpu.memory_space<vmem>>, vector<2x128xf32>
      tpu.vector_store %arg5[%c8_63, %c0_64], %190 {strides = array<i32>} : memref<16x128xf32, #tpu.memory_space<vmem>>, vector<2x128xf32>,
      %c0_65 = arith.constant 0 : index
      %c10 = arith.constant 10 : index
      %c0_66 = arith.constant 0 : index
      %192 = vector.load %arg2[%c0_65, %c10, %c0_66] : memref<1x16x384xbf16, #tpu.memory_space<vmem>>, vector<1x2x384xbf16>
      %193 = vector.shape_cast %192 : vector<1x2x384xbf16> to vector<2x384xbf16>
      %194 = arith.extf %193 : vector<2x384xbf16> to vector<2x384xf32>
      %195 = arith.truncf %190 : vector<2x128xf32> to vector<2x128xbf16>
      %c0_67 = arith.constant 0 : index
      %c0_68 = arith.constant 0 : index
      %c0_69 = arith.constant 0 : index
      %196 = vector.load %arg3[%c0_67, %c0_68, %c0_69] : memref<1x128x384xbf16, #tpu.memory_space<vmem>>, vector<1x128x384xbf16>
      %197 = vector.shape_cast %196 : vector<1x128x384xbf16> to vector<128x384xbf16>
      %cst_70 = arith.constant dense<0.000000e+00> : vector<2x384xf32>
      %198 = tpu.matmul %195, %197, %cst_70 {dimension_numbers = #tpu.dot_dimension_numbers<[1], [0], [0], [1], [0, 0, 1, 1], [], []>} : vector<2x128xbf16>, vector<128x384xbf16>, vector<2x384xf32> -> vector<2x384xf32>
      %199 = vector.extract_strided_slice %194 {offsets = [0, 0], sizes = [2, 128], strides = [1, 1]} : vector<2x384xf32> to vector<2x128xf32>
      %200 = vector.extract_strided_slice %198 {offsets = [0, 0], sizes = [2, 128], strides = [1, 1]} : vector<2x384xf32> to vector<2x128xf32>
      %201 = arith.addf %199, %200 : vector<2x128xf32>
      %202 = arith.negf %201 : vector<2x128xf32>
      %203 = math.exp %202 : vector<2x128xf32>
      %cst_71 = arith.constant 1.000000e+00 : f32
      %204 = vector.broadcast %cst_71 : f32 to vector<2x128xf32>
      %205 = arith.addf %204, %203 : vector<2x128xf32>
      %206 = arith.divf %204, %205 : vector<2x128xf32>
      %207 = vector.extract_strided_slice %194 {offsets = [0, 128], sizes = [2, 128], strides = [1, 1]} : vector<2x384xf32> to vector<2x128xf32>
      %208 = vector.extract_strided_slice %198 {offsets = [0, 128], sizes = [2, 128], strides = [1, 1]} : vector<2x384xf32> to vector<2x128xf32>
      %209 = arith.addf %207, %208 : vector<2x128xf32>
      %210 = arith.negf %209 : vector<2x128xf32>
      %211 = math.exp %210 : vector<2x128xf32>
      %cst_72 = arith.constant 1.000000e+00 : f32
      %212 = vector.broadcast %cst_72 : f32 to vector<2x128xf32>
      %213 = arith.addf %212, %211 : vector<2x128xf32>
      %214 = arith.divf %212, %213 : vector<2x128xf32>
      %215 = vector.extract_strided_slice %194 {offsets = [0, 256], sizes = [2, 128], strides = [1, 1]} : vector<2x384xf32> to vector<2x128xf32>
      %216 = vector.extract_strided_slice %198 {offsets = [0, 256], sizes = [2, 128], strides = [1, 1]} : vector<2x384xf32> to vector<2x128xf32>
      %217 = arith.addf %216, %6 : vector<2x128xf32>
      %218 = arith.mulf %206, %217 : vector<2x128xf32>
      %219 = arith.addf %215, %218 : vector<2x128xf32>
      %220 = math.tanh %219 : vector<2x128xf32>
      %cst_73 = arith.constant 1.000000e+00 : f32
      %221 = vector.broadcast %cst_73 : f32 to vector<2x128xf32>
      %222 = arith.subf %221, %214 : vector<2x128xf32>
      %223 = arith.mulf %222, %220 : vector<2x128xf32>
      %224 = arith.mulf %214, %190 : vector<2x128xf32>
      %225 = arith.addf %223, %224 : vector<2x128xf32>
      %c10_74 = arith.constant 10 : index
      %c0_75 = arith.constant 0 : index
      %226 = vector.load %arg5[%c10_74, %c0_75] : memref<16x128xf32, #tpu.memory_space<vmem>>, vector<2x128xf32>
      tpu.vector_store %arg5[%c10_74, %c0_75], %225 {strides = array<i32>} : memref<16x128xf32, #tpu.memory_space<vmem>>, vector<2x128xf32>,
      %c0_76 = arith.constant 0 : index
      %c12 = arith.constant 12 : index
      %c0_77 = arith.constant 0 : index
      %227 = vector.load %arg2[%c0_76, %c12, %c0_77] : memref<1x16x384xbf16, #tpu.memory_space<vmem>>, vector<1x2x384xbf16>
      %228 = vector.shape_cast %227 : vector<1x2x384xbf16> to vector<2x384xbf16>
      %229 = arith.extf %228 : vector<2x384xbf16> to vector<2x384xf32>
      %230 = arith.truncf %225 : vector<2x128xf32> to vector<2x128xbf16>
      %c0_78 = arith.constant 0 : index
      %c0_79 = arith.constant 0 : index
      %c0_80 = arith.constant 0 : index
      %231 = vector.load %arg3[%c0_78, %c0_79, %c0_80] : memref<1x128x384xbf16, #tpu.memory_space<vmem>>, vector<1x128x384xbf16>
      %232 = vector.shape_cast %231 : vector<1x128x384xbf16> to vector<128x384xbf16>
      %cst_81 = arith.constant dense<0.000000e+00> : vector<2x384xf32>
      %233 = tpu.matmul %230, %232, %cst_81 {dimension_numbers = #tpu.dot_dimension_numbers<[1], [0], [0], [1], [0, 0, 1, 1], [], []>} : vector<2x128xbf16>, vector<128x384xbf16>, vector<2x384xf32> -> vector<2x384xf32>
      %234 = vector.extract_strided_slice %229 {offsets = [0, 0], sizes = [2, 128], strides = [1, 1]} : vector<2x384xf32> to vector<2x128xf32>
      %235 = vector.extract_strided_slice %233 {offsets = [0, 0], sizes = [2, 128], strides = [1, 1]} : vector<2x384xf32> to vector<2x128xf32>
      %236 = arith.addf %234, %235 : vector<2x128xf32>
      %237 = arith.negf %236 : vector<2x128xf32>
      %238 = math.exp %237 : vector<2x128xf32>
      %cst_82 = arith.constant 1.000000e+00 : f32
      %239 = vector.broadcast %cst_82 : f32 to vector<2x128xf32>
      %240 = arith.addf %239, %238 : vector<2x128xf32>
      %241 = arith.divf %239, %240 : vector<2x128xf32>
      %242 = vector.extract_strided_slice %229 {offsets = [0, 128], sizes = [2, 128], strides = [1, 1]} : vector<2x384xf32> to vector<2x128xf32>
      %243 = vector.extract_strided_slice %233 {offsets = [0, 128], sizes = [2, 128], strides = [1, 1]} : vector<2x384xf32> to vector<2x128xf32>
      %244 = arith.addf %242, %243 : vector<2x128xf32>
      %245 = arith.negf %244 : vector<2x128xf32>
      %246 = math.exp %245 : vector<2x128xf32>
      %cst_83 = arith.constant 1.000000e+00 : f32
      %247 = vector.broadcast %cst_83 : f32 to vector<2x128xf32>
      %248 = arith.addf %247, %246 : vector<2x128xf32>
      %249 = arith.divf %247, %248 : vector<2x128xf32>
      %250 = vector.extract_strided_slice %229 {offsets = [0, 256], sizes = [2, 128], strides = [1, 1]} : vector<2x384xf32> to vector<2x128xf32>
      %251 = vector.extract_strided_slice %233 {offsets = [0, 256], sizes = [2, 128], strides = [1, 1]} : vector<2x384xf32> to vector<2x128xf32>
      %252 = arith.addf %251, %6 : vector<2x128xf32>
      %253 = arith.mulf %241, %252 : vector<2x128xf32>
      %254 = arith.addf %250, %253 : vector<2x128xf32>
      %255 = math.tanh %254 : vector<2x128xf32>
      %cst_84 = arith.constant 1.000000e+00 : f32
      %256 = vector.broadcast %cst_84 : f32 to vector<2x128xf32>
      %257 = arith.subf %256, %249 : vector<2x128xf32>
      %258 = arith.mulf %257, %255 : vector<2x128xf32>
      %259 = arith.mulf %249, %225 : vector<2x128xf32>
      %260 = arith.addf %258, %259 : vector<2x128xf32>
      %c12_85 = arith.constant 12 : index
      %c0_86 = arith.constant 0 : index
      %261 = vector.load %arg5[%c12_85, %c0_86] : memref<16x128xf32, #tpu.memory_space<vmem>>, vector<2x128xf32>
      tpu.vector_store %arg5[%c12_85, %c0_86], %260 {strides = array<i32>} : memref<16x128xf32, #tpu.memory_space<vmem>>, vector<2x128xf32>,
      %c0_87 = arith.constant 0 : index
      %c14 = arith.constant 14 : index
      %c0_88 = arith.constant 0 : index
      %262 = vector.load %arg2[%c0_87, %c14, %c0_88] : memref<1x16x384xbf16, #tpu.memory_space<vmem>>, vector<1x2x384xbf16>
      %263 = vector.shape_cast %262 : vector<1x2x384xbf16> to vector<2x384xbf16>
      %264 = arith.extf %263 : vector<2x384xbf16> to vector<2x384xf32>
      %265 = arith.truncf %260 : vector<2x128xf32> to vector<2x128xbf16>
      %c0_89 = arith.constant 0 : index
      %c0_90 = arith.constant 0 : index
      %c0_91 = arith.constant 0 : index
      %266 = vector.load %arg3[%c0_89, %c0_90, %c0_91] : memref<1x128x384xbf16, #tpu.memory_space<vmem>>, vector<1x128x384xbf16>
      %267 = vector.shape_cast %266 : vector<1x128x384xbf16> to vector<128x384xbf16>
      %cst_92 = arith.constant dense<0.000000e+00> : vector<2x384xf32>
      %268 = tpu.matmul %265, %267, %cst_92 {dimension_numbers = #tpu.dot_dimension_numbers<[1], [0], [0], [1], [0, 0, 1, 1], [], []>} : vector<2x128xbf16>, vector<128x384xbf16>, vector<2x384xf32> -> vector<2x384xf32>
      %269 = vector.extract_strided_slice %264 {offsets = [0, 0], sizes = [2, 128], strides = [1, 1]} : vector<2x384xf32> to vector<2x128xf32>
      %270 = vector.extract_strided_slice %268 {offsets = [0, 0], sizes = [2, 128], strides = [1, 1]} : vector<2x384xf32> to vector<2x128xf32>
      %271 = arith.addf %269, %270 : vector<2x128xf32>
      %272 = arith.negf %271 : vector<2x128xf32>
      %273 = math.exp %272 : vector<2x128xf32>
      %cst_93 = arith.constant 1.000000e+00 : f32
      %274 = vector.broadcast %cst_93 : f32 to vector<2x128xf32>
      %275 = arith.addf %274, %273 : vector<2x128xf32>
      %276 = arith.divf %274, %275 : vector<2x128xf32>
      %277 = vector.extract_strided_slice %264 {offsets = [0, 128], sizes = [2, 128], strides = [1, 1]} : vector<2x384xf32> to vector<2x128xf32>
      %278 = vector.extract_strided_slice %268 {offsets = [0, 128], sizes = [2, 128], strides = [1, 1]} : vector<2x384xf32> to vector<2x128xf32>
      %279 = arith.addf %277, %278 : vector<2x128xf32>
      %280 = arith.negf %279 : vector<2x128xf32>
      %281 = math.exp %280 : vector<2x128xf32>
      %cst_94 = arith.constant 1.000000e+00 : f32
      %282 = vector.broadcast %cst_94 : f32 to vector<2x128xf32>
      %283 = arith.addf %282, %281 : vector<2x128xf32>
      %284 = arith.divf %282, %283 : vector<2x128xf32>
      %285 = vector.extract_strided_slice %264 {offsets = [0, 256], sizes = [2, 128], strides = [1, 1]} : vector<2x384xf32> to vector<2x128xf32>
      %286 = vector.extract_strided_slice %268 {offsets = [0, 256], sizes = [2, 128], strides = [1, 1]} : vector<2x384xf32> to vector<2x128xf32>
      %287 = arith.addf %286, %6 : vector<2x128xf32>
      %288 = arith.mulf %276, %287 : vector<2x128xf32>
      %289 = arith.addf %285, %288 : vector<2x128xf32>
      %290 = math.tanh %289 : vector<2x128xf32>
      %cst_95 = arith.constant 1.000000e+00 : f32
      %291 = vector.broadcast %cst_95 : f32 to vector<2x128xf32>
      %292 = arith.subf %291, %284 : vector<2x128xf32>
      %293 = arith.mulf %292, %290 : vector<2x128xf32>
      %294 = arith.mulf %284, %260 : vector<2x128xf32>
      %295 = arith.addf %293, %294 : vector<2x128xf32>
      %c14_96 = arith.constant 14 : index
      %c0_97 = arith.constant 0 : index
      %296 = vector.load %arg5[%c14_96, %c0_97] : memref<16x128xf32, #tpu.memory_space<vmem>>, vector<2x128xf32>
      tpu.vector_store %arg5[%c14_96, %c0_97], %295 {strides = array<i32>} : memref<16x128xf32, #tpu.memory_space<vmem>>, vector<2x128xf32>,
      %c0_98 = arith.constant 0 : index
      %c0_99 = arith.constant 0 : index
      %297 = vector.load %arg7[%c0_98, %c0_99] : memref<2x128xf32, #tpu.memory_space<vmem>>, vector<2x128xf32>
      tpu.vector_store %arg7[%c0_98, %c0_99], %295 {strides = array<i32>} : memref<2x128xf32, #tpu.memory_space<vmem>>, vector<2x128xf32>,
    } else {
    }
    %c1_i32 = arith.constant 1 : i32
    %10 = arith.cmpi eq, %arg0, %c1_i32 : i32
    %11 = arith.extui %10 : i1 to i32
    %c0_i32_5 = arith.constant 0 : i32
    %12 = arith.cmpi ne, %11, %c0_i32_5 : i32
    scf.if %12 {
      %c0_8 = arith.constant 0 : index
      %c0_9 = arith.constant 0 : index
      %16 = vector.load %arg7[%c0_8, %c0_9] : memref<2x128xf32, #tpu.memory_space<vmem>>, vector<2x128xf32>
      %c0_10 = arith.constant 0 : index
      %c14 = arith.constant 14 : index
      %c0_11 = arith.constant 0 : index
      %17 = vector.load %arg2[%c0_10, %c14, %c0_11] : memref<1x16x384xbf16, #tpu.memory_space<vmem>>, vector<1x2x384xbf16>
      %18 = vector.shape_cast %17 : vector<1x2x384xbf16> to vector<2x384xbf16>
      %19 = arith.extf %18 : vector<2x384xbf16> to vector<2x384xf32>
      %20 = arith.truncf %16 : vector<2x128xf32> to vector<2x128xbf16>
      %c0_12 = arith.constant 0 : index
      %c0_13 = arith.constant 0 : index
      %c0_14 = arith.constant 0 : index
      %21 = vector.load %arg3[%c0_12, %c0_13, %c0_14] : memref<1x128x384xbf16, #tpu.memory_space<vmem>>, vector<1x128x384xbf16>
      %22 = vector.shape_cast %21 : vector<1x128x384xbf16> to vector<128x384xbf16>
      %cst = arith.constant dense<0.000000e+00> : vector<2x384xf32>
      %23 = tpu.matmul %20, %22, %cst {dimension_numbers = #tpu.dot_dimension_numbers<[1], [0], [0], [1], [0, 0, 1, 1], [], []>} : vector<2x128xbf16>, vector<128x384xbf16>, vector<2x384xf32> -> vector<2x384xf32>
      %24 = vector.extract_strided_slice %19 {offsets = [0, 0], sizes = [2, 128], strides = [1, 1]} : vector<2x384xf32> to vector<2x128xf32>
      %25 = vector.extract_strided_slice %23 {offsets = [0, 0], sizes = [2, 128], strides = [1, 1]} : vector<2x384xf32> to vector<2x128xf32>
      %26 = arith.addf %24, %25 : vector<2x128xf32>
      %27 = arith.negf %26 : vector<2x128xf32>
      %28 = math.exp %27 : vector<2x128xf32>
      %cst_15 = arith.constant 1.000000e+00 : f32
      %29 = vector.broadcast %cst_15 : f32 to vector<2x128xf32>
      %30 = arith.addf %29, %28 : vector<2x128xf32>
      %31 = arith.divf %29, %30 : vector<2x128xf32>
      %32 = vector.extract_strided_slice %19 {offsets = [0, 128], sizes = [2, 128], strides = [1, 1]} : vector<2x384xf32> to vector<2x128xf32>
      %33 = vector.extract_strided_slice %23 {offsets = [0, 128], sizes = [2, 128], strides = [1, 1]} : vector<2x384xf32> to vector<2x128xf32>
      %34 = arith.addf %32, %33 : vector<2x128xf32>
      %35 = arith.negf %34 : vector<2x128xf32>
      %36 = math.exp %35 : vector<2x128xf32>
      %cst_16 = arith.constant 1.000000e+00 : f32
      %37 = vector.broadcast %cst_16 : f32 to vector<2x128xf32>
      %38 = arith.addf %37, %36 : vector<2x128xf32>
      %39 = arith.divf %37, %38 : vector<2x128xf32>
      %40 = vector.extract_strided_slice %19 {offsets = [0, 256], sizes = [2, 128], strides = [1, 1]} : vector<2x384xf32> to vector<2x128xf32>
      %41 = vector.extract_strided_slice %23 {offsets = [0, 256], sizes = [2, 128], strides = [1, 1]} : vector<2x384xf32> to vector<2x128xf32>
      %42 = arith.addf %41, %6 : vector<2x128xf32>
      %43 = arith.mulf %31, %42 : vector<2x128xf32>
      %44 = arith.addf %40, %43 : vector<2x128xf32>
      %45 = math.tanh %44 : vector<2x128xf32>
      %cst_17 = arith.constant 1.000000e+00 : f32
      %46 = vector.broadcast %cst_17 : f32 to vector<2x128xf32>
      %47 = arith.subf %46, %39 : vector<2x128xf32>
      %48 = arith.mulf %47, %45 : vector<2x128xf32>
      %49 = arith.mulf %39, %16 : vector<2x128xf32>
      %50 = arith.addf %48, %49 : vector<2x128xf32>
      %c14_18 = arith.constant 14 : index
      %c0_19 = arith.constant 0 : index
      %51 = vector.load %arg5[%c14_18, %c0_19] : memref<16x128xf32, #tpu.memory_space<vmem>>, vector<2x128xf32>
      tpu.vector_store %arg5[%c14_18, %c0_19], %50 {strides = array<i32>} : memref<16x128xf32, #tpu.memory_space<vmem>>, vector<2x128xf32>,
      %c0_20 = arith.constant 0 : index
      %c12 = arith.constant 12 : index
      %c0_21 = arith.constant 0 : index
      %52 = vector.load %arg2[%c0_20, %c12, %c0_21] : memref<1x16x384xbf16, #tpu.memory_space<vmem>>, vector<1x2x384xbf16>
      %53 = vector.shape_cast %52 : vector<1x2x384xbf16> to vector<2x384xbf16>
      %54 = arith.extf %53 : vector<2x384xbf16> to vector<2x384xf32>
      %55 = arith.truncf %50 : vector<2x128xf32> to vector<2x128xbf16>
      %c0_22 = arith.constant 0 : index
      %c0_23 = arith.constant 0 : index
      %c0_24 = arith.constant 0 : index
      %56 = vector.load %arg3[%c0_22, %c0_23, %c0_24] : memref<1x128x384xbf16, #tpu.memory_space<vmem>>, vector<1x128x384xbf16>
      %57 = vector.shape_cast %56 : vector<1x128x384xbf16> to vector<128x384xbf16>
      %cst_25 = arith.constant dense<0.000000e+00> : vector<2x384xf32>
      %58 = tpu.matmul %55, %57, %cst_25 {dimension_numbers = #tpu.dot_dimension_numbers<[1], [0], [0], [1], [0, 0, 1, 1], [], []>} : vector<2x128xbf16>, vector<128x384xbf16>, vector<2x384xf32> -> vector<2x384xf32>
      %59 = vector.extract_strided_slice %54 {offsets = [0, 0], sizes = [2, 128], strides = [1, 1]} : vector<2x384xf32> to vector<2x128xf32>
      %60 = vector.extract_strided_slice %58 {offsets = [0, 0], sizes = [2, 128], strides = [1, 1]} : vector<2x384xf32> to vector<2x128xf32>
      %61 = arith.addf %59, %60 : vector<2x128xf32>
      %62 = arith.negf %61 : vector<2x128xf32>
      %63 = math.exp %62 : vector<2x128xf32>
      %cst_26 = arith.constant 1.000000e+00 : f32
      %64 = vector.broadcast %cst_26 : f32 to vector<2x128xf32>
      %65 = arith.addf %64, %63 : vector<2x128xf32>
      %66 = arith.divf %64, %65 : vector<2x128xf32>
      %67 = vector.extract_strided_slice %54 {offsets = [0, 128], sizes = [2, 128], strides = [1, 1]} : vector<2x384xf32> to vector<2x128xf32>
      %68 = vector.extract_strided_slice %58 {offsets = [0, 128], sizes = [2, 128], strides = [1, 1]} : vector<2x384xf32> to vector<2x128xf32>
      %69 = arith.addf %67, %68 : vector<2x128xf32>
      %70 = arith.negf %69 : vector<2x128xf32>
      %71 = math.exp %70 : vector<2x128xf32>
      %cst_27 = arith.constant 1.000000e+00 : f32
      %72 = vector.broadcast %cst_27 : f32 to vector<2x128xf32>
      %73 = arith.addf %72, %71 : vector<2x128xf32>
      %74 = arith.divf %72, %73 : vector<2x128xf32>
      %75 = vector.extract_strided_slice %54 {offsets = [0, 256], sizes = [2, 128], strides = [1, 1]} : vector<2x384xf32> to vector<2x128xf32>
      %76 = vector.extract_strided_slice %58 {offsets = [0, 256], sizes = [2, 128], strides = [1, 1]} : vector<2x384xf32> to vector<2x128xf32>
      %77 = arith.addf %76, %6 : vector<2x128xf32>
      %78 = arith.mulf %66, %77 : vector<2x128xf32>
      %79 = arith.addf %75, %78 : vector<2x128xf32>
      %80 = math.tanh %79 : vector<2x128xf32>
      %cst_28 = arith.constant 1.000000e+00 : f32
      %81 = vector.broadcast %cst_28 : f32 to vector<2x128xf32>
      %82 = arith.subf %81, %74 : vector<2x128xf32>
      %83 = arith.mulf %82, %80 : vector<2x128xf32>
      %84 = arith.mulf %74, %50 : vector<2x128xf32>
      %85 = arith.addf %83, %84 : vector<2x128xf32>
      %c12_29 = arith.constant 12 : index
      %c0_30 = arith.constant 0 : index
      %86 = vector.load %arg5[%c12_29, %c0_30] : memref<16x128xf32, #tpu.memory_space<vmem>>, vector<2x128xf32>
      tpu.vector_store %arg5[%c12_29, %c0_30], %85 {strides = array<i32>} : memref<16x128xf32, #tpu.memory_space<vmem>>, vector<2x128xf32>,
      %c0_31 = arith.constant 0 : index
      %c10 = arith.constant 10 : index
      %c0_32 = arith.constant 0 : index
      %87 = vector.load %arg2[%c0_31, %c10, %c0_32] : memref<1x16x384xbf16, #tpu.memory_space<vmem>>, vector<1x2x384xbf16>
      %88 = vector.shape_cast %87 : vector<1x2x384xbf16> to vector<2x384xbf16>
      %89 = arith.extf %88 : vector<2x384xbf16> to vector<2x384xf32>
      %90 = arith.truncf %85 : vector<2x128xf32> to vector<2x128xbf16>
      %c0_33 = arith.constant 0 : index
      %c0_34 = arith.constant 0 : index
      %c0_35 = arith.constant 0 : index
      %91 = vector.load %arg3[%c0_33, %c0_34, %c0_35] : memref<1x128x384xbf16, #tpu.memory_space<vmem>>, vector<1x128x384xbf16>
      %92 = vector.shape_cast %91 : vector<1x128x384xbf16> to vector<128x384xbf16>
      %cst_36 = arith.constant dense<0.000000e+00> : vector<2x384xf32>
      %93 = tpu.matmul %90, %92, %cst_36 {dimension_numbers = #tpu.dot_dimension_numbers<[1], [0], [0], [1], [0, 0, 1, 1], [], []>} : vector<2x128xbf16>, vector<128x384xbf16>, vector<2x384xf32> -> vector<2x384xf32>
      %94 = vector.extract_strided_slice %89 {offsets = [0, 0], sizes = [2, 128], strides = [1, 1]} : vector<2x384xf32> to vector<2x128xf32>
      %95 = vector.extract_strided_slice %93 {offsets = [0, 0], sizes = [2, 128], strides = [1, 1]} : vector<2x384xf32> to vector<2x128xf32>
      %96 = arith.addf %94, %95 : vector<2x128xf32>
      %97 = arith.negf %96 : vector<2x128xf32>
      %98 = math.exp %97 : vector<2x128xf32>
      %cst_37 = arith.constant 1.000000e+00 : f32
      %99 = vector.broadcast %cst_37 : f32 to vector<2x128xf32>
      %100 = arith.addf %99, %98 : vector<2x128xf32>
      %101 = arith.divf %99, %100 : vector<2x128xf32>
      %102 = vector.extract_strided_slice %89 {offsets = [0, 128], sizes = [2, 128], strides = [1, 1]} : vector<2x384xf32> to vector<2x128xf32>
      %103 = vector.extract_strided_slice %93 {offsets = [0, 128], sizes = [2, 128], strides = [1, 1]} : vector<2x384xf32> to vector<2x128xf32>
      %104 = arith.addf %102, %103 : vector<2x128xf32>
      %105 = arith.negf %104 : vector<2x128xf32>
      %106 = math.exp %105 : vector<2x128xf32>
      %cst_38 = arith.constant 1.000000e+00 : f32
      %107 = vector.broadcast %cst_38 : f32 to vector<2x128xf32>
      %108 = arith.addf %107, %106 : vector<2x128xf32>
      %109 = arith.divf %107, %108 : vector<2x128xf32>
      %110 = vector.extract_strided_slice %89 {offsets = [0, 256], sizes = [2, 128], strides = [1, 1]} : vector<2x384xf32> to vector<2x128xf32>
      %111 = vector.extract_strided_slice %93 {offsets = [0, 256], sizes = [2, 128], strides = [1, 1]} : vector<2x384xf32> to vector<2x128xf32>
      %112 = arith.addf %111, %6 : vector<2x128xf32>
      %113 = arith.mulf %101, %112 : vector<2x128xf32>
      %114 = arith.addf %110, %113 : vector<2x128xf32>
      %115 = math.tanh %114 : vector<2x128xf32>
      %cst_39 = arith.constant 1.000000e+00 : f32
      %116 = vector.broadcast %cst_39 : f32 to vector<2x128xf32>
      %117 = arith.subf %116, %109 : vector<2x128xf32>
      %118 = arith.mulf %117, %115 : vector<2x128xf32>
      %119 = arith.mulf %109, %85 : vector<2x128xf32>
      %120 = arith.addf %118, %119 : vector<2x128xf32>
      %c10_40 = arith.constant 10 : index
      %c0_41 = arith.constant 0 : index
      %121 = vector.load %arg5[%c10_40, %c0_41] : memref<16x128xf32, #tpu.memory_space<vmem>>, vector<2x128xf32>
      tpu.vector_store %arg5[%c10_40, %c0_41], %120 {strides = array<i32>} : memref<16x128xf32, #tpu.memory_space<vmem>>, vector<2x128xf32>,
      %c0_42 = arith.constant 0 : index
      %c8 = arith.constant 8 : index
      %c0_43 = arith.constant 0 : index
      %122 = vector.load %arg2[%c0_42, %c8, %c0_43] : memref<1x16x384xbf16, #tpu.memory_space<vmem>>, vector<1x2x384xbf16>
      %123 = vector.shape_cast %122 : vector<1x2x384xbf16> to vector<2x384xbf16>
      %124 = arith.extf %123 : vector<2x384xbf16> to vector<2x384xf32>
      %125 = arith.truncf %120 : vector<2x128xf32> to vector<2x128xbf16>
      %c0_44 = arith.constant 0 : index
      %c0_45 = arith.constant 0 : index
      %c0_46 = arith.constant 0 : index
      %126 = vector.load %arg3[%c0_44, %c0_45, %c0_46] : memref<1x128x384xbf16, #tpu.memory_space<vmem>>, vector<1x128x384xbf16>
      %127 = vector.shape_cast %126 : vector<1x128x384xbf16> to vector<128x384xbf16>
      %cst_47 = arith.constant dense<0.000000e+00> : vector<2x384xf32>
      %128 = tpu.matmul %125, %127, %cst_47 {dimension_numbers = #tpu.dot_dimension_numbers<[1], [0], [0], [1], [0, 0, 1, 1], [], []>} : vector<2x128xbf16>, vector<128x384xbf16>, vector<2x384xf32> -> vector<2x384xf32>
      %129 = vector.extract_strided_slice %124 {offsets = [0, 0], sizes = [2, 128], strides = [1, 1]} : vector<2x384xf32> to vector<2x128xf32>
      %130 = vector.extract_strided_slice %128 {offsets = [0, 0], sizes = [2, 128], strides = [1, 1]} : vector<2x384xf32> to vector<2x128xf32>
      %131 = arith.addf %129, %130 : vector<2x128xf32>
      %132 = arith.negf %131 : vector<2x128xf32>
      %133 = math.exp %132 : vector<2x128xf32>
      %cst_48 = arith.constant 1.000000e+00 : f32
      %134 = vector.broadcast %cst_48 : f32 to vector<2x128xf32>
      %135 = arith.addf %134, %133 : vector<2x128xf32>
      %136 = arith.divf %134, %135 : vector<2x128xf32>
      %137 = vector.extract_strided_slice %124 {offsets = [0, 128], sizes = [2, 128], strides = [1, 1]} : vector<2x384xf32> to vector<2x128xf32>
      %138 = vector.extract_strided_slice %128 {offsets = [0, 128], sizes = [2, 128], strides = [1, 1]} : vector<2x384xf32> to vector<2x128xf32>
      %139 = arith.addf %137, %138 : vector<2x128xf32>
      %140 = arith.negf %139 : vector<2x128xf32>
      %141 = math.exp %140 : vector<2x128xf32>
      %cst_49 = arith.constant 1.000000e+00 : f32
      %142 = vector.broadcast %cst_49 : f32 to vector<2x128xf32>
      %143 = arith.addf %142, %141 : vector<2x128xf32>
      %144 = arith.divf %142, %143 : vector<2x128xf32>
      %145 = vector.extract_strided_slice %124 {offsets = [0, 256], sizes = [2, 128], strides = [1, 1]} : vector<2x384xf32> to vector<2x128xf32>
      %146 = vector.extract_strided_slice %128 {offsets = [0, 256], sizes = [2, 128], strides = [1, 1]} : vector<2x384xf32> to vector<2x128xf32>
      %147 = arith.addf %146, %6 : vector<2x128xf32>
      %148 = arith.mulf %136, %147 : vector<2x128xf32>
      %149 = arith.addf %145, %148 : vector<2x128xf32>
      %150 = math.tanh %149 : vector<2x128xf32>
      %cst_50 = arith.constant 1.000000e+00 : f32
      %151 = vector.broadcast %cst_50 : f32 to vector<2x128xf32>
      %152 = arith.subf %151, %144 : vector<2x128xf32>
      %153 = arith.mulf %152, %150 : vector<2x128xf32>
      %154 = arith.mulf %144, %120 : vector<2x128xf32>
      %155 = arith.addf %153, %154 : vector<2x128xf32>
      %c8_51 = arith.constant 8 : index
      %c0_52 = arith.constant 0 : index
      %156 = vector.load %arg5[%c8_51, %c0_52] : memref<16x128xf32, #tpu.memory_space<vmem>>, vector<2x128xf32>
      tpu.vector_store %arg5[%c8_51, %c0_52], %155 {strides = array<i32>} : memref<16x128xf32, #tpu.memory_space<vmem>>, vector<2x128xf32>,
      %c0_53 = arith.constant 0 : index
      %c6 = arith.constant 6 : index
      %c0_54 = arith.constant 0 : index
      %157 = vector.load %arg2[%c0_53, %c6, %c0_54] : memref<1x16x384xbf16, #tpu.memory_space<vmem>>, vector<1x2x384xbf16>
      %158 = vector.shape_cast %157 : vector<1x2x384xbf16> to vector<2x384xbf16>
      %159 = arith.extf %158 : vector<2x384xbf16> to vector<2x384xf32>
      %160 = arith.truncf %155 : vector<2x128xf32> to vector<2x128xbf16>
      %c0_55 = arith.constant 0 : index
      %c0_56 = arith.constant 0 : index
      %c0_57 = arith.constant 0 : index
      %161 = vector.load %arg3[%c0_55, %c0_56, %c0_57] : memref<1x128x384xbf16, #tpu.memory_space<vmem>>, vector<1x128x384xbf16>
      %162 = vector.shape_cast %161 : vector<1x128x384xbf16> to vector<128x384xbf16>
      %cst_58 = arith.constant dense<0.000000e+00> : vector<2x384xf32>
      %163 = tpu.matmul %160, %162, %cst_58 {dimension_numbers = #tpu.dot_dimension_numbers<[1], [0], [0], [1], [0, 0, 1, 1], [], []>} : vector<2x128xbf16>, vector<128x384xbf16>, vector<2x384xf32> -> vector<2x384xf32>
      %164 = vector.extract_strided_slice %159 {offsets = [0, 0], sizes = [2, 128], strides = [1, 1]} : vector<2x384xf32> to vector<2x128xf32>
      %165 = vector.extract_strided_slice %163 {offsets = [0, 0], sizes = [2, 128], strides = [1, 1]} : vector<2x384xf32> to vector<2x128xf32>
      %166 = arith.addf %164, %165 : vector<2x128xf32>
      %167 = arith.negf %166 : vector<2x128xf32>
      %168 = math.exp %167 : vector<2x128xf32>
      %cst_59 = arith.constant 1.000000e+00 : f32
      %169 = vector.broadcast %cst_59 : f32 to vector<2x128xf32>
      %170 = arith.addf %169, %168 : vector<2x128xf32>
      %171 = arith.divf %169, %170 : vector<2x128xf32>
      %172 = vector.extract_strided_slice %159 {offsets = [0, 128], sizes = [2, 128], strides = [1, 1]} : vector<2x384xf32> to vector<2x128xf32>
      %173 = vector.extract_strided_slice %163 {offsets = [0, 128], sizes = [2, 128], strides = [1, 1]} : vector<2x384xf32> to vector<2x128xf32>
      %174 = arith.addf %172, %173 : vector<2x128xf32>
      %175 = arith.negf %174 : vector<2x128xf32>
      %176 = math.exp %175 : vector<2x128xf32>
      %cst_60 = arith.constant 1.000000e+00 : f32
      %177 = vector.broadcast %cst_60 : f32 to vector<2x128xf32>
      %178 = arith.addf %177, %176 : vector<2x128xf32>
      %179 = arith.divf %177, %178 : vector<2x128xf32>
      %180 = vector.extract_strided_slice %159 {offsets = [0, 256], sizes = [2, 128], strides = [1, 1]} : vector<2x384xf32> to vector<2x128xf32>
      %181 = vector.extract_strided_slice %163 {offsets = [0, 256], sizes = [2, 128], strides = [1, 1]} : vector<2x384xf32> to vector<2x128xf32>
      %182 = arith.addf %181, %6 : vector<2x128xf32>
      %183 = arith.mulf %171, %182 : vector<2x128xf32>
      %184 = arith.addf %180, %183 : vector<2x128xf32>
      %185 = math.tanh %184 : vector<2x128xf32>
      %cst_61 = arith.constant 1.000000e+00 : f32
      %186 = vector.broadcast %cst_61 : f32 to vector<2x128xf32>
      %187 = arith.subf %186, %179 : vector<2x128xf32>
      %188 = arith.mulf %187, %185 : vector<2x128xf32>
      %189 = arith.mulf %179, %155 : vector<2x128xf32>
      %190 = arith.addf %188, %189 : vector<2x128xf32>
      %c6_62 = arith.constant 6 : index
      %c0_63 = arith.constant 0 : index
      %191 = vector.load %arg5[%c6_62, %c0_63] : memref<16x128xf32, #tpu.memory_space<vmem>>, vector<2x128xf32>
      tpu.vector_store %arg5[%c6_62, %c0_63], %190 {strides = array<i32>} : memref<16x128xf32, #tpu.memory_space<vmem>>, vector<2x128xf32>,
      %c0_64 = arith.constant 0 : index
      %c4 = arith.constant 4 : index
      %c0_65 = arith.constant 0 : index
      %192 = vector.load %arg2[%c0_64, %c4, %c0_65] : memref<1x16x384xbf16, #tpu.memory_space<vmem>>, vector<1x2x384xbf16>
      %193 = vector.shape_cast %192 : vector<1x2x384xbf16> to vector<2x384xbf16>
      %194 = arith.extf %193 : vector<2x384xbf16> to vector<2x384xf32>
      %195 = arith.truncf %190 : vector<2x128xf32> to vector<2x128xbf16>
      %c0_66 = arith.constant 0 : index
      %c0_67 = arith.constant 0 : index
      %c0_68 = arith.constant 0 : index
      %196 = vector.load %arg3[%c0_66, %c0_67, %c0_68] : memref<1x128x384xbf16, #tpu.memory_space<vmem>>, vector<1x128x384xbf16>
      %197 = vector.shape_cast %196 : vector<1x128x384xbf16> to vector<128x384xbf16>
      %cst_69 = arith.constant dense<0.000000e+00> : vector<2x384xf32>
      %198 = tpu.matmul %195, %197, %cst_69 {dimension_numbers = #tpu.dot_dimension_numbers<[1], [0], [0], [1], [0, 0, 1, 1], [], []>} : vector<2x128xbf16>, vector<128x384xbf16>, vector<2x384xf32> -> vector<2x384xf32>
      %199 = vector.extract_strided_slice %194 {offsets = [0, 0], sizes = [2, 128], strides = [1, 1]} : vector<2x384xf32> to vector<2x128xf32>
      %200 = vector.extract_strided_slice %198 {offsets = [0, 0], sizes = [2, 128], strides = [1, 1]} : vector<2x384xf32> to vector<2x128xf32>
      %201 = arith.addf %199, %200 : vector<2x128xf32>
      %202 = arith.negf %201 : vector<2x128xf32>
      %203 = math.exp %202 : vector<2x128xf32>
      %cst_70 = arith.constant 1.000000e+00 : f32
      %204 = vector.broadcast %cst_70 : f32 to vector<2x128xf32>
      %205 = arith.addf %204, %203 : vector<2x128xf32>
      %206 = arith.divf %204, %205 : vector<2x128xf32>
      %207 = vector.extract_strided_slice %194 {offsets = [0, 128], sizes = [2, 128], strides = [1, 1]} : vector<2x384xf32> to vector<2x128xf32>
      %208 = vector.extract_strided_slice %198 {offsets = [0, 128], sizes = [2, 128], strides = [1, 1]} : vector<2x384xf32> to vector<2x128xf32>
      %209 = arith.addf %207, %208 : vector<2x128xf32>
      %210 = arith.negf %209 : vector<2x128xf32>
      %211 = math.exp %210 : vector<2x128xf32>
      %cst_71 = arith.constant 1.000000e+00 : f32
      %212 = vector.broadcast %cst_71 : f32 to vector<2x128xf32>
      %213 = arith.addf %212, %211 : vector<2x128xf32>
      %214 = arith.divf %212, %213 : vector<2x128xf32>
      %215 = vector.extract_strided_slice %194 {offsets = [0, 256], sizes = [2, 128], strides = [1, 1]} : vector<2x384xf32> to vector<2x128xf32>
      %216 = vector.extract_strided_slice %198 {offsets = [0, 256], sizes = [2, 128], strides = [1, 1]} : vector<2x384xf32> to vector<2x128xf32>
      %217 = arith.addf %216, %6 : vector<2x128xf32>
      %218 = arith.mulf %206, %217 : vector<2x128xf32>
      %219 = arith.addf %215, %218 : vector<2x128xf32>
      %220 = math.tanh %219 : vector<2x128xf32>
      %cst_72 = arith.constant 1.000000e+00 : f32
      %221 = vector.broadcast %cst_72 : f32 to vector<2x128xf32>
      %222 = arith.subf %221, %214 : vector<2x128xf32>
      %223 = arith.mulf %222, %220 : vector<2x128xf32>
      %224 = arith.mulf %214, %190 : vector<2x128xf32>
      %225 = arith.addf %223, %224 : vector<2x128xf32>
      %c4_73 = arith.constant 4 : index
      %c0_74 = arith.constant 0 : index
      %226 = vector.load %arg5[%c4_73, %c0_74] : memref<16x128xf32, #tpu.memory_space<vmem>>, vector<2x128xf32>
      tpu.vector_store %arg5[%c4_73, %c0_74], %225 {strides = array<i32>} : memref<16x128xf32, #tpu.memory_space<vmem>>, vector<2x128xf32>,
      %c0_75 = arith.constant 0 : index
      %c2 = arith.constant 2 : index
      %c0_76 = arith.constant 0 : index
      %227 = vector.load %arg2[%c0_75, %c2, %c0_76] : memref<1x16x384xbf16, #tpu.memory_space<vmem>>, vector<1x2x384xbf16>
      %228 = vector.shape_cast %227 : vector<1x2x384xbf16> to vector<2x384xbf16>
      %229 = arith.extf %228 : vector<2x384xbf16> to vector<2x384xf32>
      %230 = arith.truncf %225 : vector<2x128xf32> to vector<2x128xbf16>
      %c0_77 = arith.constant 0 : index
      %c0_78 = arith.constant 0 : index
      %c0_79 = arith.constant 0 : index
      %231 = vector.load %arg3[%c0_77, %c0_78, %c0_79] : memref<1x128x384xbf16, #tpu.memory_space<vmem>>, vector<1x128x384xbf16>
      %232 = vector.shape_cast %231 : vector<1x128x384xbf16> to vector<128x384xbf16>
      %cst_80 = arith.constant dense<0.000000e+00> : vector<2x384xf32>
      %233 = tpu.matmul %230, %232, %cst_80 {dimension_numbers = #tpu.dot_dimension_numbers<[1], [0], [0], [1], [0, 0, 1, 1], [], []>} : vector<2x128xbf16>, vector<128x384xbf16>, vector<2x384xf32> -> vector<2x384xf32>
      %234 = vector.extract_strided_slice %229 {offsets = [0, 0], sizes = [2, 128], strides = [1, 1]} : vector<2x384xf32> to vector<2x128xf32>
      %235 = vector.extract_strided_slice %233 {offsets = [0, 0], sizes = [2, 128], strides = [1, 1]} : vector<2x384xf32> to vector<2x128xf32>
      %236 = arith.addf %234, %235 : vector<2x128xf32>
      %237 = arith.negf %236 : vector<2x128xf32>
      %238 = math.exp %237 : vector<2x128xf32>
      %cst_81 = arith.constant 1.000000e+00 : f32
      %239 = vector.broadcast %cst_81 : f32 to vector<2x128xf32>
      %240 = arith.addf %239, %238 : vector<2x128xf32>
      %241 = arith.divf %239, %240 : vector<2x128xf32>
      %242 = vector.extract_strided_slice %229 {offsets = [0, 128], sizes = [2, 128], strides = [1, 1]} : vector<2x384xf32> to vector<2x128xf32>
      %243 = vector.extract_strided_slice %233 {offsets = [0, 128], sizes = [2, 128], strides = [1, 1]} : vector<2x384xf32> to vector<2x128xf32>
      %244 = arith.addf %242, %243 : vector<2x128xf32>
      %245 = arith.negf %244 : vector<2x128xf32>
      %246 = math.exp %245 : vector<2x128xf32>
      %cst_82 = arith.constant 1.000000e+00 : f32
      %247 = vector.broadcast %cst_82 : f32 to vector<2x128xf32>
      %248 = arith.addf %247, %246 : vector<2x128xf32>
      %249 = arith.divf %247, %248 : vector<2x128xf32>
      %250 = vector.extract_strided_slice %229 {offsets = [0, 256], sizes = [2, 128], strides = [1, 1]} : vector<2x384xf32> to vector<2x128xf32>
      %251 = vector.extract_strided_slice %233 {offsets = [0, 256], sizes = [2, 128], strides = [1, 1]} : vector<2x384xf32> to vector<2x128xf32>
      %252 = arith.addf %251, %6 : vector<2x128xf32>
      %253 = arith.mulf %241, %252 : vector<2x128xf32>
      %254 = arith.addf %250, %253 : vector<2x128xf32>
      %255 = math.tanh %254 : vector<2x128xf32>
      %cst_83 = arith.constant 1.000000e+00 : f32
      %256 = vector.broadcast %cst_83 : f32 to vector<2x128xf32>
      %257 = arith.subf %256, %249 : vector<2x128xf32>
      %258 = arith.mulf %257, %255 : vector<2x128xf32>
      %259 = arith.mulf %249, %225 : vector<2x128xf32>
      %260 = arith.addf %258, %259 : vector<2x128xf32>
      %c2_84 = arith.constant 2 : index
      %c0_85 = arith.constant 0 : index
      %261 = vector.load %arg5[%c2_84, %c0_85] : memref<16x128xf32, #tpu.memory_space<vmem>>, vector<2x128xf32>
      tpu.vector_store %arg5[%c2_84, %c0_85], %260 {strides = array<i32>} : memref<16x128xf32, #tpu.memory_space<vmem>>, vector<2x128xf32>,
      %c0_86 = arith.constant 0 : index
      %c0_87 = arith.constant 0 : index
      %c0_88 = arith.constant 0 : index
      %262 = vector.load %arg2[%c0_86, %c0_87, %c0_88] : memref<1x16x384xbf16, #tpu.memory_space<vmem>>, vector<1x2x384xbf16>
      %263 = vector.shape_cast %262 : vector<1x2x384xbf16> to vector<2x384xbf16>
      %264 = arith.extf %263 : vector<2x384xbf16> to vector<2x384xf32>
      %265 = arith.truncf %260 : vector<2x128xf32> to vector<2x128xbf16>
      %c0_89 = arith.constant 0 : index
      %c0_90 = arith.constant 0 : index
      %c0_91 = arith.constant 0 : index
      %266 = vector.load %arg3[%c0_89, %c0_90, %c0_91] : memref<1x128x384xbf16, #tpu.memory_space<vmem>>, vector<1x128x384xbf16>
      %267 = vector.shape_cast %266 : vector<1x128x384xbf16> to vector<128x384xbf16>
      %cst_92 = arith.constant dense<0.000000e+00> : vector<2x384xf32>
      %268 = tpu.matmul %265, %267, %cst_92 {dimension_numbers = #tpu.dot_dimension_numbers<[1], [0], [0], [1], [0, 0, 1, 1], [], []>} : vector<2x128xbf16>, vector<128x384xbf16>, vector<2x384xf32> -> vector<2x384xf32>
      %269 = vector.extract_strided_slice %264 {offsets = [0, 0], sizes = [2, 128], strides = [1, 1]} : vector<2x384xf32> to vector<2x128xf32>
      %270 = vector.extract_strided_slice %268 {offsets = [0, 0], sizes = [2, 128], strides = [1, 1]} : vector<2x384xf32> to vector<2x128xf32>
      %271 = arith.addf %269, %270 : vector<2x128xf32>
      %272 = arith.negf %271 : vector<2x128xf32>
      %273 = math.exp %272 : vector<2x128xf32>
      %cst_93 = arith.constant 1.000000e+00 : f32
      %274 = vector.broadcast %cst_93 : f32 to vector<2x128xf32>
      %275 = arith.addf %274, %273 : vector<2x128xf32>
      %276 = arith.divf %274, %275 : vector<2x128xf32>
      %277 = vector.extract_strided_slice %264 {offsets = [0, 128], sizes = [2, 128], strides = [1, 1]} : vector<2x384xf32> to vector<2x128xf32>
      %278 = vector.extract_strided_slice %268 {offsets = [0, 128], sizes = [2, 128], strides = [1, 1]} : vector<2x384xf32> to vector<2x128xf32>
      %279 = arith.addf %277, %278 : vector<2x128xf32>
      %280 = arith.negf %279 : vector<2x128xf32>
      %281 = math.exp %280 : vector<2x128xf32>
      %cst_94 = arith.constant 1.000000e+00 : f32
      %282 = vector.broadcast %cst_94 : f32 to vector<2x128xf32>
      %283 = arith.addf %282, %281 : vector<2x128xf32>
      %284 = arith.divf %282, %283 : vector<2x128xf32>
      %285 = vector.extract_strided_slice %264 {offsets = [0, 256], sizes = [2, 128], strides = [1, 1]} : vector<2x384xf32> to vector<2x128xf32>
      %286 = vector.extract_strided_slice %268 {offsets = [0, 256], sizes = [2, 128], strides = [1, 1]} : vector<2x384xf32> to vector<2x128xf32>
      %287 = arith.addf %286, %6 : vector<2x128xf32>
      %288 = arith.mulf %276, %287 : vector<2x128xf32>
      %289 = arith.addf %285, %288 : vector<2x128xf32>
      %290 = math.tanh %289 : vector<2x128xf32>
      %cst_95 = arith.constant 1.000000e+00 : f32
      %291 = vector.broadcast %cst_95 : f32 to vector<2x128xf32>
      %292 = arith.subf %291, %284 : vector<2x128xf32>
      %293 = arith.mulf %292, %290 : vector<2x128xf32>
      %294 = arith.mulf %284, %260 : vector<2x128xf32>
      %295 = arith.addf %293, %294 : vector<2x128xf32>
      %c0_96 = arith.constant 0 : index
      %c0_97 = arith.constant 0 : index
      %296 = vector.load %arg5[%c0_96, %c0_97] : memref<16x128xf32, #tpu.memory_space<vmem>>, vector<2x128xf32>
      tpu.vector_store %arg5[%c0_96, %c0_97], %295 {strides = array<i32>} : memref<16x128xf32, #tpu.memory_space<vmem>>, vector<2x128xf32>,
      %c0_98 = arith.constant 0 : index
      %c0_99 = arith.constant 0 : index
      %297 = vector.load %arg7[%c0_98, %c0_99] : memref<2x128xf32, #tpu.memory_space<vmem>>, vector<2x128xf32>
      tpu.vector_store %arg7[%c0_98, %c0_99], %295 {strides = array<i32>} : memref<2x128xf32, #tpu.memory_space<vmem>>, vector<2x128xf32>,
    } else {
    }
    %c0_i32_6 = arith.constant 0 : i32
    %13 = arith.cmpi eq, %arg1, %c0_i32_6 : i32
    %14 = arith.extui %13 : i1 to i32
    %c0_i32_7 = arith.constant 0 : i32
    %15 = arith.cmpi ne, %14, %c0_i32_7 : i32
    scf.if %15 {
      %c0_8 = arith.constant 0 : index
      %c0_9 = arith.constant 0 : index
      %16 = vector.load %arg7[%c0_8, %c0_9] : memref<2x128xf32, #tpu.memory_space<vmem>>, vector<2x128xf32>
      %c0_10 = arith.constant 0 : index
      %c0_11 = arith.constant 0 : index
      %c0_12 = arith.constant 0 : index
      %17 = vector.load %arg6[%c0_10, %c0_11, %c0_12] : memref<1x2x128xf32, #tpu.memory_space<vmem>>, vector<1x2x128xf32>
      %18 = vector.shape_cast %17 : vector<1x2x128xf32> to vector<2x128xf32>
      %19 = vector.shape_cast %16 : vector<2x128xf32> to vector<1x2x128xf32>
      tpu.vector_store %arg6[%c0_10, %c0_11, %c0_12], %19 {strides = array<i32>} : memref<1x2x128xf32, #tpu.memory_space<vmem>>, vector<1x2x128xf32>,
    } else {
    }
    return
  }
  func.func @transform_0(%arg0: i32, %arg1: i32) -> (i32, i32, i32) {
    %c2_i32 = arith.constant 2 : i32
    %0 = arith.muli %c2_i32, %arg1 : i32
    %c0_i32 = arith.constant 0 : i32
    %1 = arith.subi %c0_i32, %0 : i32
    %2 = arith.muli %arg0, %1 : i32
    %3 = arith.addi %arg1, %2 : i32
    %c0_i32_0 = arith.constant 0 : i32
    %c0_i32_1 = arith.constant 0 : i32
    return %arg0, %3, %c0_i32_0 : i32, i32, i32
  }
  func.func @transform_1(%arg0: i32, %arg1: i32) -> (i32, i32, i32) {
    %c0_i32 = arith.constant 0 : i32
    %c0_i32_0 = arith.constant 0 : i32
    %c0_i32_1 = arith.constant 0 : i32
    return %arg0, %c0_i32, %c0_i32_0 : i32, i32, i32
  }
  func.func @transform_2(%arg0: i32, %arg1: i32) -> (i32, i32, i32) {
    %c0_i32 = arith.constant 0 : i32
    %c0_i32_0 = arith.constant 0 : i32
    %c0_i32_1 = arith.constant 0 : i32
    return %arg0, %c0_i32, %c0_i32_0 : i32, i32, i32
  }
  func.func @transform_3(%arg0: i32, %arg1: i32) -> (i32, i32) {
    %c2_i32 = arith.constant 2 : i32
    %0 = arith.muli %c2_i32, %arg1 : i32
    %c0_i32 = arith.constant 0 : i32
    %1 = arith.subi %c0_i32, %0 : i32
    %2 = arith.muli %arg0, %1 : i32
    %3 = arith.addi %arg1, %2 : i32
    %c0_i32_0 = arith.constant 0 : i32
    return %3, %arg0 : i32, i32
  }
  func.func @transform_4(%arg0: i32, %arg1: i32) -> (i32, i32, i32) {
    %c0_i32 = arith.constant 0 : i32
    %c0_i32_0 = arith.constant 0 : i32
    %c0_i32_1 = arith.constant 0 : i32
    return %arg0, %c0_i32, %c0_i32_0 : i32, i32, i32
  }
}

</mosaic_0001>

<llo_original>
// kernel: tpu_custom_call.1
$region0: #{tpu_custom_call.1}
  #allocation0 [shape = 'u32[]', space=smem, size = 0x4, offset = 0x4, fixed_abs, tag = 'smem constant byte address 0x4 - core index']
  #allocation1 [shape = 'u32[72,128]{1,0:T(1,128)}', space=vmem, size = 0x9000, scoped, tag = 'internal scratch']
  #allocation2 [shape = 'f32[2,128]{1,0:T(2,128)}', space=vmem, size = 0x400, scoped, tag = 'scratch operand']
  %s0 = inlined_call_operand.hbm [shape: bf16[2,16,384], index: 0, kind: input, shape index: {}]
  %s1 = inlined_call_operand.hbm [shape: bf16[2,128,384], index: 1, kind: input, shape index: {}]
  %s2 = inlined_call_operand.hbm [shape: f32[2,1,128], index: 2, kind: input, shape index: {}]
  %s3 = inlined_call_operand.hbm [shape: f32[16,256], index: 3, kind: output, shape index: {0}]
  %s4 = inlined_call_operand.hbm [shape: f32[2,2,128], index: 4, kind: output, shape index: {1}]
  %5 = xla_tuple %s3, %s4
  %s6 = sld [smem:[#allocation0]]
  $region81: #{tpu_custom_call.1} parent=0
    _
  %s8 = ssub.s32 1, %s6
  %s9 = scalar_select 0, %s8, %s6
  $region1: #{tpu_custom_call.1} parent=0
    #allocation3 [shape = 'u8[24576]{0}', space=vmem, size = 0x6000, scoped, tag = 'input window, operand 0']
    #allocation4 [shape = 's32[2]{0}', space=sflag, size = 0x8, scoped, tag = 'scoped memory for tpu_custom_call.1']
    #allocation5 [shape = 's32[2]{0}', space=sflag, size = 0x8, scoped, tag = 'scoped memory for tpu_custom_call.1']
    #allocation6 [shape = 'u8[196608]{0}', space=vmem, size = 0x30000, scoped, tag = 'input window, operand 1']
    #allocation7 [shape = 's32[2]{0}', space=sflag, size = 0x8, scoped, tag = 'scoped memory for tpu_custom_call.1']
    #allocation8 [shape = 'u8[1024]{0}', space=vmem, size = 0x400, scoped, tag = 'input window, operand 2']
    #allocation9 [shape = 'u8[16384]{0}', space=vmem, size = 0x4000, scoped, tag = 'output window, operand 0']
    #allocation10 [shape = 'u8[2048]{0}', space=vmem, size = 0x800, scoped, tag = 'output window, operand 1']
    #allocation11 [shape = 's32[2]{0}', space=sflag, size = 0x8, scoped, tag = 'scoped memory for tpu_custom_call.1']
    %10 = vsyncpa [#allocation4], 0
    %s11 = scalar_lea.sflag [#allocation4], 1
    %12 = vsyncpa %s11, 0
    %13 = vsyncpa [#allocation7], 0
    %s14 = scalar_lea.sflag [#allocation7], 1
    %15 = vsyncpa %s14, 0
    %16 = vsyncpa [#allocation5], 0
    %s17 = scalar_lea.sflag [#allocation5], 1
    %18 = vsyncpa %s17, 0
    %19 = vsyncpa [#allocation11], 0
    %s20 = scalar_lea.sflag [#allocation11], 1
    %21 = vsyncpa %s20, 0
    loop: start=0, step=1, limit=4
    $region2: #{tpu_custom_call.1} parent=1 // loop_pre_header
      _
    $region3: #{tpu_custom_call.1} parent=1 // loop_header
      %s23 = sphi 0, %s27
      %p24 = scmp.ge.s32.totalorder %s23, 4
      %s30 = sphi 0, %s42
      %s31 = sphi 0, %s38
      %s32 = sphi 0, %s30
      %s33 = sphi 0, %s31
      %s34 = sphi 0, %s32
      %s35 = sphi 0, %s33
      %s55 = sphi 0, %s57
      %s58 = sphi 0, %s55
      %s59 = sphi 0, %s58
      %s75 = sphi 0, %s59
      %s81 = sphi 0, %s83
      %s84 = sphi 0, %s81
      %s85 = sphi 0, %s84
      %s101 = sphi 0, %s85
      %s107 = sphi 0, %s109
      %s110 = sphi 0, %s107
      %s111 = sphi 0, %s110
      %s127 = sphi 0, %s111
      %s143 = sphi 0, %s145
      %s146 = sphi 0, %s143
      %s147 = sphi 0, %s146
      %s163 = sphi 0, %s147
      %s169 = sphi 0, %s171
      %s172 = sphi 0, %s169
      %s173 = sphi 0, %s172
      %s189 = sphi 0, %s173
    $region4: #{tpu_custom_call.1} parent=1 // loop_header_branch
      %26 = sbr.rel (%p24) target = $region8
    $region5: #{tpu_custom_call.1} parent=1 // loop_body
      %s28 = ssub.s32 %s23, 1
      %s29 = ssub.s32 %s23, 2
      %s36 = sadd.s32 1, %s31
      %p37 = scmp.ge.s32.totalorder %s36, 1
      %s38 = scalar_select %p37, 0, %s36
      %s39 = sadd.s32 1, %s30
      %s40 = scalar_select %p37, %s39, %s30
      %p41 = scmp.ge.s32.totalorder %s40, 2
      %s42 = scalar_select %p41, 0, %s40
      %s43 = smul.u32 %s31, 2
      %s44 = ssub.s32 0, %s43
      %s45 = smul.u32 %s30, %s44
      %s46 = sadd.s32 %s31, %s45
      %s47 = smul.u32 %s38, 2
      %s48 = ssub.s32 0, %s47
      %s49 = smul.u32 %s42, %s48
      %s50 = sadd.s32 %s38, %s49
      %s51 = ssub.s32 %s30, %s42
      %s52 = ssub.s32 %s46, %s50
      %s53 = sor.u32 %s51, %s52
      %p54 = scmp.eq.s32.totalorder %s53, 0
      %s56 = sadd.s32 %s55, 1
      %s57 = scalar_select %p54, %s55, %s56
      %p60 = pneg %p54
      %p61 = scmp.eq.s32.totalorder %s23, 1
      %p62 = por %p60, %p61
      %p63 = scmp.ne.s32.totalorder %s55, %s58
      %p64 = scmp.eq.s32.totalorder %s23, 0
      %p65 = por %p63, %p64
      %p66 = scmp.ne.s32.totalorder %s55, %s58
      %p67 = scmp.eq.s32.totalorder %s28, 1
      %p68 = por %p66, %p67
      %p69 = scmp.ne.s32.totalorder %s58, %s59
      %p70 = scmp.eq.s32.totalorder %s28, 0
      %p71 = por %p69, %p70
      %p72 = scmp.ne.s32.totalorder %s58, %s59
      %p73 = scmp.eq.s32.totalorder %s29, 1
      %p74 = por %p72, %p73
      %p76 = scmp.ne.s32.totalorder %s59, %s75
      %p77 = scmp.eq.s32.totalorder %s29, 0
      %p78 = por %p76, %p77
      %s79 = ssub.s32 %s30, %s42
      %p80 = scmp.eq.s32.totalorder %s79, 0
      %s82 = sadd.s32 %s81, 1
      %s83 = scalar_select %p80, %s81, %s82
      %p86 = pneg %p80
      %p87 = scmp.eq.s32.totalorder %s23, 1
      %p88 = por %p86, %p87
      %p89 = scmp.ne.s32.totalorder %s81, %s84
      %p90 = scmp.eq.s32.totalorder %s23, 0
      %p91 = por %p89, %p90
      %p92 = scmp.ne.s32.totalorder %s81, %s84
      %p93 = scmp.eq.s32.totalorder %s28, 1
      %p94 = por %p92, %p93
      %p95 = scmp.ne.s32.totalorder %s84, %s85
      %p96 = scmp.eq.s32.totalorder %s28, 0
      %p97 = por %p95, %p96
      %p98 = scmp.ne.s32.totalorder %s84, %s85
      %p99 = scmp.eq.s32.totalorder %s29, 1
      %p100 = por %p98, %p99
      %p102 = scmp.ne.s32.totalorder %s85, %s101
      %p103 = scmp.eq.s32.totalorder %s29, 0
      %p104 = por %p102, %p103
      %s105 = ssub.s32 %s30, %s42
      %p106 = scmp.eq.s32.totalorder %s105, 0
      %s108 = sadd.s32 %s107, 1
      %s109 = scalar_select %p106, %s107, %s108
      %p112 = pneg %p106
      %p113 = scmp.eq.s32.totalorder %s23, 1
      %p114 = por %p112, %p113
      %p115 = scmp.ne.s32.totalorder %s107, %s110
      %p116 = scmp.eq.s32.totalorder %s23, 0
      %p117 = por %p115, %p116
      %p118 = scmp.ne.s32.totalorder %s107, %s110
      %p119 = scmp.eq.s32.totalorder %s28, 1
      %p120 = por %p118, %p119
      %p121 = scmp.ne.s32.totalorder %s110, %s111
      %p122 = scmp.eq.s32.totalorder %s28, 0
      %p123 = por %p121, %p122
      %p124 = scmp.ne.s32.totalorder %s110, %s111
      %p125 = scmp.eq.s32.totalorder %s29, 1
      %p126 = por %p124, %p125
      %p128 = scmp.ne.s32.totalorder %s111, %s127
      %p129 = scmp.eq.s32.totalorder %s29, 0
      %p130 = por %p128, %p129
      %s131 = smul.u32 %s31, 2
      %s132 = ssub.s32 0, %s131
      %s133 = smul.u32 %s30, %s132
      %s134 = sadd.s32 %s31, %s133
      %s135 = smul.u32 %s38, 2
      %s136 = ssub.s32 0, %s135
      %s137 = smul.u32 %s42, %s136
      %s138 = sadd.s32 %s38, %s137
      %s139 = ssub.s32 %s134, %s138
      %s140 = ssub.s32 %s30, %s42
      %s141 = sor.u32 %s139, %s140
      %p142 = scmp.eq.s32.totalorder %s141, 0
      %s144 = sadd.s32 %s143, 1
      %s145 = scalar_select %p142, %s143, %s144
      %p148 = pneg %p142
      %p149 = scmp.eq.s32.totalorder %s23, 1
      %p150 = por %p148, %p149
      %p151 = scmp.ne.s32.totalorder %s143, %s146
      %p152 = scmp.eq.s32.totalorder %s23, 0
      %p153 = por %p151, %p152
      %p154 = scmp.ne.s32.totalorder %s143, %s146
      %p155 = scmp.eq.s32.totalorder %s28, 1
      %p156 = por %p154, %p155
      %p157 = scmp.ne.s32.totalorder %s146, %s147
      %p158 = scmp.eq.s32.totalorder %s28, 0
      %p159 = por %p157, %p158
      %p160 = scmp.ne.s32.totalorder %s146, %s147
      %p161 = scmp.eq.s32.totalorder %s29, 1
      %p162 = por %p160, %p161
      %p164 = scmp.ne.s32.totalorder %s147, %s163
      %p165 = scmp.eq.s32.totalorder %s29, 0
      %p166 = por %p164, %p165
      %s167 = ssub.s32 %s30, %s42
      %p168 = scmp.eq.s32.totalorder %s167, 0
      %s170 = sadd.s32 %s169, 1
      %s171 = scalar_select %p168, %s169, %s170
      %p174 = pneg %p168
      %p175 = scmp.eq.s32.totalorder %s23, 1
      %p176 = por %p174, %p175
      %p177 = scmp.ne.s32.totalorder %s169, %s172
      %p178 = scmp.eq.s32.totalorder %s23, 0
      %p179 = por %p177, %p178
      %p180 = scmp.ne.s32.totalorder %s169, %s172
      %p181 = scmp.eq.s32.totalorder %s28, 1
      %p182 = por %p180, %p181
      %p183 = scmp.ne.s32.totalorder %s172, %s173
      %p184 = scmp.eq.s32.totalorder %s28, 0
      %p185 = por %p183, %p184
      %p186 = scmp.ne.s32.totalorder %s172, %s173
      %p187 = scmp.eq.s32.totalorder %s29, 1
      %p188 = por %p186, %p187
      %p190 = scmp.ne.s32.totalorder %s173, %s189
      %p191 = scmp.eq.s32.totalorder %s29, 0
      %p192 = por %p190, %p191
      %p193 = scmp.le.s32.totalorder 1, %s23
      %p194 = scmp.lt.s32.totalorder %s23, 3
      %p195 = pnand %p193, %p194
      %p196 = pneg %p195
      // Predicated region
      $region9: #{tpu_custom_call.1} parent=5 // pred_check
        _
      $region10: #{tpu_custom_call.1} parent=5 // pred_check_branch
        %198 = sbr.rel (%p195) target = $region12
      $region11: #{tpu_custom_call.1} parent=5 // pred_region
        %s199 = ssub.s32 %s23, 1
      $region12: #{tpu_custom_call.1} parent=5 // pred_fallthru
        _
      %p200 = scmp.lt.s32.totalorder %s23, 2
      // Predicated region
      $region13: #{tpu_custom_call.1} parent=5 // pred_check
        %p201 = pneg %p200
      $region14: #{tpu_custom_call.1} parent=5 // pred_check_branch
        %203 = sbr.rel (%p201) target = $region16
      $region15: #{tpu_custom_call.1} parent=5 // pred_region
        // Predicated region
        $region17: #{tpu_custom_call.1} parent=15 // pred_check
          %p204 = pneg %p65
        $region18: #{tpu_custom_call.1} parent=15 // pred_check_branch
          %206 = sbr.rel (%p204) target = $region20
        $region19: #{tpu_custom_call.1} parent=15 // pred_region
          %s207 = sand.u32 %s55, 1
          %s208 = scalar_lea.sflag [#allocation4], %s207
          %s209 = sand.u32 %s55, 1
          %s210 = smul.addr %s209, 24
          %s211 = scalar_lea.vmem [#allocation3], %s210
          %s212 = smul.u32 %s31, 2
          %s213 = ssub.s32 0, %s212
          %s214 = smul.u32 %s30, %s213
          %s215 = sadd.s32 %s31, %s214
          %s216 = smul.u32 2, %s215
          %218 = vsyncadd %s208, 0
          %s219 = smul.addr %s216, 3
          %s220 = smul.addr %s30, 6
          %s221 = sadd.s32 %s219, %s220
          %s222 = smul.addr %s221, 4
          %s223 = scalar_lea.hbm %s0, %s222
          %s224 = sshll.u32 %s223, 4
          %s225 = int_to_ptr.hbm [resolvable:$true] %s224
          %s226 = sshll.u32 %s211, 4
          %s227 = int_to_ptr.vmem [resolvable:$true] %s226
          %232 = dma.hbm_to_vmem [thread:$0]  %s225, 384, %s227, %s208, 192, 192, 12
        $region20: #{tpu_custom_call.1} parent=15 // pred_fallthru
          _
        // Predicated region
        $region21: #{tpu_custom_call.1} parent=15 // pred_check
          %p233 = pneg %p91
        $region22: #{tpu_custom_call.1} parent=15 // pred_check_branch
          %235 = sbr.rel (%p233) target = $region24
        $region23: #{tpu_custom_call.1} parent=15 // pred_region
          %s236 = sand.u32 %s23, 1
          %s237 = scalar_lea.sflag [#allocation7], %s236
          %s238 = sand.u32 %s81, 1
          %s239 = smul.addr %s238, 192
          %s240 = scalar_lea.vmem [#allocation6], %s239
          %242 = vsyncadd %s237, 0
          %s243 = smul.addr %s30, 48
          %s244 = smul.addr %s243, 4
          %s245 = scalar_lea.hbm %s1, %s244
          %s246 = sshll.u32 %s245, 4
          %s247 = int_to_ptr.hbm [resolvable:$true] %s246
          %s248 = sshll.u32 %s240, 4
          %s249 = int_to_ptr.vmem [resolvable:$true] %s248
          %254 = dma.hbm_to_vmem [thread:$0]  %s247, 3072, %s249, %s237, 192, 192, 12
        $region24: #{tpu_custom_call.1} parent=15 // pred_fallthru
          _
        // Predicated region
        $region25: #{tpu_custom_call.1} parent=15 // pred_check
          %p255 = pneg %p117
        $region26: #{tpu_custom_call.1} parent=15 // pred_check_branch
          %257 = sbr.rel (%p255) target = $region28
        $region27: #{tpu_custom_call.1} parent=15 // pred_region
          %s258 = sand.u32 %s23, 1
          %s259 = scalar_lea.sflag [#allocation7], %s258
          %s260 = sand.u32 %s107, 1
          %s261 = scalar_lea.vmem [#allocation8], %s260
          %263 = vsyncadd %s259, 0
          %s264 = scalar_lea.hbm %s2, %s30
          %s266 = sshll.u32 %s264, 4
          %s267 = int_to_ptr.hbm [resolvable:$true] %s266
          %s268 = sshll.u32 %s261, 4
          %s269 = int_to_ptr.vmem [resolvable:$true] %s268
          %271 = dma.hbm_to_vmem [thread:$0]  %s267, 16, %s269, %s259
        $region28: #{tpu_custom_call.1} parent=15 // pred_fallthru
          _
      $region16: #{tpu_custom_call.1} parent=5 // pred_fallthru
        _
      %p272 = scmp.le.s32.totalorder 1, %s23
      %p273 = scmp.lt.s32.totalorder %s23, 3
      %p274 = pnand %p272, %p273
      %p275 = pneg %p274
      // Predicated region
      $region29: #{tpu_custom_call.1} parent=5 // pred_check
        _
      $region30: #{tpu_custom_call.1} parent=5 // pred_check_branch
        %277 = sbr.rel (%p274) target = $region32
      $region31: #{tpu_custom_call.1} parent=5 // pred_region
        %s278 = ssub.s32 %s23, 1
        %s279 = sand.u32 %s58, 1
        %s280 = scalar_lea.sflag [#allocation4], %s279
        %s281 = sand.u32 %s58, 1
        %s282 = smul.addr %s281, 24
        %s283 = scalar_lea.vmem [#allocation3], %s282
        // Predicated region
        $region33: #{tpu_custom_call.1} parent=31 // pred_check
          %p284 = pneg %p71
        $region34: #{tpu_custom_call.1} parent=31 // pred_check_branch
          %286 = sbr.rel (%p284) target = $region36
        $region35: #{tpu_custom_call.1} parent=31 // pred_region
          %288 = dma.done %s280, 384
        $region36: #{tpu_custom_call.1} parent=31 // pred_fallthru
          _
        %s289 = sand.u32 %s28, 1
        %s290 = scalar_lea.sflag [#allocation7], %s289
        %s291 = sand.u32 %s84, 1
        %s292 = smul.addr %s291, 192
        %s293 = scalar_lea.vmem [#allocation6], %s292
        // Predicated region
        $region37: #{tpu_custom_call.1} parent=31 // pred_check
          %p294 = pneg %p97
        $region38: #{tpu_custom_call.1} parent=31 // pred_check_branch
          %296 = sbr.rel (%p294) target = $region40
        $region39: #{tpu_custom_call.1} parent=31 // pred_region
          %298 = dma.done %s290, 3072
        $region40: #{tpu_custom_call.1} parent=31 // pred_fallthru
          _
        %s299 = sand.u32 %s28, 1
        %s300 = scalar_lea.sflag [#allocation7], %s299
        %s301 = sand.u32 %s110, 1
        %s302 = scalar_lea.vmem [#allocation8], %s301
        // Predicated region
        $region41: #{tpu_custom_call.1} parent=31 // pred_check
          %p303 = pneg %p123
        $region42: #{tpu_custom_call.1} parent=31 // pred_check_branch
          %305 = sbr.rel (%p303) target = $region44
        $region43: #{tpu_custom_call.1} parent=31 // pred_region
          %307 = dma.done %s300, 16
        $region44: #{tpu_custom_call.1} parent=31 // pred_fallthru
          _
        %s308 = sand.u32 %s58, 1
        %s309 = scalar_lea.sflag [#allocation4], %s308
        %s310 = sand.u32 %s58, 1
        %s311 = smul.addr %s310, 24
        %s312 = scalar_lea.vmem [#allocation3], %s311
        %p313 = pneg %p71
        %p314 = pneg %p68
        %s315 = sand.u32 %s28, 1
        %s316 = scalar_lea.sflag [#allocation7], %s315
        %s317 = sand.u32 %s84, 1
        %s318 = smul.addr %s317, 192
        %s319 = scalar_lea.vmem [#allocation6], %s318
        %p320 = pneg %p97
        %p321 = pneg %p94
        %s322 = sand.u32 %s28, 1
        %s323 = scalar_lea.sflag [#allocation7], %s322
        %s324 = sand.u32 %s110, 1
        %s325 = scalar_lea.vmem [#allocation8], %s324
        %p326 = pneg %p123
        %p327 = pneg %p120
        %p328 = pneg %p159
        %p329 = pneg %p156
        %s330 = sand.u32 %s146, 1
        %s331 = scalar_lea.sflag [#allocation5], %s330
        %s332 = sand.u32 %s146, 1
        %s333 = smul.addr %s332, 16
        %s334 = scalar_lea.vmem [#allocation9], %s333
        %p335 = pneg %p185
        %p336 = pneg %p182
        %s337 = sand.u32 %s172, 1
        %s338 = scalar_lea.sflag [#allocation11], %s337
        %s339 = sand.u32 %s172, 1
        %s340 = smul.addr %s339, 2
        %s341 = scalar_lea.vmem [#allocation10], %s340
        %s342 = smul.u32 %s33, 2
        %s343 = ssub.s32 0, %s342
        %s344 = smul.u32 %s32, %s343
        %s345 = sadd.s32 %s33, %s344
        %s346 = smul.u32 2, %s345
        %s347 = smul.u32 %s33, 2
        %s348 = ssub.s32 0, %s347
        %s349 = smul.u32 %s32, %s348
        %s350 = sadd.s32 %s33, %s349
        %s351 = smul.u32 2, %s350
        %p352 = scmp.eq.s32.totalorder %s33, 0
        // Predicated region
        $region45: #{tpu_custom_call.1} parent=31 // pred_check
          %p353 = pneg %p352
        $region46: #{tpu_custom_call.1} parent=31 // pred_check_branch
          %355 = sbr.rel (%p353) target = $region48
        $region47: #{tpu_custom_call.1} parent=31 // pred_region
          %356 = vst [vmem:[#allocation2] sm:$0x3] 0.0
        $region48: #{tpu_custom_call.1} parent=31 // pred_fallthru
          _
        %v357 = vld [vmem:[%s302] sm:$0x1]
        %v359 = vperm.slane %v357, 0
        %p361 = scmp.eq.s32.totalorder %s32, 0
        // Predicated region
        $region49: #{tpu_custom_call.1} parent=31 // pred_check
          %p362 = pneg %p361
        $region50: #{tpu_custom_call.1} parent=31 // pred_check_branch
          %364 = sbr.rel (%p362) target = $region52
        $region51: #{tpu_custom_call.1} parent=31 // pred_region
          %v365 = vld [vmem:[#allocation2] sm:$0x3]
          %v366 = vld [vmem:[%s283] sm:$0x11]
          %v367 = vld [vmem:[%s283 + $0x8] sm:$0x1]
          %v368 = vunpack.c.l.bf16 %v366
          %v369 = vunpack.c.h.bf16 %v366
          %v370 = vunpack.c.l.bf16 %v367
          %v371 = vpack.c.bf16 %v365, %v365
          %v372 = vld [vmem:[%s293] sm:$0xff]
          %v373 = vld [vmem:[%s293 + $0x8] sm:$0xf]
          %v374 = vld [vmem:[%s293 + $0xc] sm:$0xff]
          %v375 = vld [vmem:[%s293 + $0x14] sm:$0xf]
          %v376 = vld [vmem:[%s293 + $0x18] sm:$0xff]
          %v377 = vld [vmem:[%s293 + $0x20] sm:$0xf]
          %v378 = vld [vmem:[%s293 + $0x24] sm:$0xff]
          %v379 = vld [vmem:[%s293 + $0x2c] sm:$0xf]
          %v380 = vld [vmem:[%s293 + $0x30] sm:$0xff]
          %v381 = vld [vmem:[%s293 + $0x38] sm:$0xf]
          %v382 = vld [vmem:[%s293 + $0x3c] sm:$0xff]
          %v383 = vld [vmem:[%s293 + $0x44] sm:$0xf]
          %v384 = vld [vmem:[%s293 + $0x48] sm:$0xff]
          %v385 = vld [vmem:[%s293 + $0x50] sm:$0xf]
          %v386 = vld [vmem:[%s293 + $0x54] sm:$0xff]
          %v387 = vld [vmem:[%s293 + $0x5c] sm:$0xf]
          %v388 = vld [vmem:[%s293 + $0x60] sm:$0xff]
          %v389 = vld [vmem:[%s293 + $0x68] sm:$0xf]
          %v390 = vld [vmem:[%s293 + $0x6c] sm:$0xff]
          %v391 = vld [vmem:[%s293 + $0x74] sm:$0xf]
          %v392 = vld [vmem:[%s293 + $0x78] sm:$0xff]
          %v393 = vld [vmem:[%s293 + $0x80] sm:$0xf]
          %v394 = vld [vmem:[%s293 + $0x84] sm:$0xff]
          %v395 = vld [vmem:[%s293 + $0x8c] sm:$0xf]
          %v396 = vld [vmem:[%s293 + $0x90] sm:$0xff]
          %v397 = vld [vmem:[%s293 + $0x98] sm:$0xf]
          %v398 = vld [vmem:[%s293 + $0x9c] sm:$0xff]
          %v399 = vld [vmem:[%s293 + $0xa4] sm:$0xf]
          %v400 = vld [vmem:[%s293 + $0xa8] sm:$0xff]
          %v401 = vld [vmem:[%s293 + $0xb0] sm:$0xf]
          %v402 = vld [vmem:[%s293 + $0xb4] sm:$0xff]
          %v403 = vld [vmem:[%s293 + $0xbc] sm:$0xf]
          %v436 = vunpack.c.l.b16 %v372
          %v437 = vunpack.c.h.b16 %v372
          %v438 = vunpack.c.l.b16 %v373
          %v439 = vunpack.c.l.b16 %v374
          %v440 = vunpack.c.h.b16 %v374
          %v441 = vunpack.c.l.b16 %v375
          %v442 = vunpack.c.l.b16 %v376
          %v443 = vunpack.c.h.b16 %v376
          %v444 = vunpack.c.l.b16 %v377
          %v445 = vunpack.c.l.b16 %v378
          %v446 = vunpack.c.h.b16 %v378
          %v447 = vunpack.c.l.b16 %v379
          %v448 = vunpack.c.l.b16 %v380
          %v449 = vunpack.c.h.b16 %v380
          %v450 = vunpack.c.l.b16 %v381
          %v451 = vunpack.c.l.b16 %v382
          %v452 = vunpack.c.h.b16 %v382
          %v453 = vunpack.c.l.b16 %v383
          %v454 = vunpack.c.l.b16 %v384
          %v455 = vunpack.c.h.b16 %v384
          %v456 = vunpack.c.l.b16 %v385
          %v457 = vunpack.c.l.b16 %v386
          %v458 = vunpack.c.h.b16 %v386
          %v459 = vunpack.c.l.b16 %v387
          %v460 = vunpack.c.l.b16 %v388
          %v461 = vunpack.c.h.b16 %v388
          %v462 = vunpack.c.l.b16 %v389
          %v463 = vunpack.c.l.b16 %v390
          %v464 = vunpack.c.h.b16 %v390
          %v465 = vunpack.c.l.b16 %v391
          %v466 = vunpack.c.l.b16 %v392
          %v467 = vunpack.c.h.b16 %v392
          %v468 = vunpack.c.l.b16 %v393
          %v469 = vunpack.c.l.b16 %v394
          %v470 = vunpack.c.h.b16 %v394
          %v471 = vunpack.c.l.b16 %v395
          %v472 = vunpack.c.l.b16 %v396
          %v473 = vunpack.c.h.b16 %v396
          %v474 = vunpack.c.l.b16 %v397
          %v475 = vunpack.c.l.b16 %v398
          %v476 = vunpack.c.h.b16 %v398
          %v477 = vunpack.c.l.b16 %v399
          %v478 = vunpack.c.l.b16 %v400
          %v479 = vunpack.c.h.b16 %v400
          %v480 = vunpack.c.l.b16 %v401
          %v481 = vunpack.c.l.b16 %v402
          %v482 = vunpack.c.h.b16 %v402
          %v483 = vunpack.c.l.b16 %v403
          %v484 = vpack.c.b16 %v439, %v436
          %v485 = vpack.c.b16 %v440, %v437
          %v486 = vpack.c.b16 %v441, %v438
          %v487 = vpack.c.b16 %v445, %v442
          %v488 = vpack.c.b16 %v446, %v443
          %v489 = vpack.c.b16 %v447, %v444
          %v490 = vpack.c.b16 %v451, %v448
          %v491 = vpack.c.b16 %v452, %v449
          %v492 = vpack.c.b16 %v453, %v450
          %v493 = vpack.c.b16 %v457, %v454
          %v494 = vpack.c.b16 %v458, %v455
          %v495 = vpack.c.b16 %v459, %v456
          %v496 = vpack.c.b16 %v463, %v460
          %v497 = vpack.c.b16 %v464, %v461
          %v498 = vpack.c.b16 %v465, %v462
          %v499 = vpack.c.b16 %v469, %v466
          %v500 = vpack.c.b16 %v470, %v467
          %v501 = vpack.c.b16 %v471, %v468
          %v502 = vpack.c.b16 %v475, %v472
          %v503 = vpack.c.b16 %v476, %v473
          %v504 = vpack.c.b16 %v477, %v474
          %v505 = vpack.c.b16 %v481, %v478
          %v506 = vpack.c.b16 %v482, %v479
          %v507 = vpack.c.b16 %v483, %v480
          %532 = vmatpush.bf16.msra.mxu0 %v505
          %533 = vmatpush.bf16.msra.mxu0 %v502
          %534 = vmatpush.bf16.msra.mxu0 %v499
          %535 = vmatpush.bf16.msra.mxu0 %v496
          %536 = vmatpush.bf16.msra.mxu0 %v493
          %537 = vmatpush.bf16.msra.mxu0 %v490
          %538 = vmatpush.bf16.msra.mxu0 %v487
          %539 = vmatpush.bf16.msra.mxu0 %v484
          %540 = vmatmul.bf16.gmra.mxu0 %v371
          %v541 = vpop.f32.mrf.mxu0
          %v542 = vadd.f32 0.0, %v541
          %v543 = vpop.f32.mrf.mxu0
          %544 = vdwg.mxu0
          %545 = vmatpush.bf16.msra.mxu0 %v506
          %546 = vmatpush.bf16.msra.mxu0 %v503
          %547 = vmatpush.bf16.msra.mxu0 %v500
          %548 = vmatpush.bf16.msra.mxu0 %v497
          %549 = vmatpush.bf16.msra.mxu0 %v494
          %550 = vmatpush.bf16.msra.mxu0 %v491
          %551 = vmatpush.bf16.msra.mxu0 %v488
          %552 = vmatpush.bf16.msra.mxu0 %v485
          %553 = vmatmul.bf16.gmra.mxu0 %v371
          %v554 = vpop.f32.mrf.mxu0
          %v555 = vadd.f32 0.0, %v554
          %v556 = vpop.f32.mrf.mxu0
          %557 = vdwg.mxu0
          %558 = vmatpush.bf16.msra.mxu0 %v507
          %559 = vmatpush.bf16.msra.mxu0 %v504
          %560 = vmatpush.bf16.msra.mxu0 %v501
          %561 = vmatpush.bf16.msra.mxu0 %v498
          %562 = vmatpush.bf16.msra.mxu0 %v495
          %563 = vmatpush.bf16.msra.mxu0 %v492
          %564 = vmatpush.bf16.msra.mxu0 %v489
          %565 = vmatpush.bf16.msra.mxu0 %v486
          %566 = vmatmul.bf16.gmra.mxu0 %v371
          %v567 = vpop.f32.mrf.mxu0
          %v568 = vadd.f32 0.0, %v567
          %v569 = vpop.f32.mrf.mxu0
          %570 = vdwg.mxu0
          %v571 = vadd.f32 %v368, %v542
          %v572 = vxor.u32 %v571, 2147483648
          %v573 = vmul.f32 %v572, 1.442695
          %v574 = vpow.pop %v573
          %v575 = vadd.f32 %v574, 1.0
          %v576 = vrcp.pop %v575
          %v577 = vmul.f32 %v575, %v576
          %v578 = vsub.f32 1.0, %v577
          %v579 = vmul.f32 %v576, %v578
          %v580 = vadd.f32 %v576, %v579
          %vm581 = vweird.f32 %v575
          %vm582 = vweird.f32 %v576
          %vm583 = vmor %vm581, %vm582
          %v584 = vsel %vm583, %v576, %v580
          %v585 = vand.u32 2147483647, %v575
          %vm586 = vcmp.eq.f32.partialorder %v585, 8.507059e+37
          %v587 = vand.u32 %v575, 2147483648
          %v588 = vor.u32 1.1754944e-38, %v587
          %v589 = vsel %vm586, %v588, %v584
          %v590 = vmul.f32 1.0, %v589
          %v591 = vadd.f32 %v369, %v555
          %v592 = vxor.u32 %v591, 2147483648
          %v593 = vmul.f32 %v592, 1.442695
          %v594 = vpow.pop %v593
          %v595 = vadd.f32 %v594, 1.0
          %v596 = vrcp.pop %v595
          %v597 = vmul.f32 %v595, %v596
          %v598 = vsub.f32 1.0, %v597
          %v599 = vmul.f32 %v596, %v598
          %v600 = vadd.f32 %v596, %v599
          %vm601 = vweird.f32 %v595
          %vm602 = vweird.f32 %v596
          %vm603 = vmor %vm601, %vm602
          %v604 = vsel %vm603, %v596, %v600
          %v605 = vand.u32 2147483647, %v595
          %vm606 = vcmp.eq.f32.partialorder %v605, 8.507059e+37
          %v607 = vand.u32 %v595, 2147483648
          %v608 = vor.u32 1.1754944e-38, %v607
          %v609 = vsel %vm606, %v608, %v604
          %v610 = vmul.f32 1.0, %v609
          %v611 = vadd.f32 %v568, %v359
          %v612 = vmul.f32 %v590, %v611
          %v613 = vadd.f32 %v370, %v612
          %v614 = vtanh.pop %v613
          %v615 = vsub.f32 1.0, %v610
          %v616 = vmul.f32 %v615, %v614
          %v617 = vmul.f32 %v610, %v365
          %v618 = vadd.f32 %v616, %v617
          %619 = vst [vmem:[%s334] sm:$0x3] %v618
          %v620 = vld [vmem:[%s283] sm:$0x22]
          %v621 = vld [vmem:[%s283 + $0x8] sm:$0x2]
          %v622 = vunpack.c.l.bf16 %v620
          %v623 = vunpack.c.h.bf16 %v620
          %v624 = vunpack.c.l.bf16 %v621
          %v625 = vpack.c.bf16 %v618, %v618
          %v626 = vld [vmem:[%s293] sm:$0xff]
          %v627 = vld [vmem:[%s293 + $0x8] sm:$0xf]
          %v628 = vld [vmem:[%s293 + $0xc] sm:$0xff]
          %v629 = vld [vmem:[%s293 + $0x14] sm:$0xf]
          %v630 = vld [vmem:[%s293 + $0x18] sm:$0xff]
          %v631 = vld [vmem:[%s293 + $0x20] sm:$0xf]
          %v632 = vld [vmem:[%s293 + $0x24] sm:$0xff]
          %v633 = vld [vmem:[%s293 + $0x2c] sm:$0xf]
          %v634 = vld [vmem:[%s293 + $0x30] sm:$0xff]
          %v635 = vld [vmem:[%s293 + $0x38] sm:$0xf]
          %v636 = vld [vmem:[%s293 + $0x3c] sm:$0xff]
          %v637 = vld [vmem:[%s293 + $0x44] sm:$0xf]
          %v638 = vld [vmem:[%s293 + $0x48] sm:$0xff]
          %v639 = vld [vmem:[%s293 + $0x50] sm:$0xf]
          %v640 = vld [vmem:[%s293 + $0x54] sm:$0xff]
          %v641 = vld [vmem:[%s293 + $0x5c] sm:$0xf]
          %v642 = vld [vmem:[%s293 + $0x60] sm:$0xff]
          %v643 = vld [vmem:[%s293 + $0x68] sm:$0xf]
          %v644 = vld [vmem:[%s293 + $0x6c] sm:$0xff]
          %v645 = vld [vmem:[%s293 + $0x74] sm:$0xf]
          %v646 = vld [vmem:[%s293 + $0x78] sm:$0xff]
          %v647 = vld [vmem:[%s293 + $0x80] sm:$0xf]
          %v648 = vld [vmem:[%s293 + $0x84] sm:$0xff]
          %v649 = vld [vmem:[%s293 + $0x8c] sm:$0xf]
          %v650 = vld [vmem:[%s293 + $0x90] sm:$0xff]
          %v651 = vld [vmem:[%s293 + $0x98] sm:$0xf]
          %v652 = vld [vmem:[%s293 + $0x9c] sm:$0xff]
          %v653 = vld [vmem:[%s293 + $0xa4] sm:$0xf]
          %v654 = vld [vmem:[%s293 + $0xa8] sm:$0xff]
          %v655 = vld [vmem:[%s293 + $0xb0] sm:$0xf]
          %v656 = vld [vmem:[%s293 + $0xb4] sm:$0xff]
          %v657 = vld [vmem:[%s293 + $0xbc] sm:$0xf]
          %v690 = vunpack.c.l.b16 %v626
          %v691 = vunpack.c.h.b16 %v626
          %v692 = vunpack.c.l.b16 %v627
          %v693 = vunpack.c.l.b16 %v628
          %v694 = vunpack.c.h.b16 %v628
          %v695 = vunpack.c.l.b16 %v629
          %v696 = vunpack.c.l.b16 %v630
          %v697 = vunpack.c.h.b16 %v630
          %v698 = vunpack.c.l.b16 %v631
          %v699 = vunpack.c.l.b16 %v632
          %v700 = vunpack.c.h.b16 %v632
          %v701 = vunpack.c.l.b16 %v633
          %v702 = vunpack.c.l.b16 %v634
          %v703 = vunpack.c.h.b16 %v634
          %v704 = vunpack.c.l.b16 %v635
          %v705 = vunpack.c.l.b16 %v636
          %v706 = vunpack.c.h.b16 %v636
          %v707 = vunpack.c.l.b16 %v637
          %v708 = vunpack.c.l.b16 %v638
          %v709 = vunpack.c.h.b16 %v638
          %v710 = vunpack.c.l.b16 %v639
          %v711 = vunpack.c.l.b16 %v640
          %v712 = vunpack.c.h.b16 %v640
          %v713 = vunpack.c.l.b16 %v641
          %v714 = vunpack.c.l.b16 %v642
          %v715 = vunpack.c.h.b16 %v642
          %v716 = vunpack.c.l.b16 %v643
          %v717 = vunpack.c.l.b16 %v644
          %v718 = vunpack.c.h.b16 %v644
          %v719 = vunpack.c.l.b16 %v645
          %v720 = vunpack.c.l.b16 %v646
          %v721 = vunpack.c.h.b16 %v646
          %v722 = vunpack.c.l.b16 %v647
          %v723 = vunpack.c.l.b16 %v648
          %v724 = vunpack.c.h.b16 %v648
          %v725 = vunpack.c.l.b16 %v649
          %v726 = vunpack.c.l.b16 %v650
          %v727 = vunpack.c.h.b16 %v650
          %v728 = vunpack.c.l.b16 %v651
          %v729 = vunpack.c.l.b16 %v652
          %v730 = vunpack.c.h.b16 %v652
          %v731 = vunpack.c.l.b16 %v653
          %v732 = vunpack.c.l.b16 %v654
          %v733 = vunpack.c.h.b16 %v654
          %v734 = vunpack.c.l.b16 %v655
          %v735 = vunpack.c.l.b16 %v656
          %v736 = vunpack.c.h.b16 %v656
          %v737 = vunpack.c.l.b16 %v657
          %v738 = vpack.c.b16 %v693, %v690
          %v739 = vpack.c.b16 %v694, %v691
          %v740 = vpack.c.b16 %v695, %v692
          %v741 = vpack.c.b16 %v699, %v696
          %v742 = vpack.c.b16 %v700, %v697
          %v743 = vpack.c.b16 %v701, %v698
          %v744 = vpack.c.b16 %v705, %v702
          %v745 = vpack.c.b16 %v706, %v703
          %v746 = vpack.c.b16 %v707, %v704
          %v747 = vpack.c.b16 %v711, %v708
          %v748 = vpack.c.b16 %v712, %v709
          %v749 = vpack.c.b16 %v713, %v710
          %v750 = vpack.c.b16 %v717, %v714
          %v751 = vpack.c.b16 %v718, %v715
          %v752 = vpack.c.b16 %v719, %v716
          %v753 = vpack.c.b16 %v723, %v720
          %v754 = vpack.c.b16 %v724, %v721
          %v755 = vpack.c.b16 %v725, %v722
          %v756 = vpack.c.b16 %v729, %v726
          %v757 = vpack.c.b16 %v730, %v727
          %v758 = vpack.c.b16 %v731, %v728
          %v759 = vpack.c.b16 %v735, %v732
          %v760 = vpack.c.b16 %v736, %v733
          %v761 = vpack.c.b16 %v737, %v734
          %786 = vmatpush.bf16.msra.mxu0 %v759
          %787 = vmatpush.bf16.msra.mxu0 %v756
          %788 = vmatpush.bf16.msra.mxu0 %v753
          %789 = vmatpush.bf16.msra.mxu0 %v750
          %790 = vmatpush.bf16.msra.mxu0 %v747
          %791 = vmatpush.bf16.msra.mxu0 %v744
          %792 = vmatpush.bf16.msra.mxu0 %v741
          %793 = vmatpush.bf16.msra.mxu0 %v738
          %794 = vmatmul.bf16.gmra.mxu0 %v625
          %v795 = vpop.f32.mrf.mxu0
          %v796 = vadd.f32 0.0, %v795
          %v797 = vpop.f32.mrf.mxu0
          %798 = vdwg.mxu0
          %799 = vmatpush.bf16.msra.mxu0 %v760
          %800 = vmatpush.bf16.msra.mxu0 %v757
          %801 = vmatpush.bf16.msra.mxu0 %v754
          %802 = vmatpush.bf16.msra.mxu0 %v751
          %803 = vmatpush.bf16.msra.mxu0 %v748
          %804 = vmatpush.bf16.msra.mxu0 %v745
          %805 = vmatpush.bf16.msra.mxu0 %v742
          %806 = vmatpush.bf16.msra.mxu0 %v739
          %807 = vmatmul.bf16.gmra.mxu0 %v625
          %v808 = vpop.f32.mrf.mxu0
          %v809 = vadd.f32 0.0, %v808
          %v810 = vpop.f32.mrf.mxu0
          %811 = vdwg.mxu0
          %812 = vmatpush.bf16.msra.mxu0 %v761
          %813 = vmatpush.bf16.msra.mxu0 %v758
          %814 = vmatpush.bf16.msra.mxu0 %v755
          %815 = vmatpush.bf16.msra.mxu0 %v752
          %816 = vmatpush.bf16.msra.mxu0 %v749
          %817 = vmatpush.bf16.msra.mxu0 %v746
          %818 = vmatpush.bf16.msra.mxu0 %v743
          %819 = vmatpush.bf16.msra.mxu0 %v740
          %820 = vmatmul.bf16.gmra.mxu0 %v625
          %v821 = vpop.f32.mrf.mxu0
          %v822 = vadd.f32 0.0, %v821
          %v823 = vpop.f32.mrf.mxu0
          %824 = vdwg.mxu0
          %v826 = vrot.slane %v796, 6
          %v828 = vadd.f32 %v622, %v826
          %v829 = vxor.u32 %v828, 2147483648
          %v830 = vmul.f32 %v829, 1.442695
          %v831 = vpow.pop %v830
          %v832 = vadd.f32 %v831, 1.0
          %v833 = vrcp.pop %v832
          %v834 = vmul.f32 %v832, %v833
          %v835 = vsub.f32 1.0, %v834
          %v836 = vmul.f32 %v833, %v835
          %v837 = vadd.f32 %v833, %v836
          %vm838 = vweird.f32 %v832
          %vm839 = vweird.f32 %v833
          %vm840 = vmor %vm838, %vm839
          %v841 = vsel %vm840, %v833, %v837
          %v842 = vand.u32 2147483647, %v832
          %vm843 = vcmp.eq.f32.partialorder %v842, 8.507059e+37
          %v844 = vand.u32 %v832, 2147483648
          %v845 = vor.u32 1.1754944e-38, %v844
          %v846 = vsel %vm843, %v845, %v841
          %v847 = vmul.f32 1.0, %v846
          %v849 = vrot.slane %v809, 6
          %v851 = vadd.f32 %v623, %v849
          %v852 = vxor.u32 %v851, 2147483648
          %v853 = vmul.f32 %v852, 1.442695
          %v854 = vpow.pop %v853
          %v855 = vadd.f32 %v854, 1.0
          %v856 = vrcp.pop %v855
          %v857 = vmul.f32 %v855, %v856
          %v858 = vsub.f32 1.0, %v857
          %v859 = vmul.f32 %v856, %v858
          %v860 = vadd.f32 %v856, %v859
          %vm861 = vweird.f32 %v855
          %vm862 = vweird.f32 %v856
          %vm863 = vmor %vm861, %vm862
          %v864 = vsel %vm863, %v856, %v860
          %v865 = vand.u32 2147483647, %v855
          %vm866 = vcmp.eq.f32.partialorder %v865, 8.507059e+37
          %v867 = vand.u32 %v855, 2147483648
          %v868 = vor.u32 1.1754944e-38, %v867
          %v869 = vsel %vm866, %v868, %v864
          %v870 = vmul.f32 1.0, %v869
          %v871 = vadd.f32 %v822, %v359
          %v873 = vrot.slane %v871, 6
          %v875 = vmul.f32 %v847, %v873
          %v876 = vadd.f32 %v624, %v875
          %v877 = vtanh.pop %v876
          %v878 = vsub.f32 1.0, %v870
          %v879 = vmul.f32 %v878, %v877
          %v881 = vrot.slane %v618, 6
          %v883 = vmul.f32 %v870, %v881
          %v884 = vadd.f32 %v879, %v883
          %885 = vst [vmem:[%s334] sm:$0xc] %v884
          %v886 = vld [vmem:[%s283] sm:$0x44]
          %v887 = vld [vmem:[%s283 + $0x8] sm:$0x4]
          %v888 = vunpack.c.l.bf16 %v886
          %v889 = vunpack.c.h.bf16 %v886
          %v890 = vunpack.c.l.bf16 %v887
          %v891 = vpack.c.bf16 %v884, %v884
          %v892 = vld [vmem:[%s293] sm:$0xff]
          %v893 = vld [vmem:[%s293 + $0x8] sm:$0xf]
          %v894 = vld [vmem:[%s293 + $0xc] sm:$0xff]
          %v895 = vld [vmem:[%s293 + $0x14] sm:$0xf]
          %v896 = vld [vmem:[%s293 + $0x18] sm:$0xff]
          %v897 = vld [vmem:[%s293 + $0x20] sm:$0xf]
          %v898 = vld [vmem:[%s293 + $0x24] sm:$0xff]
          %v899 = vld [vmem:[%s293 + $0x2c] sm:$0xf]
          %v900 = vld [vmem:[%s293 + $0x30] sm:$0xff]
          %v901 = vld [vmem:[%s293 + $0x38] sm:$0xf]
          %v902 = vld [vmem:[%s293 + $0x3c] sm:$0xff]
          %v903 = vld [vmem:[%s293 + $0x44] sm:$0xf]
          %v904 = vld [vmem:[%s293 + $0x48] sm:$0xff]
          %v905 = vld [vmem:[%s293 + $0x50] sm:$0xf]
          %v906 = vld [vmem:[%s293 + $0x54] sm:$0xff]
          %v907 = vld [vmem:[%s293 + $0x5c] sm:$0xf]
          %v908 = vld [vmem:[%s293 + $0x60] sm:$0xff]
          %v909 = vld [vmem:[%s293 + $0x68] sm:$0xf]
          %v910 = vld [vmem:[%s293 + $0x6c] sm:$0xff]
          %v911 = vld [vmem:[%s293 + $0x74] sm:$0xf]
          %v912 = vld [vmem:[%s293 + $0x78] sm:$0xff]
          %v913 = vld [vmem:[%s293 + $0x80] sm:$0xf]
          %v914 = vld [vmem:[%s293 + $0x84] sm:$0xff]
          %v915 = vld [vmem:[%s293 + $0x8c] sm:$0xf]
          %v916 = vld [vmem:[%s293 + $0x90] sm:$0xff]
          %v917 = vld [vmem:[%s293 + $0x98] sm:$0xf]
          %v918 = vld [vmem:[%s293 + $0x9c] sm:$0xff]
          %v919 = vld [vmem:[%s293 + $0xa4] sm:$0xf]
          %v920 = vld [vmem:[%s293 + $0xa8] sm:$0xff]
          %v921 = vld [vmem:[%s293 + $0xb0] sm:$0xf]
          %v922 = vld [vmem:[%s293 + $0xb4] sm:$0xff]
          %v923 = vld [vmem:[%s293 + $0xbc] sm:$0xf]
          %v925 = vrot.slane %v891, 1
          %v959 = vunpack.c.l.b16 %v892
          %v960 = vunpack.c.h.b16 %v892
          %v961 = vunpack.c.l.b16 %v893
          %v962 = vunpack.c.l.b16 %v894
          %v963 = vunpack.c.h.b16 %v894
          %v964 = vunpack.c.l.b16 %v895
          %v965 = vunpack.c.l.b16 %v896
          %v966 = vunpack.c.h.b16 %v896
          %v967 = vunpack.c.l.b16 %v897
          %v968 = vunpack.c.l.b16 %v898
          %v969 = vunpack.c.h.b16 %v898
          %v970 = vunpack.c.l.b16 %v899
          %v971 = vunpack.c.l.b16 %v900
          %v972 = vunpack.c.h.b16 %v900
          %v973 = vunpack.c.l.b16 %v901
          %v974 = vunpack.c.l.b16 %v902
          %v975 = vunpack.c.h.b16 %v902
          %v976 = vunpack.c.l.b16 %v903
          %v977 = vunpack.c.l.b16 %v904
          %v978 = vunpack.c.h.b16 %v904
          %v979 = vunpack.c.l.b16 %v905
          %v980 = vunpack.c.l.b16 %v906
          %v981 = vunpack.c.h.b16 %v906
          %v982 = vunpack.c.l.b16 %v907
          %v983 = vunpack.c.l.b16 %v908
          %v984 = vunpack.c.h.b16 %v908
          %v985 = vunpack.c.l.b16 %v909
          %v986 = vunpack.c.l.b16 %v910
          %v987 = vunpack.c.h.b16 %v910
          %v988 = vunpack.c.l.b16 %v911
          %v989 = vunpack.c.l.b16 %v912
          %v990 = vunpack.c.h.b16 %v912
          %v991 = vunpack.c.l.b16 %v913
          %v992 = vunpack.c.l.b16 %v914
          %v993 = vunpack.c.h.b16 %v914
          %v994 = vunpack.c.l.b16 %v915
          %v995 = vunpack.c.l.b16 %v916
          %v996 = vunpack.c.h.b16 %v916
          %v997 = vunpack.c.l.b16 %v917
          %v998 = vunpack.c.l.b16 %v918
          %v999 = vunpack.c.h.b16 %v918
          %v1000 = vunpack.c.l.b16 %v919
          %v1001 = vunpack.c.l.b16 %v920
          %v1002 = vunpack.c.h.b16 %v920
          %v1003 = vunpack.c.l.b16 %v921
          %v1004 = vunpack.c.l.b16 %v922
          %v1005 = vunpack.c.h.b16 %v922
          %v1006 = vunpack.c.l.b16 %v923
          %v1007 = vpack.c.b16 %v962, %v959
          %v1008 = vpack.c.b16 %v963, %v960
          %v1009 = vpack.c.b16 %v964, %v961
          %v1010 = vpack.c.b16 %v968, %v965
          %v1011 = vpack.c.b16 %v969, %v966
          %v1012 = vpack.c.b16 %v970, %v967
          %v1013 = vpack.c.b16 %v974, %v971
          %v1014 = vpack.c.b16 %v975, %v972
          %v1015 = vpack.c.b16 %v976, %v973
          %v1016 = vpack.c.b16 %v980, %v977
          %v1017 = vpack.c.b16 %v981, %v978
          %v1018 = vpack.c.b16 %v982, %v979
          %v1019 = vpack.c.b16 %v986, %v983
          %v1020 = vpack.c.b16 %v987, %v984
          %v1021 = vpack.c.b16 %v988, %v985
          %v1022 = vpack.c.b16 %v992, %v989
          %v1023 = vpack.c.b16 %v993, %v990
          %v1024 = vpack.c.b16 %v994, %v991
          %v1025 = vpack.c.b16 %v998, %v995
          %v1026 = vpack.c.b16 %v999, %v996
          %v1027 = vpack.c.b16 %v1000, %v997
          %v1028 = vpack.c.b16 %v1004, %v1001
          %v1029 = vpack.c.b16 %v1005, %v1002
          %v1030 = vpack.c.b16 %v1006, %v1003
          %1055 = vmatpush.bf16.msra.mxu0 %v1028
          %1056 = vmatpush.bf16.msra.mxu0 %v1025
          %1057 = vmatpush.bf16.msra.mxu0 %v1022
          %1058 = vmatpush.bf16.msra.mxu0 %v1019
          %1059 = vmatpush.bf16.msra.mxu0 %v1016
          %1060 = vmatpush.bf16.msra.mxu0 %v1013
          %1061 = vmatpush.bf16.msra.mxu0 %v1010
          %1062 = vmatpush.bf16.msra.mxu0 %v1007
          %1063 = vmatmul.bf16.gmra.mxu0 %v925
          %v1064 = vpop.f32.mrf.mxu0
          %v1065 = vadd.f32 0.0, %v1064
          %v1066 = vpop.f32.mrf.mxu0
          %1067 = vdwg.mxu0
          %1068 = vmatpush.bf16.msra.mxu0 %v1029
          %1069 = vmatpush.bf16.msra.mxu0 %v1026
          %1070 = vmatpush.bf16.msra.mxu0 %v1023
          %1071 = vmatpush.bf16.msra.mxu0 %v1020
          %1072 = vmatpush.bf16.msra.mxu0 %v1017
          %1073 = vmatpush.bf16.msra.mxu0 %v1014
          %1074 = vmatpush.bf16.msra.mxu0 %v1011
          %1075 = vmatpush.bf16.msra.mxu0 %v1008
          %1076 = vmatmul.bf16.gmra.mxu0 %v925
          %v1077 = vpop.f32.mrf.mxu0
          %v1078 = vadd.f32 0.0, %v1077
          %v1079 = vpop.f32.mrf.mxu0
          %1080 = vdwg.mxu0
          %1081 = vmatpush.bf16.msra.mxu0 %v1030
          %1082 = vmatpush.bf16.msra.mxu0 %v1027
          %1083 = vmatpush.bf16.msra.mxu0 %v1024
          %1084 = vmatpush.bf16.msra.mxu0 %v1021
          %1085 = vmatpush.bf16.msra.mxu0 %v1018
          %1086 = vmatpush.bf16.msra.mxu0 %v1015
          %1087 = vmatpush.bf16.msra.mxu0 %v1012
          %1088 = vmatpush.bf16.msra.mxu0 %v1009
          %1089 = vmatmul.bf16.gmra.mxu0 %v925
          %v1090 = vpop.f32.mrf.mxu0
          %v1091 = vadd.f32 0.0, %v1090
          %v1092 = vpop.f32.mrf.mxu0
          %1093 = vdwg.mxu0
          %v1095 = vrot.slane %v1065, 4
          %v1097 = vadd.f32 %v888, %v1095
          %v1098 = vxor.u32 %v1097, 2147483648
          %v1099 = vmul.f32 %v1098, 1.442695
          %v1100 = vpow.pop %v1099
          %v1101 = vadd.f32 %v1100, 1.0
          %v1102 = vrcp.pop %v1101
          %v1103 = vmul.f32 %v1101, %v1102
          %v1104 = vsub.f32 1.0, %v1103
          %v1105 = vmul.f32 %v1102, %v1104
          %v1106 = vadd.f32 %v1102, %v1105
          %vm1107 = vweird.f32 %v1101
          %vm1108 = vweird.f32 %v1102
          %vm1109 = vmor %vm1107, %vm1108
          %v1110 = vsel %vm1109, %v1102, %v1106
          %v1111 = vand.u32 2147483647, %v1101
          %vm1112 = vcmp.eq.f32.partialorder %v1111, 8.507059e+37
          %v1113 = vand.u32 %v1101, 2147483648
          %v1114 = vor.u32 1.1754944e-38, %v1113
          %v1115 = vsel %vm1112, %v1114, %v1110
          %v1116 = vmul.f32 1.0, %v1115
          %v1118 = vrot.slane %v1078, 4
          %v1120 = vadd.f32 %v889, %v1118
          %v1121 = vxor.u32 %v1120, 2147483648
          %v1122 = vmul.f32 %v1121, 1.442695
          %v1123 = vpow.pop %v1122
          %v1124 = vadd.f32 %v1123, 1.0
          %v1125 = vrcp.pop %v1124
          %v1126 = vmul.f32 %v1124, %v1125
          %v1127 = vsub.f32 1.0, %v1126
          %v1128 = vmul.f32 %v1125, %v1127
          %v1129 = vadd.f32 %v1125, %v1128
          %vm1130 = vweird.f32 %v1124
          %vm1131 = vweird.f32 %v1125
          %vm1132 = vmor %vm1130, %vm1131
          %v1133 = vsel %vm1132, %v1125, %v1129
          %v1134 = vand.u32 2147483647, %v1124
          %vm1135 = vcmp.eq.f32.partialorder %v1134, 8.507059e+37
          %v1136 = vand.u32 %v1124, 2147483648
          %v1137 = vor.u32 1.1754944e-38, %v1136
          %v1138 = vsel %vm1135, %v1137, %v1133
          %v1139 = vmul.f32 1.0, %v1138
          %v1140 = vadd.f32 %v1091, %v359
          %v1142 = vrot.slane %v1140, 4
          %v1144 = vmul.f32 %v1116, %v1142
          %v1145 = vadd.f32 %v890, %v1144
          %v1146 = vtanh.pop %v1145
          %v1147 = vsub.f32 1.0, %v1139
          %v1148 = vmul.f32 %v1147, %v1146
          %v1150 = vrot.slane %v884, 6
          %v1152 = vmul.f32 %v1139, %v1150
          %v1153 = vadd.f32 %v1148, %v1152
          %1154 = vst [vmem:[%s334] sm:$0x30] %v1153
          %v1155 = vld [vmem:[%s283] sm:$0x88]
          %v1156 = vld [vmem:[%s283 + $0x8] sm:$0x8]
          %v1157 = vunpack.c.l.bf16 %v1155
          %v1158 = vunpack.c.h.bf16 %v1155
          %v1159 = vunpack.c.l.bf16 %v1156
          %v1160 = vpack.c.bf16 %v1153, %v1153
          %v1161 = vld [vmem:[%s293] sm:$0xff]
          %v1162 = vld [vmem:[%s293 + $0x8] sm:$0xf]
          %v1163 = vld [vmem:[%s293 + $0xc] sm:$0xff]
          %v1164 = vld [vmem:[%s293 + $0x14] sm:$0xf]
          %v1165 = vld [vmem:[%s293 + $0x18] sm:$0xff]
          %v1166 = vld [vmem:[%s293 + $0x20] sm:$0xf]
          %v1167 = vld [vmem:[%s293 + $0x24] sm:$0xff]
          %v1168 = vld [vmem:[%s293 + $0x2c] sm:$0xf]
          %v1169 = vld [vmem:[%s293 + $0x30] sm:$0xff]
          %v1170 = vld [vmem:[%s293 + $0x38] sm:$0xf]
          %v1171 = vld [vmem:[%s293 + $0x3c] sm:$0xff]
          %v1172 = vld [vmem:[%s293 + $0x44] sm:$0xf]
          %v1173 = vld [vmem:[%s293 + $0x48] sm:$0xff]
          %v1174 = vld [vmem:[%s293 + $0x50] sm:$0xf]
          %v1175 = vld [vmem:[%s293 + $0x54] sm:$0xff]
          %v1176 = vld [vmem:[%s293 + $0x5c] sm:$0xf]
          %v1177 = vld [vmem:[%s293 + $0x60] sm:$0xff]
          %v1178 = vld [vmem:[%s293 + $0x68] sm:$0xf]
          %v1179 = vld [vmem:[%s293 + $0x6c] sm:$0xff]
          %v1180 = vld [vmem:[%s293 + $0x74] sm:$0xf]
          %v1181 = vld [vmem:[%s293 + $0x78] sm:$0xff]
          %v1182 = vld [vmem:[%s293 + $0x80] sm:$0xf]
          %v1183 = vld [vmem:[%s293 + $0x84] sm:$0xff]
          %v1184 = vld [vmem:[%s293 + $0x8c] sm:$0xf]
          %v1185 = vld [vmem:[%s293 + $0x90] sm:$0xff]
          %v1186 = vld [vmem:[%s293 + $0x98] sm:$0xf]
          %v1187 = vld [vmem:[%s293 + $0x9c] sm:$0xff]
          %v1188 = vld [vmem:[%s293 + $0xa4] sm:$0xf]
          %v1189 = vld [vmem:[%s293 + $0xa8] sm:$0xff]
          %v1190 = vld [vmem:[%s293 + $0xb0] sm:$0xf]
          %v1191 = vld [vmem:[%s293 + $0xb4] sm:$0xff]
          %v1192 = vld [vmem:[%s293 + $0xbc] sm:$0xf]
          %v1194 = vrot.slane %v1160, 2
          %v1228 = vunpack.c.l.b16 %v1161
          %v1229 = vunpack.c.h.b16 %v1161
          %v1230 = vunpack.c.l.b16 %v1162
          %v1231 = vunpack.c.l.b16 %v1163
          %v1232 = vunpack.c.h.b16 %v1163
          %v1233 = vunpack.c.l.b16 %v1164
          %v1234 = vunpack.c.l.b16 %v1165
          %v1235 = vunpack.c.h.b16 %v1165
          %v1236 = vunpack.c.l.b16 %v1166
          %v1237 = vunpack.c.l.b16 %v1167
          %v1238 = vunpack.c.h.b16 %v1167
          %v1239 = vunpack.c.l.b16 %v1168
          %v1240 = vunpack.c.l.b16 %v1169
          %v1241 = vunpack.c.h.b16 %v1169
          %v1242 = vunpack.c.l.b16 %v1170
          %v1243 = vunpack.c.l.b16 %v1171
          %v1244 = vunpack.c.h.b16 %v1171
          %v1245 = vunpack.c.l.b16 %v1172
          %v1246 = vunpack.c.l.b16 %v1173
          %v1247 = vunpack.c.h.b16 %v1173
          %v1248 = vunpack.c.l.b16 %v1174
          %v1249 = vunpack.c.l.b16 %v1175
          %v1250 = vunpack.c.h.b16 %v1175
          %v1251 = vunpack.c.l.b16 %v1176
          %v1252 = vunpack.c.l.b16 %v1177
          %v1253 = vunpack.c.h.b16 %v1177
          %v1254 = vunpack.c.l.b16 %v1178
          %v1255 = vunpack.c.l.b16 %v1179
          %v1256 = vunpack.c.h.b16 %v1179
          %v1257 = vunpack.c.l.b16 %v1180
          %v1258 = vunpack.c.l.b16 %v1181
          %v1259 = vunpack.c.h.b16 %v1181
          %v1260 = vunpack.c.l.b16 %v1182
          %v1261 = vunpack.c.l.b16 %v1183
          %v1262 = vunpack.c.h.b16 %v1183
          %v1263 = vunpack.c.l.b16 %v1184
          %v1264 = vunpack.c.l.b16 %v1185
          %v1265 = vunpack.c.h.b16 %v1185
          %v1266 = vunpack.c.l.b16 %v1186
          %v1267 = vunpack.c.l.b16 %v1187
          %v1268 = vunpack.c.h.b16 %v1187
          %v1269 = vunpack.c.l.b16 %v1188
          %v1270 = vunpack.c.l.b16 %v1189
          %v1271 = vunpack.c.h.b16 %v1189
          %v1272 = vunpack.c.l.b16 %v1190
          %v1273 = vunpack.c.l.b16 %v1191
          %v1274 = vunpack.c.h.b16 %v1191
          %v1275 = vunpack.c.l.b16 %v1192
          %v1276 = vpack.c.b16 %v1231, %v1228
          %v1277 = vpack.c.b16 %v1232, %v1229
          %v1278 = vpack.c.b16 %v1233, %v1230
          %v1279 = vpack.c.b16 %v1237, %v1234
          %v1280 = vpack.c.b16 %v1238, %v1235
          %v1281 = vpack.c.b16 %v1239, %v1236
          %v1282 = vpack.c.b16 %v1243, %v1240
          %v1283 = vpack.c.b16 %v1244, %v1241
          %v1284 = vpack.c.b16 %v1245, %v1242
          %v1285 = vpack.c.b16 %v1249, %v1246
          %v1286 = vpack.c.b16 %v1250, %v1247
          %v1287 = vpack.c.b16 %v1251, %v1248
          %v1288 = vpack.c.b16 %v1255, %v1252
          %v1289 = vpack.c.b16 %v1256, %v1253
          %v1290 = vpack.c.b16 %v1257, %v1254
          %v1291 = vpack.c.b16 %v1261, %v1258
          %v1292 = vpack.c.b16 %v1262, %v1259
          %v1293 = vpack.c.b16 %v1263, %v1260
          %v1294 = vpack.c.b16 %v1267, %v1264
          %v1295 = vpack.c.b16 %v1268, %v1265
          %v1296 = vpack.c.b16 %v1269, %v1266
          %v1297 = vpack.c.b16 %v1273, %v1270
          %v1298 = vpack.c.b16 %v1274, %v1271
          %v1299 = vpack.c.b16 %v1275, %v1272
          %1324 = vmatpush.bf16.msra.mxu0 %v1297
          %1325 = vmatpush.bf16.msra.mxu0 %v1294
          %1326 = vmatpush.bf16.msra.mxu0 %v1291
          %1327 = vmatpush.bf16.msra.mxu0 %v1288
          %1328 = vmatpush.bf16.msra.mxu0 %v1285
          %1329 = vmatpush.bf16.msra.mxu0 %v1282
          %1330 = vmatpush.bf16.msra.mxu0 %v1279
          %1331 = vmatpush.bf16.msra.mxu0 %v1276
          %1332 = vmatmul.bf16.gmra.mxu0 %v1194
          %v1333 = vpop.f32.mrf.mxu0
          %v1334 = vadd.f32 0.0, %v1333
          %v1335 = vpop.f32.mrf.mxu0
          %1336 = vdwg.mxu0
          %1337 = vmatpush.bf16.msra.mxu0 %v1298
          %1338 = vmatpush.bf16.msra.mxu0 %v1295
          %1339 = vmatpush.bf16.msra.mxu0 %v1292
          %1340 = vmatpush.bf16.msra.mxu0 %v1289
          %1341 = vmatpush.bf16.msra.mxu0 %v1286
          %1342 = vmatpush.bf16.msra.mxu0 %v1283
          %1343 = vmatpush.bf16.msra.mxu0 %v1280
          %1344 = vmatpush.bf16.msra.mxu0 %v1277
          %1345 = vmatmul.bf16.gmra.mxu0 %v1194
          %v1346 = vpop.f32.mrf.mxu0
          %v1347 = vadd.f32 0.0, %v1346
          %v1348 = vpop.f32.mrf.mxu0
          %1349 = vdwg.mxu0
          %1350 = vmatpush.bf16.msra.mxu0 %v1299
          %1351 = vmatpush.bf16.msra.mxu0 %v1296
          %1352 = vmatpush.bf16.msra.mxu0 %v1293
          %1353 = vmatpush.bf16.msra.mxu0 %v1290
          %1354 = vmatpush.bf16.msra.mxu0 %v1287
          %1355 = vmatpush.bf16.msra.mxu0 %v1284
          %1356 = vmatpush.bf16.msra.mxu0 %v1281
          %1357 = vmatpush.bf16.msra.mxu0 %v1278
          %1358 = vmatmul.bf16.gmra.mxu0 %v1194
          %v1359 = vpop.f32.mrf.mxu0
          %v1360 = vadd.f32 0.0, %v1359
          %v1361 = vpop.f32.mrf.mxu0
          %1362 = vdwg.mxu0
          %v1364 = vrot.slane %v1334, 2
          %v1366 = vadd.f32 %v1157, %v1364
          %v1367 = vxor.u32 %v1366, 2147483648
          %v1368 = vmul.f32 %v1367, 1.442695
          %v1369 = vpow.pop %v1368
          %v1370 = vadd.f32 %v1369, 1.0
          %v1371 = vrcp.pop %v1370
          %v1372 = vmul.f32 %v1370, %v1371
          %v1373 = vsub.f32 1.0, %v1372
          %v1374 = vmul.f32 %v1371, %v1373
          %v1375 = vadd.f32 %v1371, %v1374
          %vm1376 = vweird.f32 %v1370
          %vm1377 = vweird.f32 %v1371
          %vm1378 = vmor %vm1376, %vm1377
          %v1379 = vsel %vm1378, %v1371, %v1375
          %v1380 = vand.u32 2147483647, %v1370
          %vm1381 = vcmp.eq.f32.partialorder %v1380, 8.507059e+37
          %v1382 = vand.u32 %v1370, 2147483648
          %v1383 = vor.u32 1.1754944e-38, %v1382
          %v1384 = vsel %vm1381, %v1383, %v1379
          %v1385 = vmul.f32 1.0, %v1384
          %v1387 = vrot.slane %v1347, 2
          %v1389 = vadd.f32 %v1158, %v1387
          %v1390 = vxor.u32 %v1389, 2147483648
          %v1391 = vmul.f32 %v1390, 1.442695
          %v1392 = vpow.pop %v1391
          %v1393 = vadd.f32 %v1392, 1.0
          %v1394 = vrcp.pop %v1393
          %v1395 = vmul.f32 %v1393, %v1394
          %v1396 = vsub.f32 1.0, %v1395
          %v1397 = vmul.f32 %v1394, %v1396
          %v1398 = vadd.f32 %v1394, %v1397
          %vm1399 = vweird.f32 %v1393
          %vm1400 = vweird.f32 %v1394
          %vm1401 = vmor %vm1399, %vm1400
          %v1402 = vsel %vm1401, %v1394, %v1398
          %v1403 = vand.u32 2147483647, %v1393
          %vm1404 = vcmp.eq.f32.partialorder %v1403, 8.507059e+37
          %v1405 = vand.u32 %v1393, 2147483648
          %v1406 = vor.u32 1.1754944e-38, %v1405
          %v1407 = vsel %vm1404, %v1406, %v1402
          %v1408 = vmul.f32 1.0, %v1407
          %v1409 = vadd.f32 %v1360, %v359
          %v1411 = vrot.slane %v1409, 2
          %v1413 = vmul.f32 %v1385, %v1411
          %v1414 = vadd.f32 %v1159, %v1413
          %v1415 = vtanh.pop %v1414
          %v1416 = vsub.f32 1.0, %v1408
          %v1417 = vmul.f32 %v1416, %v1415
          %v1419 = vrot.slane %v1153, 6
          %v1421 = vmul.f32 %v1408, %v1419
          %v1422 = vadd.f32 %v1417, %v1421
          %1423 = vst [vmem:[%s334] sm:$0xc0] %v1422
          %v1424 = vld [vmem:[%s283 + $0xc] sm:$0x11]
          %v1425 = vld [vmem:[%s283 + $0x14] sm:$0x1]
          %v1426 = vunpack.c.l.bf16 %v1424
          %v1427 = vunpack.c.h.bf16 %v1424
          %v1428 = vunpack.c.l.bf16 %v1425
          %v1429 = vpack.c.bf16 %v1422, %v1422
          %v1430 = vld [vmem:[%s293] sm:$0xff]
          %v1431 = vld [vmem:[%s293 + $0x8] sm:$0xf]
          %v1432 = vld [vmem:[%s293 + $0xc] sm:$0xff]
          %v1433 = vld [vmem:[%s293 + $0x14] sm:$0xf]
          %v1434 = vld [vmem:[%s293 + $0x18] sm:$0xff]
          %v1435 = vld [vmem:[%s293 + $0x20] sm:$0xf]
          %v1436 = vld [vmem:[%s293 + $0x24] sm:$0xff]
          %v1437 = vld [vmem:[%s293 + $0x2c] sm:$0xf]
          %v1438 = vld [vmem:[%s293 + $0x30] sm:$0xff]
          %v1439 = vld [vmem:[%s293 + $0x38] sm:$0xf]
          %v1440 = vld [vmem:[%s293 + $0x3c] sm:$0xff]
          %v1441 = vld [vmem:[%s293 + $0x44] sm:$0xf]
          %v1442 = vld [vmem:[%s293 + $0x48] sm:$0xff]
          %v1443 = vld [vmem:[%s293 + $0x50] sm:$0xf]
          %v1444 = vld [vmem:[%s293 + $0x54] sm:$0xff]
          %v1445 = vld [vmem:[%s293 + $0x5c] sm:$0xf]
          %v1446 = vld [vmem:[%s293 + $0x60] sm:$0xff]
          %v1447 = vld [vmem:[%s293 + $0x68] sm:$0xf]
          %v1448 = vld [vmem:[%s293 + $0x6c] sm:$0xff]
          %v1449 = vld [vmem:[%s293 + $0x74] sm:$0xf]
          %v1450 = vld [vmem:[%s293 + $0x78] sm:$0xff]
          %v1451 = vld [vmem:[%s293 + $0x80] sm:$0xf]
          %v1452 = vld [vmem:[%s293 + $0x84] sm:$0xff]
          %v1453 = vld [vmem:[%s293 + $0x8c] sm:$0xf]
          %v1454 = vld [vmem:[%s293 + $0x90] sm:$0xff]
          %v1455 = vld [vmem:[%s293 + $0x98] sm:$0xf]
          %v1456 = vld [vmem:[%s293 + $0x9c] sm:$0xff]
          %v1457 = vld [vmem:[%s293 + $0xa4] sm:$0xf]
          %v1458 = vld [vmem:[%s293 + $0xa8] sm:$0xff]
          %v1459 = vld [vmem:[%s293 + $0xb0] sm:$0xf]
          %v1460 = vld [vmem:[%s293 + $0xb4] sm:$0xff]
          %v1461 = vld [vmem:[%s293 + $0xbc] sm:$0xf]
          %v1463 = vrot.slane %v1429, 3
          %v1497 = vunpack.c.l.b16 %v1430
          %v1498 = vunpack.c.h.b16 %v1430
          %v1499 = vunpack.c.l.b16 %v1431
          %v1500 = vunpack.c.l.b16 %v1432
          %v1501 = vunpack.c.h.b16 %v1432
          %v1502 = vunpack.c.l.b16 %v1433
          %v1503 = vunpack.c.l.b16 %v1434
          %v1504 = vunpack.c.h.b16 %v1434
          %v1505 = vunpack.c.l.b16 %v1435
          %v1506 = vunpack.c.l.b16 %v1436
          %v1507 = vunpack.c.h.b16 %v1436
          %v1508 = vunpack.c.l.b16 %v1437
          %v1509 = vunpack.c.l.b16 %v1438
          %v1510 = vunpack.c.h.b16 %v1438
          %v1511 = vunpack.c.l.b16 %v1439
          %v1512 = vunpack.c.l.b16 %v1440
          %v1513 = vunpack.c.h.b16 %v1440
          %v1514 = vunpack.c.l.b16 %v1441
          %v1515 = vunpack.c.l.b16 %v1442
          %v1516 = vunpack.c.h.b16 %v1442
          %v1517 = vunpack.c.l.b16 %v1443
          %v1518 = vunpack.c.l.b16 %v1444
          %v1519 = vunpack.c.h.b16 %v1444
          %v1520 = vunpack.c.l.b16 %v1445
          %v1521 = vunpack.c.l.b16 %v1446
          %v1522 = vunpack.c.h.b16 %v1446
          %v1523 = vunpack.c.l.b16 %v1447
          %v1524 = vunpack.c.l.b16 %v1448
          %v1525 = vunpack.c.h.b16 %v1448
          %v1526 = vunpack.c.l.b16 %v1449
          %v1527 = vunpack.c.l.b16 %v1450
          %v1528 = vunpack.c.h.b16 %v1450
          %v1529 = vunpack.c.l.b16 %v1451
          %v1530 = vunpack.c.l.b16 %v1452
          %v1531 = vunpack.c.h.b16 %v1452
          %v1532 = vunpack.c.l.b16 %v1453
          %v1533 = vunpack.c.l.b16 %v1454
          %v1534 = vunpack.c.h.b16 %v1454
          %v1535 = vunpack.c.l.b16 %v1455
          %v1536 = vunpack.c.l.b16 %v1456
          %v1537 = vunpack.c.h.b16 %v1456
          %v1538 = vunpack.c.l.b16 %v1457
          %v1539 = vunpack.c.l.b16 %v1458
          %v1540 = vunpack.c.h.b16 %v1458
          %v1541 = vunpack.c.l.b16 %v1459
          %v1542 = vunpack.c.l.b16 %v1460
          %v1543 = vunpack.c.h.b16 %v1460
          %v1544 = vunpack.c.l.b16 %v1461
          %v1545 = vpack.c.b16 %v1500, %v1497
          %v1546 = vpack.c.b16 %v1501, %v1498
          %v1547 = vpack.c.b16 %v1502, %v1499
          %v1548 = vpack.c.b16 %v1506, %v1503
          %v1549 = vpack.c.b16 %v1507, %v1504
          %v1550 = vpack.c.b16 %v1508, %v1505
          %v1551 = vpack.c.b16 %v1512, %v1509
          %v1552 = vpack.c.b16 %v1513, %v1510
          %v1553 = vpack.c.b16 %v1514, %v1511
          %v1554 = vpack.c.b16 %v1518, %v1515
          %v1555 = vpack.c.b16 %v1519, %v1516
          %v1556 = vpack.c.b16 %v1520, %v1517
          %v1557 = vpack.c.b16 %v1524, %v1521
          %v1558 = vpack.c.b16 %v1525, %v1522
          %v1559 = vpack.c.b16 %v1526, %v1523
          %v1560 = vpack.c.b16 %v1530, %v1527
          %v1561 = vpack.c.b16 %v1531, %v1528
          %v1562 = vpack.c.b16 %v1532, %v1529
          %v1563 = vpack.c.b16 %v1536, %v1533
          %v1564 = vpack.c.b16 %v1537, %v1534
          %v1565 = vpack.c.b16 %v1538, %v1535
          %v1566 = vpack.c.b16 %v1542, %v1539
          %v1567 = vpack.c.b16 %v1543, %v1540
          %v1568 = vpack.c.b16 %v1544, %v1541
          %1593 = vmatpush.bf16.msra.mxu0 %v1566
          %1594 = vmatpush.bf16.msra.mxu0 %v1563
          %1595 = vmatpush.bf16.msra.mxu0 %v1560
          %1596 = vmatpush.bf16.msra.mxu0 %v1557
          %1597 = vmatpush.bf16.msra.mxu0 %v1554
          %1598 = vmatpush.bf16.msra.mxu0 %v1551
          %1599 = vmatpush.bf16.msra.mxu0 %v1548
          %1600 = vmatpush.bf16.msra.mxu0 %v1545
          %1601 = vmatmul.bf16.gmra.mxu0 %v1463
          %v1602 = vpop.f32.mrf.mxu0
          %v1603 = vadd.f32 0.0, %v1602
          %v1604 = vpop.f32.mrf.mxu0
          %1605 = vdwg.mxu0
          %1606 = vmatpush.bf16.msra.mxu0 %v1567
          %1607 = vmatpush.bf16.msra.mxu0 %v1564
          %1608 = vmatpush.bf16.msra.mxu0 %v1561
          %1609 = vmatpush.bf16.msra.mxu0 %v1558
          %1610 = vmatpush.bf16.msra.mxu0 %v1555
          %1611 = vmatpush.bf16.msra.mxu0 %v1552
          %1612 = vmatpush.bf16.msra.mxu0 %v1549
          %1613 = vmatpush.bf16.msra.mxu0 %v1546
          %1614 = vmatmul.bf16.gmra.mxu0 %v1463
          %v1615 = vpop.f32.mrf.mxu0
          %v1616 = vadd.f32 0.0, %v1615
          %v1617 = vpop.f32.mrf.mxu0
          %1618 = vdwg.mxu0
          %1619 = vmatpush.bf16.msra.mxu0 %v1568
          %1620 = vmatpush.bf16.msra.mxu0 %v1565
          %1621 = vmatpush.bf16.msra.mxu0 %v1562
          %1622 = vmatpush.bf16.msra.mxu0 %v1559
          %1623 = vmatpush.bf16.msra.mxu0 %v1556
          %1624 = vmatpush.bf16.msra.mxu0 %v1553
          %1625 = vmatpush.bf16.msra.mxu0 %v1550
          %1626 = vmatpush.bf16.msra.mxu0 %v1547
          %1627 = vmatmul.bf16.gmra.mxu0 %v1463
          %v1628 = vpop.f32.mrf.mxu0
          %v1629 = vadd.f32 0.0, %v1628
          %v1630 = vpop.f32.mrf.mxu0
          %1631 = vdwg.mxu0
          %v1632 = vadd.f32 %v1426, %v1603
          %v1633 = vxor.u32 %v1632, 2147483648
          %v1634 = vmul.f32 %v1633, 1.442695
          %v1635 = vpow.pop %v1634
          %v1636 = vadd.f32 %v1635, 1.0
          %v1637 = vrcp.pop %v1636
          %v1638 = vmul.f32 %v1636, %v1637
          %v1639 = vsub.f32 1.0, %v1638
          %v1640 = vmul.f32 %v1637, %v1639
          %v1641 = vadd.f32 %v1637, %v1640
          %vm1642 = vweird.f32 %v1636
          %vm1643 = vweird.f32 %v1637
          %vm1644 = vmor %vm1642, %vm1643
          %v1645 = vsel %vm1644, %v1637, %v1641
          %v1646 = vand.u32 2147483647, %v1636
          %vm1647 = vcmp.eq.f32.partialorder %v1646, 8.507059e+37
          %v1648 = vand.u32 %v1636, 2147483648
          %v1649 = vor.u32 1.1754944e-38, %v1648
          %v1650 = vsel %vm1647, %v1649, %v1645
          %v1651 = vmul.f32 1.0, %v1650
          %v1652 = vadd.f32 %v1427, %v1616
          %v1653 = vxor.u32 %v1652, 2147483648
          %v1654 = vmul.f32 %v1653, 1.442695
          %v1655 = vpow.pop %v1654
          %v1656 = vadd.f32 %v1655, 1.0
          %v1657 = vrcp.pop %v1656
          %v1658 = vmul.f32 %v1656, %v1657
          %v1659 = vsub.f32 1.0, %v1658
          %v1660 = vmul.f32 %v1657, %v1659
          %v1661 = vadd.f32 %v1657, %v1660
          %vm1662 = vweird.f32 %v1656
          %vm1663 = vweird.f32 %v1657
          %vm1664 = vmor %vm1662, %vm1663
          %v1665 = vsel %vm1664, %v1657, %v1661
          %v1666 = vand.u32 2147483647, %v1656
          %vm1667 = vcmp.eq.f32.partialorder %v1666, 8.507059e+37
          %v1668 = vand.u32 %v1656, 2147483648
          %v1669 = vor.u32 1.1754944e-38, %v1668
          %v1670 = vsel %vm1667, %v1669, %v1665
          %v1671 = vmul.f32 1.0, %v1670
          %v1672 = vadd.f32 %v1629, %v359
          %v1673 = vmul.f32 %v1651, %v1672
          %v1674 = vadd.f32 %v1428, %v1673
          %v1675 = vtanh.pop %v1674
          %v1676 = vsub.f32 1.0, %v1671
          %v1677 = vmul.f32 %v1676, %v1675
          %v1679 = vrot.slane %v1422, 6
          %v1681 = vmul.f32 %v1671, %v1679
          %v1682 = vadd.f32 %v1677, %v1681
          %1683 = vst [vmem:[%s334 + $0x8] sm:$0x3] %v1682
          %v1684 = vld [vmem:[%s283 + $0xc] sm:$0x22]
          %v1685 = vld [vmem:[%s283 + $0x14] sm:$0x2]
          %v1686 = vunpack.c.l.bf16 %v1684
          %v1687 = vunpack.c.h.bf16 %v1684
          %v1688 = vunpack.c.l.bf16 %v1685
          %v1689 = vpack.c.bf16 %v1682, %v1682
          %v1690 = vld [vmem:[%s293] sm:$0xff]
          %v1691 = vld [vmem:[%s293 + $0x8] sm:$0xf]
          %v1692 = vld [vmem:[%s293 + $0xc] sm:$0xff]
          %v1693 = vld [vmem:[%s293 + $0x14] sm:$0xf]
          %v1694 = vld [vmem:[%s293 + $0x18] sm:$0xff]
          %v1695 = vld [vmem:[%s293 + $0x20] sm:$0xf]
          %v1696 = vld [vmem:[%s293 + $0x24] sm:$0xff]
          %v1697 = vld [vmem:[%s293 + $0x2c] sm:$0xf]
          %v1698 = vld [vmem:[%s293 + $0x30] sm:$0xff]
          %v1699 = vld [vmem:[%s293 + $0x38] sm:$0xf]
          %v1700 = vld [vmem:[%s293 + $0x3c] sm:$0xff]
          %v1701 = vld [vmem:[%s293 + $0x44] sm:$0xf]
          %v1702 = vld [vmem:[%s293 + $0x48] sm:$0xff]
          %v1703 = vld [vmem:[%s293 + $0x50] sm:$0xf]
          %v1704 = vld [vmem:[%s293 + $0x54] sm:$0xff]
          %v1705 = vld [vmem:[%s293 + $0x5c] sm:$0xf]
          %v1706 = vld [vmem:[%s293 + $0x60] sm:$0xff]
          %v1707 = vld [vmem:[%s293 + $0x68] sm:$0xf]
          %v1708 = vld [vmem:[%s293 + $0x6c] sm:$0xff]
          %v1709 = vld [vmem:[%s293 + $0x74] sm:$0xf]
          %v1710 = vld [vmem:[%s293 + $0x78] sm:$0xff]
          %v1711 = vld [vmem:[%s293 + $0x80] sm:$0xf]
          %v1712 = vld [vmem:[%s293 + $0x84] sm:$0xff]
          %v1713 = vld [vmem:[%s293 + $0x8c] sm:$0xf]
          %v1714 = vld [vmem:[%s293 + $0x90] sm:$0xff]
          %v1715 = vld [vmem:[%s293 + $0x98] sm:$0xf]
          %v1716 = vld [vmem:[%s293 + $0x9c] sm:$0xff]
          %v1717 = vld [vmem:[%s293 + $0xa4] sm:$0xf]
          %v1718 = vld [vmem:[%s293 + $0xa8] sm:$0xff]
          %v1719 = vld [vmem:[%s293 + $0xb0] sm:$0xf]
          %v1720 = vld [vmem:[%s293 + $0xb4] sm:$0xff]
          %v1721 = vld [vmem:[%s293 + $0xbc] sm:$0xf]
          %v1754 = vunpack.c.l.b16 %v1690
          %v1755 = vunpack.c.h.b16 %v1690
          %v1756 = vunpack.c.l.b16 %v1691
          %v1757 = vunpack.c.l.b16 %v1692
          %v1758 = vunpack.c.h.b16 %v1692
          %v1759 = vunpack.c.l.b16 %v1693
          %v1760 = vunpack.c.l.b16 %v1694
          %v1761 = vunpack.c.h.b16 %v1694
          %v1762 = vunpack.c.l.b16 %v1695
          %v1763 = vunpack.c.l.b16 %v1696
          %v1764 = vunpack.c.h.b16 %v1696
          %v1765 = vunpack.c.l.b16 %v1697
          %v1766 = vunpack.c.l.b16 %v1698
          %v1767 = vunpack.c.h.b16 %v1698
          %v1768 = vunpack.c.l.b16 %v1699
          %v1769 = vunpack.c.l.b16 %v1700
          %v1770 = vunpack.c.h.b16 %v1700
          %v1771 = vunpack.c.l.b16 %v1701
          %v1772 = vunpack.c.l.b16 %v1702
          %v1773 = vunpack.c.h.b16 %v1702
          %v1774 = vunpack.c.l.b16 %v1703
          %v1775 = vunpack.c.l.b16 %v1704
          %v1776 = vunpack.c.h.b16 %v1704
          %v1777 = vunpack.c.l.b16 %v1705
          %v1778 = vunpack.c.l.b16 %v1706
          %v1779 = vunpack.c.h.b16 %v1706
          %v1780 = vunpack.c.l.b16 %v1707
          %v1781 = vunpack.c.l.b16 %v1708
          %v1782 = vunpack.c.h.b16 %v1708
          %v1783 = vunpack.c.l.b16 %v1709
          %v1784 = vunpack.c.l.b16 %v1710
          %v1785 = vunpack.c.h.b16 %v1710
          %v1786 = vunpack.c.l.b16 %v1711
          %v1787 = vunpack.c.l.b16 %v1712
          %v1788 = vunpack.c.h.b16 %v1712
          %v1789 = vunpack.c.l.b16 %v1713
          %v1790 = vunpack.c.l.b16 %v1714
          %v1791 = vunpack.c.h.b16 %v1714
          %v1792 = vunpack.c.l.b16 %v1715
          %v1793 = vunpack.c.l.b16 %v1716
          %v1794 = vunpack.c.h.b16 %v1716
          %v1795 = vunpack.c.l.b16 %v1717
          %v1796 = vunpack.c.l.b16 %v1718
          %v1797 = vunpack.c.h.b16 %v1718
          %v1798 = vunpack.c.l.b16 %v1719
          %v1799 = vunpack.c.l.b16 %v1720
          %v1800 = vunpack.c.h.b16 %v1720
          %v1801 = vunpack.c.l.b16 %v1721
          %v1802 = vpack.c.b16 %v1757, %v1754
          %v1803 = vpack.c.b16 %v1758, %v1755
          %v1804 = vpack.c.b16 %v1759, %v1756
          %v1805 = vpack.c.b16 %v1763, %v1760
          %v1806 = vpack.c.b16 %v1764, %v1761
          %v1807 = vpack.c.b16 %v1765, %v1762
          %v1808 = vpack.c.b16 %v1769, %v1766
          %v1809 = vpack.c.b16 %v1770, %v1767
          %v1810 = vpack.c.b16 %v1771, %v1768
          %v1811 = vpack.c.b16 %v1775, %v1772
          %v1812 = vpack.c.b16 %v1776, %v1773
          %v1813 = vpack.c.b16 %v1777, %v1774
          %v1814 = vpack.c.b16 %v1781, %v1778
          %v1815 = vpack.c.b16 %v1782, %v1779
          %v1816 = vpack.c.b16 %v1783, %v1780
          %v1817 = vpack.c.b16 %v1787, %v1784
          %v1818 = vpack.c.b16 %v1788, %v1785
          %v1819 = vpack.c.b16 %v1789, %v1786
          %v1820 = vpack.c.b16 %v1793, %v1790
          %v1821 = vpack.c.b16 %v1794, %v1791
          %v1822 = vpack.c.b16 %v1795, %v1792
          %v1823 = vpack.c.b16 %v1799, %v1796
          %v1824 = vpack.c.b16 %v1800, %v1797
          %v1825 = vpack.c.b16 %v1801, %v1798
          %1850 = vmatpush.bf16.msra.mxu0 %v1823
          %1851 = vmatpush.bf16.msra.mxu0 %v1820
          %1852 = vmatpush.bf16.msra.mxu0 %v1817
          %1853 = vmatpush.bf16.msra.mxu0 %v1814
          %1854 = vmatpush.bf16.msra.mxu0 %v1811
          %1855 = vmatpush.bf16.msra.mxu0 %v1808
          %1856 = vmatpush.bf16.msra.mxu0 %v1805
          %1857 = vmatpush.bf16.msra.mxu0 %v1802
          %1858 = vmatmul.bf16.gmra.mxu0 %v1689
          %v1859 = vpop.f32.mrf.mxu0
          %v1860 = vadd.f32 0.0, %v1859
          %v1861 = vpop.f32.mrf.mxu0
          %1862 = vdwg.mxu0
          %1863 = vmatpush.bf16.msra.mxu0 %v1824
          %1864 = vmatpush.bf16.msra.mxu0 %v1821
          %1865 = vmatpush.bf16.msra.mxu0 %v1818
          %1866 = vmatpush.bf16.msra.mxu0 %v1815
          %1867 = vmatpush.bf16.msra.mxu0 %v1812
          %1868 = vmatpush.bf16.msra.mxu0 %v1809
          %1869 = vmatpush.bf16.msra.mxu0 %v1806
          %1870 = vmatpush.bf16.msra.mxu0 %v1803
          %1871 = vmatmul.bf16.gmra.mxu0 %v1689
          %v1872 = vpop.f32.mrf.mxu0
          %v1873 = vadd.f32 0.0, %v1872
          %v1874 = vpop.f32.mrf.mxu0
          %1875 = vdwg.mxu0
          %1876 = vmatpush.bf16.msra.mxu0 %v1825
          %1877 = vmatpush.bf16.msra.mxu0 %v1822
          %1878 = vmatpush.bf16.msra.mxu0 %v1819
          %1879 = vmatpush.bf16.msra.mxu0 %v1816
          %1880 = vmatpush.bf16.msra.mxu0 %v1813
          %1881 = vmatpush.bf16.msra.mxu0 %v1810
          %1882 = vmatpush.bf16.msra.mxu0 %v1807
          %1883 = vmatpush.bf16.msra.mxu0 %v1804
          %1884 = vmatmul.bf16.gmra.mxu0 %v1689
          %v1885 = vpop.f32.mrf.mxu0
          %v1886 = vadd.f32 0.0, %v1885
          %v1887 = vpop.f32.mrf.mxu0
          %1888 = vdwg.mxu0
          %v1890 = vrot.slane %v1860, 6
          %v1892 = vadd.f32 %v1686, %v1890
          %v1893 = vxor.u32 %v1892, 2147483648
          %v1894 = vmul.f32 %v1893, 1.442695
          %v1895 = vpow.pop %v1894
          %v1896 = vadd.f32 %v1895, 1.0
          %v1897 = vrcp.pop %v1896
          %v1898 = vmul.f32 %v1896, %v1897
          %v1899 = vsub.f32 1.0, %v1898
          %v1900 = vmul.f32 %v1897, %v1899
          %v1901 = vadd.f32 %v1897, %v1900
          %vm1902 = vweird.f32 %v1896
          %vm1903 = vweird.f32 %v1897
          %vm1904 = vmor %vm1902, %vm1903
          %v1905 = vsel %vm1904, %v1897, %v1901
          %v1906 = vand.u32 2147483647, %v1896
          %vm1907 = vcmp.eq.f32.partialorder %v1906, 8.507059e+37
          %v1908 = vand.u32 %v1896, 2147483648
          %v1909 = vor.u32 1.1754944e-38, %v1908
          %v1910 = vsel %vm1907, %v1909, %v1905
          %v1911 = vmul.f32 1.0, %v1910
          %v1913 = vrot.slane %v1873, 6
          %v1915 = vadd.f32 %v1687, %v1913
          %v1916 = vxor.u32 %v1915, 2147483648
          %v1917 = vmul.f32 %v1916, 1.442695
          %v1918 = vpow.pop %v1917
          %v1919 = vadd.f32 %v1918, 1.0
          %v1920 = vrcp.pop %v1919
          %v1921 = vmul.f32 %v1919, %v1920
          %v1922 = vsub.f32 1.0, %v1921
          %v1923 = vmul.f32 %v1920, %v1922
          %v1924 = vadd.f32 %v1920, %v1923
          %vm1925 = vweird.f32 %v1919
          %vm1926 = vweird.f32 %v1920
          %vm1927 = vmor %vm1925, %vm1926
          %v1928 = vsel %vm1927, %v1920, %v1924
          %v1929 = vand.u32 2147483647, %v1919
          %vm1930 = vcmp.eq.f32.partialorder %v1929, 8.507059e+37
          %v1931 = vand.u32 %v1919, 2147483648
          %v1932 = vor.u32 1.1754944e-38, %v1931
          %v1933 = vsel %vm1930, %v1932, %v1928
          %v1934 = vmul.f32 1.0, %v1933
          %v1935 = vadd.f32 %v1886, %v359
          %v1937 = vrot.slane %v1935, 6
          %v1939 = vmul.f32 %v1911, %v1937
          %v1940 = vadd.f32 %v1688, %v1939
          %v1941 = vtanh.pop %v1940
          %v1942 = vsub.f32 1.0, %v1934
          %v1943 = vmul.f32 %v1942, %v1941
          %v1945 = vrot.slane %v1682, 6
          %v1947 = vmul.f32 %v1934, %v1945
          %v1948 = vadd.f32 %v1943, %v1947
          %1949 = vst [vmem:[%s334 + $0x8] sm:$0xc] %v1948
          %v1950 = vld [vmem:[%s283 + $0xc] sm:$0x44]
          %v1951 = vld [vmem:[%s283 + $0x14] sm:$0x4]
          %v1952 = vunpack.c.l.bf16 %v1950
          %v1953 = vunpack.c.h.bf16 %v1950
          %v1954 = vunpack.c.l.bf16 %v1951
          %v1955 = vpack.c.bf16 %v1948, %v1948
          %v1956 = vld [vmem:[%s293] sm:$0xff]
          %v1957 = vld [vmem:[%s293 + $0x8] sm:$0xf]
          %v1958 = vld [vmem:[%s293 + $0xc] sm:$0xff]
          %v1959 = vld [vmem:[%s293 + $0x14] sm:$0xf]
          %v1960 = vld [vmem:[%s293 + $0x18] sm:$0xff]
          %v1961 = vld [vmem:[%s293 + $0x20] sm:$0xf]
          %v1962 = vld [vmem:[%s293 + $0x24] sm:$0xff]
          %v1963 = vld [vmem:[%s293 + $0x2c] sm:$0xf]
          %v1964 = vld [vmem:[%s293 + $0x30] sm:$0xff]
          %v1965 = vld [vmem:[%s293 + $0x38] sm:$0xf]
          %v1966 = vld [vmem:[%s293 + $0x3c] sm:$0xff]
          %v1967 = vld [vmem:[%s293 + $0x44] sm:$0xf]
          %v1968 = vld [vmem:[%s293 + $0x48] sm:$0xff]
          %v1969 = vld [vmem:[%s293 + $0x50] sm:$0xf]
          %v1970 = vld [vmem:[%s293 + $0x54] sm:$0xff]
          %v1971 = vld [vmem:[%s293 + $0x5c] sm:$0xf]
          %v1972 = vld [vmem:[%s293 + $0x60] sm:$0xff]
          %v1973 = vld [vmem:[%s293 + $0x68] sm:$0xf]
          %v1974 = vld [vmem:[%s293 + $0x6c] sm:$0xff]
          %v1975 = vld [vmem:[%s293 + $0x74] sm:$0xf]
          %v1976 = vld [vmem:[%s293 + $0x78] sm:$0xff]
          %v1977 = vld [vmem:[%s293 + $0x80] sm:$0xf]
          %v1978 = vld [vmem:[%s293 + $0x84] sm:$0xff]
          %v1979 = vld [vmem:[%s293 + $0x8c] sm:$0xf]
          %v1980 = vld [vmem:[%s293 + $0x90] sm:$0xff]
          %v1981 = vld [vmem:[%s293 + $0x98] sm:$0xf]
          %v1982 = vld [vmem:[%s293 + $0x9c] sm:$0xff]
          %v1983 = vld [vmem:[%s293 + $0xa4] sm:$0xf]
          %v1984 = vld [vmem:[%s293 + $0xa8] sm:$0xff]
          %v1985 = vld [vmem:[%s293 + $0xb0] sm:$0xf]
          %v1986 = vld [vmem:[%s293 + $0xb4] sm:$0xff]
          %v1987 = vld [vmem:[%s293 + $0xbc] sm:$0xf]
          %v1989 = vrot.slane %v1955, 1
          %v2023 = vunpack.c.l.b16 %v1956
          %v2024 = vunpack.c.h.b16 %v1956
          %v2025 = vunpack.c.l.b16 %v1957
          %v2026 = vunpack.c.l.b16 %v1958
          %v2027 = vunpack.c.h.b16 %v1958
          %v2028 = vunpack.c.l.b16 %v1959
          %v2029 = vunpack.c.l.b16 %v1960
          %v2030 = vunpack.c.h.b16 %v1960
          %v2031 = vunpack.c.l.b16 %v1961
          %v2032 = vunpack.c.l.b16 %v1962
          %v2033 = vunpack.c.h.b16 %v1962
          %v2034 = vunpack.c.l.b16 %v1963
          %v2035 = vunpack.c.l.b16 %v1964
          %v2036 = vunpack.c.h.b16 %v1964
          %v2037 = vunpack.c.l.b16 %v1965
          %v2038 = vunpack.c.l.b16 %v1966
          %v2039 = vunpack.c.h.b16 %v1966
          %v2040 = vunpack.c.l.b16 %v1967
          %v2041 = vunpack.c.l.b16 %v1968
          %v2042 = vunpack.c.h.b16 %v1968
          %v2043 = vunpack.c.l.b16 %v1969
          %v2044 = vunpack.c.l.b16 %v1970
          %v2045 = vunpack.c.h.b16 %v1970
          %v2046 = vunpack.c.l.b16 %v1971
          %v2047 = vunpack.c.l.b16 %v1972
          %v2048 = vunpack.c.h.b16 %v1972
          %v2049 = vunpack.c.l.b16 %v1973
          %v2050 = vunpack.c.l.b16 %v1974
          %v2051 = vunpack.c.h.b16 %v1974
          %v2052 = vunpack.c.l.b16 %v1975
          %v2053 = vunpack.c.l.b16 %v1976
          %v2054 = vunpack.c.h.b16 %v1976
          %v2055 = vunpack.c.l.b16 %v1977
          %v2056 = vunpack.c.l.b16 %v1978
          %v2057 = vunpack.c.h.b16 %v1978
          %v2058 = vunpack.c.l.b16 %v1979
          %v2059 = vunpack.c.l.b16 %v1980
          %v2060 = vunpack.c.h.b16 %v1980
          %v2061 = vunpack.c.l.b16 %v1981
          %v2062 = vunpack.c.l.b16 %v1982
          %v2063 = vunpack.c.h.b16 %v1982
          %v2064 = vunpack.c.l.b16 %v1983
          %v2065 = vunpack.c.l.b16 %v1984
          %v2066 = vunpack.c.h.b16 %v1984
          %v2067 = vunpack.c.l.b16 %v1985
          %v2068 = vunpack.c.l.b16 %v1986
          %v2069 = vunpack.c.h.b16 %v1986
          %v2070 = vunpack.c.l.b16 %v1987
          %v2071 = vpack.c.b16 %v2026, %v2023
          %v2072 = vpack.c.b16 %v2027, %v2024
          %v2073 = vpack.c.b16 %v2028, %v2025
          %v2074 = vpack.c.b16 %v2032, %v2029
          %v2075 = vpack.c.b16 %v2033, %v2030
          %v2076 = vpack.c.b16 %v2034, %v2031
          %v2077 = vpack.c.b16 %v2038, %v2035
          %v2078 = vpack.c.b16 %v2039, %v2036
          %v2079 = vpack.c.b16 %v2040, %v2037
          %v2080 = vpack.c.b16 %v2044, %v2041
          %v2081 = vpack.c.b16 %v2045, %v2042
          %v2082 = vpack.c.b16 %v2046, %v2043
          %v2083 = vpack.c.b16 %v2050, %v2047
          %v2084 = vpack.c.b16 %v2051, %v2048
          %v2085 = vpack.c.b16 %v2052, %v2049
          %v2086 = vpack.c.b16 %v2056, %v2053
          %v2087 = vpack.c.b16 %v2057, %v2054
          %v2088 = vpack.c.b16 %v2058, %v2055
          %v2089 = vpack.c.b16 %v2062, %v2059
          %v2090 = vpack.c.b16 %v2063, %v2060
          %v2091 = vpack.c.b16 %v2064, %v2061
          %v2092 = vpack.c.b16 %v2068, %v2065
          %v2093 = vpack.c.b16 %v2069, %v2066
          %v2094 = vpack.c.b16 %v2070, %v2067
          %2119 = vmatpush.bf16.msra.mxu0 %v2092
          %2120 = vmatpush.bf16.msra.mxu0 %v2089
          %2121 = vmatpush.bf16.msra.mxu0 %v2086
          %2122 = vmatpush.bf16.msra.mxu0 %v2083
          %2123 = vmatpush.bf16.msra.mxu0 %v2080
          %2124 = vmatpush.bf16.msra.mxu0 %v2077
          %2125 = vmatpush.bf16.msra.mxu0 %v2074
          %2126 = vmatpush.bf16.msra.mxu0 %v2071
          %2127 = vmatmul.bf16.gmra.mxu0 %v1989
          %v2128 = vpop.f32.mrf.mxu0
          %v2129 = vadd.f32 0.0, %v2128
          %v2130 = vpop.f32.mrf.mxu0
          %2131 = vdwg.mxu0
          %2132 = vmatpush.bf16.msra.mxu0 %v2093
          %2133 = vmatpush.bf16.msra.mxu0 %v2090
          %2134 = vmatpush.bf16.msra.mxu0 %v2087
          %2135 = vmatpush.bf16.msra.mxu0 %v2084
          %2136 = vmatpush.bf16.msra.mxu0 %v2081
          %2137 = vmatpush.bf16.msra.mxu0 %v2078
          %2138 = vmatpush.bf16.msra.mxu0 %v2075
          %2139 = vmatpush.bf16.msra.mxu0 %v2072
          %2140 = vmatmul.bf16.gmra.mxu0 %v1989
          %v2141 = vpop.f32.mrf.mxu0
          %v2142 = vadd.f32 0.0, %v2141
          %v2143 = vpop.f32.mrf.mxu0
          %2144 = vdwg.mxu0
          %2145 = vmatpush.bf16.msra.mxu0 %v2094
          %2146 = vmatpush.bf16.msra.mxu0 %v2091
          %2147 = vmatpush.bf16.msra.mxu0 %v2088
          %2148 = vmatpush.bf16.msra.mxu0 %v2085
          %2149 = vmatpush.bf16.msra.mxu0 %v2082
          %2150 = vmatpush.bf16.msra.mxu0 %v2079
          %2151 = vmatpush.bf16.msra.mxu0 %v2076
          %2152 = vmatpush.bf16.msra.mxu0 %v2073
          %2153 = vmatmul.bf16.gmra.mxu0 %v1989
          %v2154 = vpop.f32.mrf.mxu0
          %v2155 = vadd.f32 0.0, %v2154
          %v2156 = vpop.f32.mrf.mxu0
          %2157 = vdwg.mxu0
          %v2159 = vrot.slane %v2129, 4
          %v2161 = vadd.f32 %v1952, %v2159
          %v2162 = vxor.u32 %v2161, 2147483648
          %v2163 = vmul.f32 %v2162, 1.442695
          %v2164 = vpow.pop %v2163
          %v2165 = vadd.f32 %v2164, 1.0
          %v2166 = vrcp.pop %v2165
          %v2167 = vmul.f32 %v2165, %v2166
          %v2168 = vsub.f32 1.0, %v2167
          %v2169 = vmul.f32 %v2166, %v2168
          %v2170 = vadd.f32 %v2166, %v2169
          %vm2171 = vweird.f32 %v2165
          %vm2172 = vweird.f32 %v2166
          %vm2173 = vmor %vm2171, %vm2172
          %v2174 = vsel %vm2173, %v2166, %v2170
          %v2175 = vand.u32 2147483647, %v2165
          %vm2176 = vcmp.eq.f32.partialorder %v2175, 8.507059e+37
          %v2177 = vand.u32 %v2165, 2147483648
          %v2178 = vor.u32 1.1754944e-38, %v2177
          %v2179 = vsel %vm2176, %v2178, %v2174
          %v2180 = vmul.f32 1.0, %v2179
          %v2182 = vrot.slane %v2142, 4
          %v2184 = vadd.f32 %v1953, %v2182
          %v2185 = vxor.u32 %v2184, 2147483648
          %v2186 = vmul.f32 %v2185, 1.442695
          %v2187 = vpow.pop %v2186
          %v2188 = vadd.f32 %v2187, 1.0
          %v2189 = vrcp.pop %v2188
          %v2190 = vmul.f32 %v2188, %v2189
          %v2191 = vsub.f32 1.0, %v2190
          %v2192 = vmul.f32 %v2189, %v2191
          %v2193 = vadd.f32 %v2189, %v2192
          %vm2194 = vweird.f32 %v2188
          %vm2195 = vweird.f32 %v2189
          %vm2196 = vmor %vm2194, %vm2195
          %v2197 = vsel %vm2196, %v2189, %v2193
          %v2198 = vand.u32 2147483647, %v2188
          %vm2199 = vcmp.eq.f32.partialorder %v2198, 8.507059e+37
          %v2200 = vand.u32 %v2188, 2147483648
          %v2201 = vor.u32 1.1754944e-38, %v2200
          %v2202 = vsel %vm2199, %v2201, %v2197
          %v2203 = vmul.f32 1.0, %v2202
          %v2204 = vadd.f32 %v2155, %v359
          %v2206 = vrot.slane %v2204, 4
          %v2208 = vmul.f32 %v2180, %v2206
          %v2209 = vadd.f32 %v1954, %v2208
          %v2210 = vtanh.pop %v2209
          %v2211 = vsub.f32 1.0, %v2203
          %v2212 = vmul.f32 %v2211, %v2210
          %v2214 = vrot.slane %v1948, 6
          %v2216 = vmul.f32 %v2203, %v2214
          %v2217 = vadd.f32 %v2212, %v2216
          %2218 = vst [vmem:[%s334 + $0x8] sm:$0x30] %v2217
          %v2219 = vld [vmem:[%s283 + $0xc] sm:$0x88]
          %v2220 = vld [vmem:[%s283 + $0x14] sm:$0x8]
          %v2221 = vunpack.c.l.bf16 %v2219
          %v2222 = vunpack.c.h.bf16 %v2219
          %v2223 = vunpack.c.l.bf16 %v2220
          %v2224 = vpack.c.bf16 %v2217, %v2217
          %v2225 = vld [vmem:[%s293] sm:$0xff]
          %v2226 = vld [vmem:[%s293 + $0x8] sm:$0xf]
          %v2227 = vld [vmem:[%s293 + $0xc] sm:$0xff]
          %v2228 = vld [vmem:[%s293 + $0x14] sm:$0xf]
          %v2229 = vld [vmem:[%s293 + $0x18] sm:$0xff]
          %v2230 = vld [vmem:[%s293 + $0x20] sm:$0xf]
          %v2231 = vld [vmem:[%s293 + $0x24] sm:$0xff]
          %v2232 = vld [vmem:[%s293 + $0x2c] sm:$0xf]
          %v2233 = vld [vmem:[%s293 + $0x30] sm:$0xff]
          %v2234 = vld [vmem:[%s293 + $0x38] sm:$0xf]
          %v2235 = vld [vmem:[%s293 + $0x3c] sm:$0xff]
          %v2236 = vld [vmem:[%s293 + $0x44] sm:$0xf]
          %v2237 = vld [vmem:[%s293 + $0x48] sm:$0xff]
          %v2238 = vld [vmem:[%s293 + $0x50] sm:$0xf]
          %v2239 = vld [vmem:[%s293 + $0x54] sm:$0xff]
          %v2240 = vld [vmem:[%s293 + $0x5c] sm:$0xf]
          %v2241 = vld [vmem:[%s293 + $0x60] sm:$0xff]
          %v2242 = vld [vmem:[%s293 + $0x68] sm:$0xf]
          %v2243 = vld [vmem:[%s293 + $0x6c] sm:$0xff]
          %v2244 = vld [vmem:[%s293 + $0x74] sm:$0xf]
          %v2245 = vld [vmem:[%s293 + $0x78] sm:$0xff]
          %v2246 = vld [vmem:[%s293 + $0x80] sm:$0xf]
          %v2247 = vld [vmem:[%s293 + $0x84] sm:$0xff]
          %v2248 = vld [vmem:[%s293 + $0x8c] sm:$0xf]
          %v2249 = vld [vmem:[%s293 + $0x90] sm:$0xff]
          %v2250 = vld [vmem:[%s293 + $0x98] sm:$0xf]
          %v2251 = vld [vmem:[%s293 + $0x9c] sm:$0xff]
          %v2252 = vld [vmem:[%s293 + $0xa4] sm:$0xf]
          %v2253 = vld [vmem:[%s293 + $0xa8] sm:$0xff]
          %v2254 = vld [vmem:[%s293 + $0xb0] sm:$0xf]
          %v2255 = vld [vmem:[%s293 + $0xb4] sm:$0xff]
          %v2256 = vld [vmem:[%s293 + $0xbc] sm:$0xf]
          %v2258 = vrot.slane %v2224, 2
          %v2292 = vunpack.c.l.b16 %v2225
          %v2293 = vunpack.c.h.b16 %v2225
          %v2294 = vunpack.c.l.b16 %v2226
          %v2295 = vunpack.c.l.b16 %v2227
          %v2296 = vunpack.c.h.b16 %v2227
          %v2297 = vunpack.c.l.b16 %v2228
          %v2298 = vunpack.c.l.b16 %v2229
          %v2299 = vunpack.c.h.b16 %v2229
          %v2300 = vunpack.c.l.b16 %v2230
          %v2301 = vunpack.c.l.b16 %v2231
          %v2302 = vunpack.c.h.b16 %v2231
          %v2303 = vunpack.c.l.b16 %v2232
          %v2304 = vunpack.c.l.b16 %v2233
          %v2305 = vunpack.c.h.b16 %v2233
          %v2306 = vunpack.c.l.b16 %v2234
          %v2307 = vunpack.c.l.b16 %v2235
          %v2308 = vunpack.c.h.b16 %v2235
          %v2309 = vunpack.c.l.b16 %v2236
          %v2310 = vunpack.c.l.b16 %v2237
          %v2311 = vunpack.c.h.b16 %v2237
          %v2312 = vunpack.c.l.b16 %v2238
          %v2313 = vunpack.c.l.b16 %v2239
          %v2314 = vunpack.c.h.b16 %v2239
          %v2315 = vunpack.c.l.b16 %v2240
          %v2316 = vunpack.c.l.b16 %v2241
          %v2317 = vunpack.c.h.b16 %v2241
          %v2318 = vunpack.c.l.b16 %v2242
          %v2319 = vunpack.c.l.b16 %v2243
          %v2320 = vunpack.c.h.b16 %v2243
          %v2321 = vunpack.c.l.b16 %v2244
          %v2322 = vunpack.c.l.b16 %v2245
          %v2323 = vunpack.c.h.b16 %v2245
          %v2324 = vunpack.c.l.b16 %v2246
          %v2325 = vunpack.c.l.b16 %v2247
          %v2326 = vunpack.c.h.b16 %v2247
          %v2327 = vunpack.c.l.b16 %v2248
          %v2328 = vunpack.c.l.b16 %v2249
          %v2329 = vunpack.c.h.b16 %v2249
          %v2330 = vunpack.c.l.b16 %v2250
          %v2331 = vunpack.c.l.b16 %v2251
          %v2332 = vunpack.c.h.b16 %v2251
          %v2333 = vunpack.c.l.b16 %v2252
          %v2334 = vunpack.c.l.b16 %v2253
          %v2335 = vunpack.c.h.b16 %v2253
          %v2336 = vunpack.c.l.b16 %v2254
          %v2337 = vunpack.c.l.b16 %v2255
          %v2338 = vunpack.c.h.b16 %v2255
          %v2339 = vunpack.c.l.b16 %v2256
          %v2340 = vpack.c.b16 %v2295, %v2292
          %v2341 = vpack.c.b16 %v2296, %v2293
          %v2342 = vpack.c.b16 %v2297, %v2294
          %v2343 = vpack.c.b16 %v2301, %v2298
          %v2344 = vpack.c.b16 %v2302, %v2299
          %v2345 = vpack.c.b16 %v2303, %v2300
          %v2346 = vpack.c.b16 %v2307, %v2304
          %v2347 = vpack.c.b16 %v2308, %v2305
          %v2348 = vpack.c.b16 %v2309, %v2306
          %v2349 = vpack.c.b16 %v2313, %v2310
          %v2350 = vpack.c.b16 %v2314, %v2311
          %v2351 = vpack.c.b16 %v2315, %v2312
          %v2352 = vpack.c.b16 %v2319, %v2316
          %v2353 = vpack.c.b16 %v2320, %v2317
          %v2354 = vpack.c.b16 %v2321, %v2318
          %v2355 = vpack.c.b16 %v2325, %v2322
          %v2356 = vpack.c.b16 %v2326, %v2323
          %v2357 = vpack.c.b16 %v2327, %v2324
          %v2358 = vpack.c.b16 %v2331, %v2328
          %v2359 = vpack.c.b16 %v2332, %v2329
          %v2360 = vpack.c.b16 %v2333, %v2330
          %v2361 = vpack.c.b16 %v2337, %v2334
          %v2362 = vpack.c.b16 %v2338, %v2335
          %v2363 = vpack.c.b16 %v2339, %v2336
          %2388 = vmatpush.bf16.msra.mxu0 %v2361
          %2389 = vmatpush.bf16.msra.mxu0 %v2358
          %2390 = vmatpush.bf16.msra.mxu0 %v2355
          %2391 = vmatpush.bf16.msra.mxu0 %v2352
          %2392 = vmatpush.bf16.msra.mxu0 %v2349
          %2393 = vmatpush.bf16.msra.mxu0 %v2346
          %2394 = vmatpush.bf16.msra.mxu0 %v2343
          %2395 = vmatpush.bf16.msra.mxu0 %v2340
          %2396 = vmatmul.bf16.gmra.mxu0 %v2258
          %v2397 = vpop.f32.mrf.mxu0
          %v2398 = vadd.f32 0.0, %v2397
          %v2399 = vpop.f32.mrf.mxu0
          %2400 = vdwg.mxu0
          %2401 = vmatpush.bf16.msra.mxu0 %v2362
          %2402 = vmatpush.bf16.msra.mxu0 %v2359
          %2403 = vmatpush.bf16.msra.mxu0 %v2356
          %2404 = vmatpush.bf16.msra.mxu0 %v2353
          %2405 = vmatpush.bf16.msra.mxu0 %v2350
          %2406 = vmatpush.bf16.msra.mxu0 %v2347
          %2407 = vmatpush.bf16.msra.mxu0 %v2344
          %2408 = vmatpush.bf16.msra.mxu0 %v2341
          %2409 = vmatmul.bf16.gmra.mxu0 %v2258
          %v2410 = vpop.f32.mrf.mxu0
          %v2411 = vadd.f32 0.0, %v2410
          %v2412 = vpop.f32.mrf.mxu0
          %2413 = vdwg.mxu0
          %2414 = vmatpush.bf16.msra.mxu0 %v2363
          %2415 = vmatpush.bf16.msra.mxu0 %v2360
          %2416 = vmatpush.bf16.msra.mxu0 %v2357
          %2417 = vmatpush.bf16.msra.mxu0 %v2354
          %2418 = vmatpush.bf16.msra.mxu0 %v2351
          %2419 = vmatpush.bf16.msra.mxu0 %v2348
          %2420 = vmatpush.bf16.msra.mxu0 %v2345
          %2421 = vmatpush.bf16.msra.mxu0 %v2342
          %2422 = vmatmul.bf16.gmra.mxu0 %v2258
          %v2423 = vpop.f32.mrf.mxu0
          %v2424 = vadd.f32 0.0, %v2423
          %v2425 = vpop.f32.mrf.mxu0
          %2426 = vdwg.mxu0
          %v2428 = vrot.slane %v2398, 2
          %v2430 = vadd.f32 %v2221, %v2428
          %v2431 = vxor.u32 %v2430, 2147483648
          %v2432 = vmul.f32 %v2431, 1.442695
          %v2433 = vpow.pop %v2432
          %v2434 = vadd.f32 %v2433, 1.0
          %v2435 = vrcp.pop %v2434
          %v2436 = vmul.f32 %v2434, %v2435
          %v2437 = vsub.f32 1.0, %v2436
          %v2438 = vmul.f32 %v2435, %v2437
          %v2439 = vadd.f32 %v2435, %v2438
          %vm2440 = vweird.f32 %v2434
          %vm2441 = vweird.f32 %v2435
          %vm2442 = vmor %vm2440, %vm2441
          %v2443 = vsel %vm2442, %v2435, %v2439
          %v2444 = vand.u32 2147483647, %v2434
          %vm2445 = vcmp.eq.f32.partialorder %v2444, 8.507059e+37
          %v2446 = vand.u32 %v2434, 2147483648
          %v2447 = vor.u32 1.1754944e-38, %v2446
          %v2448 = vsel %vm2445, %v2447, %v2443
          %v2449 = vmul.f32 1.0, %v2448
          %v2451 = vrot.slane %v2411, 2
          %v2453 = vadd.f32 %v2222, %v2451
          %v2454 = vxor.u32 %v2453, 2147483648
          %v2455 = vmul.f32 %v2454, 1.442695
          %v2456 = vpow.pop %v2455
          %v2457 = vadd.f32 %v2456, 1.0
          %v2458 = vrcp.pop %v2457
          %v2459 = vmul.f32 %v2457, %v2458
          %v2460 = vsub.f32 1.0, %v2459
          %v2461 = vmul.f32 %v2458, %v2460
          %v2462 = vadd.f32 %v2458, %v2461
          %vm2463 = vweird.f32 %v2457
          %vm2464 = vweird.f32 %v2458
          %vm2465 = vmor %vm2463, %vm2464
          %v2466 = vsel %vm2465, %v2458, %v2462
          %v2467 = vand.u32 2147483647, %v2457
          %vm2468 = vcmp.eq.f32.partialorder %v2467, 8.507059e+37
          %v2469 = vand.u32 %v2457, 2147483648
          %v2470 = vor.u32 1.1754944e-38, %v2469
          %v2471 = vsel %vm2468, %v2470, %v2466
          %v2472 = vmul.f32 1.0, %v2471
          %v2473 = vadd.f32 %v2424, %v359
          %v2475 = vrot.slane %v2473, 2
          %v2477 = vmul.f32 %v2449, %v2475
          %v2478 = vadd.f32 %v2223, %v2477
          %v2479 = vtanh.pop %v2478
          %v2480 = vsub.f32 1.0, %v2472
          %v2481 = vmul.f32 %v2480, %v2479
          %v2483 = vrot.slane %v2217, 6
          %v2485 = vmul.f32 %v2472, %v2483
          %v2486 = vadd.f32 %v2481, %v2485
          %2487 = vst [vmem:[%s334 + $0x8] sm:$0xc0] %v2486
          %2488 = vst [vmem:[#allocation2 - $0x6] sm:$0xc0] %v2486
        $region52: #{tpu_custom_call.1} parent=31 // pred_fallthru
          _
        %p2489 = scmp.eq.s32.totalorder %s32, 1
        // Predicated region
        $region53: #{tpu_custom_call.1} parent=31 // pred_check
          %p2490 = pneg %p2489
        $region54: #{tpu_custom_call.1} parent=31 // pred_check_branch
          %2492 = sbr.rel (%p2490) target = $region56
        $region55: #{tpu_custom_call.1} parent=31 // pred_region
          %v2493 = vld [vmem:[#allocation2] sm:$0x3]
          %v2494 = vld [vmem:[%s283 + $0xc] sm:$0x88]
          %v2495 = vld [vmem:[%s283 + $0x14] sm:$0x8]
          %v2496 = vunpack.c.l.bf16 %v2494
          %v2497 = vunpack.c.h.bf16 %v2494
          %v2498 = vunpack.c.l.bf16 %v2495
          %v2499 = vpack.c.bf16 %v2493, %v2493
          %v2500 = vld [vmem:[%s293] sm:$0xff]
          %v2501 = vld [vmem:[%s293 + $0x8] sm:$0xf]
          %v2502 = vld [vmem:[%s293 + $0xc] sm:$0xff]
          %v2503 = vld [vmem:[%s293 + $0x14] sm:$0xf]
          %v2504 = vld [vmem:[%s293 + $0x18] sm:$0xff]
          %v2505 = vld [vmem:[%s293 + $0x20] sm:$0xf]
          %v2506 = vld [vmem:[%s293 + $0x24] sm:$0xff]
          %v2507 = vld [vmem:[%s293 + $0x2c] sm:$0xf]
          %v2508 = vld [vmem:[%s293 + $0x30] sm:$0xff]
          %v2509 = vld [vmem:[%s293 + $0x38] sm:$0xf]
          %v2510 = vld [vmem:[%s293 + $0x3c] sm:$0xff]
          %v2511 = vld [vmem:[%s293 + $0x44] sm:$0xf]
          %v2512 = vld [vmem:[%s293 + $0x48] sm:$0xff]
          %v2513 = vld [vmem:[%s293 + $0x50] sm:$0xf]
          %v2514 = vld [vmem:[%s293 + $0x54] sm:$0xff]
          %v2515 = vld [vmem:[%s293 + $0x5c] sm:$0xf]
          %v2516 = vld [vmem:[%s293 + $0x60] sm:$0xff]
          %v2517 = vld [vmem:[%s293 + $0x68] sm:$0xf]
          %v2518 = vld [vmem:[%s293 + $0x6c] sm:$0xff]
          %v2519 = vld [vmem:[%s293 + $0x74] sm:$0xf]
          %v2520 = vld [vmem:[%s293 + $0x78] sm:$0xff]
          %v2521 = vld [vmem:[%s293 + $0x80] sm:$0xf]
          %v2522 = vld [vmem:[%s293 + $0x84] sm:$0xff]
          %v2523 = vld [vmem:[%s293 + $0x8c] sm:$0xf]
          %v2524 = vld [vmem:[%s293 + $0x90] sm:$0xff]
          %v2525 = vld [vmem:[%s293 + $0x98] sm:$0xf]
          %v2526 = vld [vmem:[%s293 + $0x9c] sm:$0xff]
          %v2527 = vld [vmem:[%s293 + $0xa4] sm:$0xf]
          %v2528 = vld [vmem:[%s293 + $0xa8] sm:$0xff]
          %v2529 = vld [vmem:[%s293 + $0xb0] sm:$0xf]
          %v2530 = vld [vmem:[%s293 + $0xb4] sm:$0xff]
          %v2531 = vld [vmem:[%s293 + $0xbc] sm:$0xf]
          %v2564 = vunpack.c.l.b16 %v2500
          %v2565 = vunpack.c.h.b16 %v2500
          %v2566 = vunpack.c.l.b16 %v2501
          %v2567 = vunpack.c.l.b16 %v2502
          %v2568 = vunpack.c.h.b16 %v2502
          %v2569 = vunpack.c.l.b16 %v2503
          %v2570 = vunpack.c.l.b16 %v2504
          %v2571 = vunpack.c.h.b16 %v2504
          %v2572 = vunpack.c.l.b16 %v2505
          %v2573 = vunpack.c.l.b16 %v2506
          %v2574 = vunpack.c.h.b16 %v2506
          %v2575 = vunpack.c.l.b16 %v2507
          %v2576 = vunpack.c.l.b16 %v2508
          %v2577 = vunpack.c.h.b16 %v2508
          %v2578 = vunpack.c.l.b16 %v2509
          %v2579 = vunpack.c.l.b16 %v2510
          %v2580 = vunpack.c.h.b16 %v2510
          %v2581 = vunpack.c.l.b16 %v2511
          %v2582 = vunpack.c.l.b16 %v2512
          %v2583 = vunpack.c.h.b16 %v2512
          %v2584 = vunpack.c.l.b16 %v2513
          %v2585 = vunpack.c.l.b16 %v2514
          %v2586 = vunpack.c.h.b16 %v2514
          %v2587 = vunpack.c.l.b16 %v2515
          %v2588 = vunpack.c.l.b16 %v2516
          %v2589 = vunpack.c.h.b16 %v2516
          %v2590 = vunpack.c.l.b16 %v2517
          %v2591 = vunpack.c.l.b16 %v2518
          %v2592 = vunpack.c.h.b16 %v2518
          %v2593 = vunpack.c.l.b16 %v2519
          %v2594 = vunpack.c.l.b16 %v2520
          %v2595 = vunpack.c.h.b16 %v2520
          %v2596 = vunpack.c.l.b16 %v2521
          %v2597 = vunpack.c.l.b16 %v2522
          %v2598 = vunpack.c.h.b16 %v2522
          %v2599 = vunpack.c.l.b16 %v2523
          %v2600 = vunpack.c.l.b16 %v2524
          %v2601 = vunpack.c.h.b16 %v2524
          %v2602 = vunpack.c.l.b16 %v2525
          %v2603 = vunpack.c.l.b16 %v2526
          %v2604 = vunpack.c.h.b16 %v2526
          %v2605 = vunpack.c.l.b16 %v2527
          %v2606 = vunpack.c.l.b16 %v2528
          %v2607 = vunpack.c.h.b16 %v2528
          %v2608 = vunpack.c.l.b16 %v2529
          %v2609 = vunpack.c.l.b16 %v2530
          %v2610 = vunpack.c.h.b16 %v2530
          %v2611 = vunpack.c.l.b16 %v2531
          %v2612 = vpack.c.b16 %v2567, %v2564
          %v2613 = vpack.c.b16 %v2568, %v2565
          %v2614 = vpack.c.b16 %v2569, %v2566
          %v2615 = vpack.c.b16 %v2573, %v2570
          %v2616 = vpack.c.b16 %v2574, %v2571
          %v2617 = vpack.c.b16 %v2575, %v2572
          %v2618 = vpack.c.b16 %v2579, %v2576
          %v2619 = vpack.c.b16 %v2580, %v2577
          %v2620 = vpack.c.b16 %v2581, %v2578
          %v2621 = vpack.c.b16 %v2585, %v2582
          %v2622 = vpack.c.b16 %v2586, %v2583
          %v2623 = vpack.c.b16 %v2587, %v2584
          %v2624 = vpack.c.b16 %v2591, %v2588
          %v2625 = vpack.c.b16 %v2592, %v2589
          %v2626 = vpack.c.b16 %v2593, %v2590
          %v2627 = vpack.c.b16 %v2597, %v2594
          %v2628 = vpack.c.b16 %v2598, %v2595
          %v2629 = vpack.c.b16 %v2599, %v2596
          %v2630 = vpack.c.b16 %v2603, %v2600
          %v2631 = vpack.c.b16 %v2604, %v2601
          %v2632 = vpack.c.b16 %v2605, %v2602
          %v2633 = vpack.c.b16 %v2609, %v2606
          %v2634 = vpack.c.b16 %v2610, %v2607
          %v2635 = vpack.c.b16 %v2611, %v2608
          %2660 = vmatpush.bf16.msra.mxu0 %v2633
          %2661 = vmatpush.bf16.msra.mxu0 %v2630
          %2662 = vmatpush.bf16.msra.mxu0 %v2627
          %2663 = vmatpush.bf16.msra.mxu0 %v2624
          %2664 = vmatpush.bf16.msra.mxu0 %v2621
          %2665 = vmatpush.bf16.msra.mxu0 %v2618
          %2666 = vmatpush.bf16.msra.mxu0 %v2615
          %2667 = vmatpush.bf16.msra.mxu0 %v2612
          %2668 = vmatmul.bf16.gmra.mxu0 %v2499
          %v2669 = vpop.f32.mrf.mxu0
          %v2670 = vadd.f32 0.0, %v2669
          %v2671 = vpop.f32.mrf.mxu0
          %2672 = vdwg.mxu0
          %2673 = vmatpush.bf16.msra.mxu0 %v2634
          %2674 = vmatpush.bf16.msra.mxu0 %v2631
          %2675 = vmatpush.bf16.msra.mxu0 %v2628
          %2676 = vmatpush.bf16.msra.mxu0 %v2625
          %2677 = vmatpush.bf16.msra.mxu0 %v2622
          %2678 = vmatpush.bf16.msra.mxu0 %v2619
          %2679 = vmatpush.bf16.msra.mxu0 %v2616
          %2680 = vmatpush.bf16.msra.mxu0 %v2613
          %2681 = vmatmul.bf16.gmra.mxu0 %v2499
          %v2682 = vpop.f32.mrf.mxu0
          %v2683 = vadd.f32 0.0, %v2682
          %v2684 = vpop.f32.mrf.mxu0
          %2685 = vdwg.mxu0
          %2686 = vmatpush.bf16.msra.mxu0 %v2635
          %2687 = vmatpush.bf16.msra.mxu0 %v2632
          %2688 = vmatpush.bf16.msra.mxu0 %v2629
          %2689 = vmatpush.bf16.msra.mxu0 %v2626
          %2690 = vmatpush.bf16.msra.mxu0 %v2623
          %2691 = vmatpush.bf16.msra.mxu0 %v2620
          %2692 = vmatpush.bf16.msra.mxu0 %v2617
          %2693 = vmatpush.bf16.msra.mxu0 %v2614
          %2694 = vmatmul.bf16.gmra.mxu0 %v2499
          %v2695 = vpop.f32.mrf.mxu0
          %v2696 = vadd.f32 0.0, %v2695
          %v2697 = vpop.f32.mrf.mxu0
          %2698 = vdwg.mxu0
          %v2700 = vrot.slane %v2670, 2
          %v2702 = vadd.f32 %v2496, %v2700
          %v2703 = vxor.u32 %v2702, 2147483648
          %v2704 = vmul.f32 %v2703, 1.442695
          %v2705 = vpow.pop %v2704
          %v2706 = vadd.f32 %v2705, 1.0
          %v2707 = vrcp.pop %v2706
          %v2708 = vmul.f32 %v2706, %v2707
          %v2709 = vsub.f32 1.0, %v2708
          %v2710 = vmul.f32 %v2707, %v2709
          %v2711 = vadd.f32 %v2707, %v2710
          %vm2712 = vweird.f32 %v2706
          %vm2713 = vweird.f32 %v2707
          %vm2714 = vmor %vm2712, %vm2713
          %v2715 = vsel %vm2714, %v2707, %v2711
          %v2716 = vand.u32 2147483647, %v2706
          %vm2717 = vcmp.eq.f32.partialorder %v2716, 8.507059e+37
          %v2718 = vand.u32 %v2706, 2147483648
          %v2719 = vor.u32 1.1754944e-38, %v2718
          %v2720 = vsel %vm2717, %v2719, %v2715
          %v2721 = vmul.f32 1.0, %v2720
          %v2723 = vrot.slane %v2683, 2
          %v2725 = vadd.f32 %v2497, %v2723
          %v2726 = vxor.u32 %v2725, 2147483648
          %v2727 = vmul.f32 %v2726, 1.442695
          %v2728 = vpow.pop %v2727
          %v2729 = vadd.f32 %v2728, 1.0
          %v2730 = vrcp.pop %v2729
          %v2731 = vmul.f32 %v2729, %v2730
          %v2732 = vsub.f32 1.0, %v2731
          %v2733 = vmul.f32 %v2730, %v2732
          %v2734 = vadd.f32 %v2730, %v2733
          %vm2735 = vweird.f32 %v2729
          %vm2736 = vweird.f32 %v2730
          %vm2737 = vmor %vm2735, %vm2736
          %v2738 = vsel %vm2737, %v2730, %v2734
          %v2739 = vand.u32 2147483647, %v2729
          %vm2740 = vcmp.eq.f32.partialorder %v2739, 8.507059e+37
          %v2741 = vand.u32 %v2729, 2147483648
          %v2742 = vor.u32 1.1754944e-38, %v2741
          %v2743 = vsel %vm2740, %v2742, %v2738
          %v2744 = vmul.f32 1.0, %v2743
          %v2745 = vadd.f32 %v2696, %v359
          %v2747 = vrot.slane %v2745, 2
          %v2749 = vmul.f32 %v2721, %v2747
          %v2750 = vadd.f32 %v2498, %v2749
          %v2751 = vtanh.pop %v2750
          %v2752 = vsub.f32 1.0, %v2744
          %v2753 = vmul.f32 %v2752, %v2751
          %v2755 = vrot.slane %v2493, 2
          %v2757 = vmul.f32 %v2744, %v2755
          %v2758 = vadd.f32 %v2753, %v2757
          %2759 = vst [vmem:[%s334 + $0x8] sm:$0xc0] %v2758
          %v2760 = vld [vmem:[%s283 + $0xc] sm:$0x44]
          %v2761 = vld [vmem:[%s283 + $0x14] sm:$0x4]
          %v2762 = vunpack.c.l.bf16 %v2760
          %v2763 = vunpack.c.h.bf16 %v2760
          %v2764 = vunpack.c.l.bf16 %v2761
          %v2765 = vpack.c.bf16 %v2758, %v2758
          %v2766 = vld [vmem:[%s293] sm:$0xff]
          %v2767 = vld [vmem:[%s293 + $0x8] sm:$0xf]
          %v2768 = vld [vmem:[%s293 + $0xc] sm:$0xff]
          %v2769 = vld [vmem:[%s293 + $0x14] sm:$0xf]
          %v2770 = vld [vmem:[%s293 + $0x18] sm:$0xff]
          %v2771 = vld [vmem:[%s293 + $0x20] sm:$0xf]
          %v2772 = vld [vmem:[%s293 + $0x24] sm:$0xff]
          %v2773 = vld [vmem:[%s293 + $0x2c] sm:$0xf]
          %v2774 = vld [vmem:[%s293 + $0x30] sm:$0xff]
          %v2775 = vld [vmem:[%s293 + $0x38] sm:$0xf]
          %v2776 = vld [vmem:[%s293 + $0x3c] sm:$0xff]
          %v2777 = vld [vmem:[%s293 + $0x44] sm:$0xf]
          %v2778 = vld [vmem:[%s293 + $0x48] sm:$0xff]
          %v2779 = vld [vmem:[%s293 + $0x50] sm:$0xf]
          %v2780 = vld [vmem:[%s293 + $0x54] sm:$0xff]
          %v2781 = vld [vmem:[%s293 + $0x5c] sm:$0xf]
          %v2782 = vld [vmem:[%s293 + $0x60] sm:$0xff]
          %v2783 = vld [vmem:[%s293 + $0x68] sm:$0xf]
          %v2784 = vld [vmem:[%s293 + $0x6c] sm:$0xff]
          %v2785 = vld [vmem:[%s293 + $0x74] sm:$0xf]
          %v2786 = vld [vmem:[%s293 + $0x78] sm:$0xff]
          %v2787 = vld [vmem:[%s293 + $0x80] sm:$0xf]
          %v2788 = vld [vmem:[%s293 + $0x84] sm:$0xff]
          %v2789 = vld [vmem:[%s293 + $0x8c] sm:$0xf]
          %v2790 = vld [vmem:[%s293 + $0x90] sm:$0xff]
          %v2791 = vld [vmem:[%s293 + $0x98] sm:$0xf]
          %v2792 = vld [vmem:[%s293 + $0x9c] sm:$0xff]
          %v2793 = vld [vmem:[%s293 + $0xa4] sm:$0xf]
          %v2794 = vld [vmem:[%s293 + $0xa8] sm:$0xff]
          %v2795 = vld [vmem:[%s293 + $0xb0] sm:$0xf]
          %v2796 = vld [vmem:[%s293 + $0xb4] sm:$0xff]
          %v2797 = vld [vmem:[%s293 + $0xbc] sm:$0xf]
          %v2799 = vrot.slane %v2765, 3
          %v2833 = vunpack.c.l.b16 %v2766
          %v2834 = vunpack.c.h.b16 %v2766
          %v2835 = vunpack.c.l.b16 %v2767
          %v2836 = vunpack.c.l.b16 %v2768
          %v2837 = vunpack.c.h.b16 %v2768
          %v2838 = vunpack.c.l.b16 %v2769
          %v2839 = vunpack.c.l.b16 %v2770
          %v2840 = vunpack.c.h.b16 %v2770
          %v2841 = vunpack.c.l.b16 %v2771
          %v2842 = vunpack.c.l.b16 %v2772
          %v2843 = vunpack.c.h.b16 %v2772
          %v2844 = vunpack.c.l.b16 %v2773
          %v2845 = vunpack.c.l.b16 %v2774
          %v2846 = vunpack.c.h.b16 %v2774
          %v2847 = vunpack.c.l.b16 %v2775
          %v2848 = vunpack.c.l.b16 %v2776
          %v2849 = vunpack.c.h.b16 %v2776
          %v2850 = vunpack.c.l.b16 %v2777
          %v2851 = vunpack.c.l.b16 %v2778
          %v2852 = vunpack.c.h.b16 %v2778
          %v2853 = vunpack.c.l.b16 %v2779
          %v2854 = vunpack.c.l.b16 %v2780
          %v2855 = vunpack.c.h.b16 %v2780
          %v2856 = vunpack.c.l.b16 %v2781
          %v2857 = vunpack.c.l.b16 %v2782
          %v2858 = vunpack.c.h.b16 %v2782
          %v2859 = vunpack.c.l.b16 %v2783
          %v2860 = vunpack.c.l.b16 %v2784
          %v2861 = vunpack.c.h.b16 %v2784
          %v2862 = vunpack.c.l.b16 %v2785
          %v2863 = vunpack.c.l.b16 %v2786
          %v2864 = vunpack.c.h.b16 %v2786
          %v2865 = vunpack.c.l.b16 %v2787
          %v2866 = vunpack.c.l.b16 %v2788
          %v2867 = vunpack.c.h.b16 %v2788
          %v2868 = vunpack.c.l.b16 %v2789
          %v2869 = vunpack.c.l.b16 %v2790
          %v2870 = vunpack.c.h.b16 %v2790
          %v2871 = vunpack.c.l.b16 %v2791
          %v2872 = vunpack.c.l.b16 %v2792
          %v2873 = vunpack.c.h.b16 %v2792
          %v2874 = vunpack.c.l.b16 %v2793
          %v2875 = vunpack.c.l.b16 %v2794
          %v2876 = vunpack.c.h.b16 %v2794
          %v2877 = vunpack.c.l.b16 %v2795
          %v2878 = vunpack.c.l.b16 %v2796
          %v2879 = vunpack.c.h.b16 %v2796
          %v2880 = vunpack.c.l.b16 %v2797
          %v2881 = vpack.c.b16 %v2836, %v2833
          %v2882 = vpack.c.b16 %v2837, %v2834
          %v2883 = vpack.c.b16 %v2838, %v2835
          %v2884 = vpack.c.b16 %v2842, %v2839
          %v2885 = vpack.c.b16 %v2843, %v2840
          %v2886 = vpack.c.b16 %v2844, %v2841
          %v2887 = vpack.c.b16 %v2848, %v2845
          %v2888 = vpack.c.b16 %v2849, %v2846
          %v2889 = vpack.c.b16 %v2850, %v2847
          %v2890 = vpack.c.b16 %v2854, %v2851
          %v2891 = vpack.c.b16 %v2855, %v2852
          %v2892 = vpack.c.b16 %v2856, %v2853
          %v2893 = vpack.c.b16 %v2860, %v2857
          %v2894 = vpack.c.b16 %v2861, %v2858
          %v2895 = vpack.c.b16 %v2862, %v2859
          %v2896 = vpack.c.b16 %v2866, %v2863
          %v2897 = vpack.c.b16 %v2867, %v2864
          %v2898 = vpack.c.b16 %v2868, %v2865
          %v2899 = vpack.c.b16 %v2872, %v2869
          %v2900 = vpack.c.b16 %v2873, %v2870
          %v2901 = vpack.c.b16 %v2874, %v2871
          %v2902 = vpack.c.b16 %v2878, %v2875
          %v2903 = vpack.c.b16 %v2879, %v2876
          %v2904 = vpack.c.b16 %v2880, %v2877
          %2929 = vmatpush.bf16.msra.mxu0 %v2902
          %2930 = vmatpush.bf16.msra.mxu0 %v2899
          %2931 = vmatpush.bf16.msra.mxu0 %v2896
          %2932 = vmatpush.bf16.msra.mxu0 %v2893
          %2933 = vmatpush.bf16.msra.mxu0 %v2890
          %2934 = vmatpush.bf16.msra.mxu0 %v2887
          %2935 = vmatpush.bf16.msra.mxu0 %v2884
          %2936 = vmatpush.bf16.msra.mxu0 %v2881
          %2937 = vmatmul.bf16.gmra.mxu0 %v2799
          %v2938 = vpop.f32.mrf.mxu0
          %v2939 = vadd.f32 0.0, %v2938
          %v2940 = vpop.f32.mrf.mxu0
          %2941 = vdwg.mxu0
          %2942 = vmatpush.bf16.msra.mxu0 %v2903
          %2943 = vmatpush.bf16.msra.mxu0 %v2900
          %2944 = vmatpush.bf16.msra.mxu0 %v2897
          %2945 = vmatpush.bf16.msra.mxu0 %v2894
          %2946 = vmatpush.bf16.msra.mxu0 %v2891
          %2947 = vmatpush.bf16.msra.mxu0 %v2888
          %2948 = vmatpush.bf16.msra.mxu0 %v2885
          %2949 = vmatpush.bf16.msra.mxu0 %v2882
          %2950 = vmatmul.bf16.gmra.mxu0 %v2799
          %v2951 = vpop.f32.mrf.mxu0
          %v2952 = vadd.f32 0.0, %v2951
          %v2953 = vpop.f32.mrf.mxu0
          %2954 = vdwg.mxu0
          %2955 = vmatpush.bf16.msra.mxu0 %v2904
          %2956 = vmatpush.bf16.msra.mxu0 %v2901
          %2957 = vmatpush.bf16.msra.mxu0 %v2898
          %2958 = vmatpush.bf16.msra.mxu0 %v2895
          %2959 = vmatpush.bf16.msra.mxu0 %v2892
          %2960 = vmatpush.bf16.msra.mxu0 %v2889
          %2961 = vmatpush.bf16.msra.mxu0 %v2886
          %2962 = vmatpush.bf16.msra.mxu0 %v2883
          %2963 = vmatmul.bf16.gmra.mxu0 %v2799
          %v2964 = vpop.f32.mrf.mxu0
          %v2965 = vadd.f32 0.0, %v2964
          %v2966 = vpop.f32.mrf.mxu0
          %2967 = vdwg.mxu0
          %v2969 = vrot.slane %v2939, 4
          %v2971 = vadd.f32 %v2762, %v2969
          %v2972 = vxor.u32 %v2971, 2147483648
          %v2973 = vmul.f32 %v2972, 1.442695
          %v2974 = vpow.pop %v2973
          %v2975 = vadd.f32 %v2974, 1.0
          %v2976 = vrcp.pop %v2975
          %v2977 = vmul.f32 %v2975, %v2976
          %v2978 = vsub.f32 1.0, %v2977
          %v2979 = vmul.f32 %v2976, %v2978
          %v2980 = vadd.f32 %v2976, %v2979
          %vm2981 = vweird.f32 %v2975
          %vm2982 = vweird.f32 %v2976
          %vm2983 = vmor %vm2981, %vm2982
          %v2984 = vsel %vm2983, %v2976, %v2980
          %v2985 = vand.u32 2147483647, %v2975
          %vm2986 = vcmp.eq.f32.partialorder %v2985, 8.507059e+37
          %v2987 = vand.u32 %v2975, 2147483648
          %v2988 = vor.u32 1.1754944e-38, %v2987
          %v2989 = vsel %vm2986, %v2988, %v2984
          %v2990 = vmul.f32 1.0, %v2989
          %v2992 = vrot.slane %v2952, 4
          %v2994 = vadd.f32 %v2763, %v2992
          %v2995 = vxor.u32 %v2994, 2147483648
          %v2996 = vmul.f32 %v2995, 1.442695
          %v2997 = vpow.pop %v2996
          %v2998 = vadd.f32 %v2997, 1.0
          %v2999 = vrcp.pop %v2998
          %v3000 = vmul.f32 %v2998, %v2999
          %v3001 = vsub.f32 1.0, %v3000
          %v3002 = vmul.f32 %v2999, %v3001
          %v3003 = vadd.f32 %v2999, %v3002
          %vm3004 = vweird.f32 %v2998
          %vm3005 = vweird.f32 %v2999
          %vm3006 = vmor %vm3004, %vm3005
          %v3007 = vsel %vm3006, %v2999, %v3003
          %v3008 = vand.u32 2147483647, %v2998
          %vm3009 = vcmp.eq.f32.partialorder %v3008, 8.507059e+37
          %v3010 = vand.u32 %v2998, 2147483648
          %v3011 = vor.u32 1.1754944e-38, %v3010
          %v3012 = vsel %vm3009, %v3011, %v3007
          %v3013 = vmul.f32 1.0, %v3012
          %v3014 = vadd.f32 %v2965, %v359
          %v3016 = vrot.slane %v3014, 4
          %v3018 = vmul.f32 %v2990, %v3016
          %v3019 = vadd.f32 %v2764, %v3018
          %v3020 = vtanh.pop %v3019
          %v3021 = vsub.f32 1.0, %v3013
          %v3022 = vmul.f32 %v3021, %v3020
          %v3024 = vrot.slane %v2758, 2
          %v3026 = vmul.f32 %v3013, %v3024
          %v3027 = vadd.f32 %v3022, %v3026
          %3028 = vst [vmem:[%s334 + $0x8] sm:$0x30] %v3027
          %v3029 = vld [vmem:[%s283 + $0xc] sm:$0x22]
          %v3030 = vld [vmem:[%s283 + $0x14] sm:$0x2]
          %v3031 = vunpack.c.l.bf16 %v3029
          %v3032 = vunpack.c.h.bf16 %v3029
          %v3033 = vunpack.c.l.bf16 %v3030
          %v3034 = vpack.c.bf16 %v3027, %v3027
          %v3035 = vld [vmem:[%s293] sm:$0xff]
          %v3036 = vld [vmem:[%s293 + $0x8] sm:$0xf]
          %v3037 = vld [vmem:[%s293 + $0xc] sm:$0xff]
          %v3038 = vld [vmem:[%s293 + $0x14] sm:$0xf]
          %v3039 = vld [vmem:[%s293 + $0x18] sm:$0xff]
          %v3040 = vld [vmem:[%s293 + $0x20] sm:$0xf]
          %v3041 = vld [vmem:[%s293 + $0x24] sm:$0xff]
          %v3042 = vld [vmem:[%s293 + $0x2c] sm:$0xf]
          %v3043 = vld [vmem:[%s293 + $0x30] sm:$0xff]
          %v3044 = vld [vmem:[%s293 + $0x38] sm:$0xf]
          %v3045 = vld [vmem:[%s293 + $0x3c] sm:$0xff]
          %v3046 = vld [vmem:[%s293 + $0x44] sm:$0xf]
          %v3047 = vld [vmem:[%s293 + $0x48] sm:$0xff]
          %v3048 = vld [vmem:[%s293 + $0x50] sm:$0xf]
          %v3049 = vld [vmem:[%s293 + $0x54] sm:$0xff]
          %v3050 = vld [vmem:[%s293 + $0x5c] sm:$0xf]
          %v3051 = vld [vmem:[%s293 + $0x60] sm:$0xff]
          %v3052 = vld [vmem:[%s293 + $0x68] sm:$0xf]
          %v3053 = vld [vmem:[%s293 + $0x6c] sm:$0xff]
          %v3054 = vld [vmem:[%s293 + $0x74] sm:$0xf]
          %v3055 = vld [vmem:[%s293 + $0x78] sm:$0xff]
          %v3056 = vld [vmem:[%s293 + $0x80] sm:$0xf]
          %v3057 = vld [vmem:[%s293 + $0x84] sm:$0xff]
          %v3058 = vld [vmem:[%s293 + $0x8c] sm:$0xf]
          %v3059 = vld [vmem:[%s293 + $0x90] sm:$0xff]
          %v3060 = vld [vmem:[%s293 + $0x98] sm:$0xf]
          %v3061 = vld [vmem:[%s293 + $0x9c] sm:$0xff]
          %v3062 = vld [vmem:[%s293 + $0xa4] sm:$0xf]
          %v3063 = vld [vmem:[%s293 + $0xa8] sm:$0xff]
          %v3064 = vld [vmem:[%s293 + $0xb0] sm:$0xf]
          %v3065 = vld [vmem:[%s293 + $0xb4] sm:$0xff]
          %v3066 = vld [vmem:[%s293 + $0xbc] sm:$0xf]
          %v3068 = vrot.slane %v3034, 2
          %v3102 = vunpack.c.l.b16 %v3035
          %v3103 = vunpack.c.h.b16 %v3035
          %v3104 = vunpack.c.l.b16 %v3036
          %v3105 = vunpack.c.l.b16 %v3037
          %v3106 = vunpack.c.h.b16 %v3037
          %v3107 = vunpack.c.l.b16 %v3038
          %v3108 = vunpack.c.l.b16 %v3039
          %v3109 = vunpack.c.h.b16 %v3039
          %v3110 = vunpack.c.l.b16 %v3040
          %v3111 = vunpack.c.l.b16 %v3041
          %v3112 = vunpack.c.h.b16 %v3041
          %v3113 = vunpack.c.l.b16 %v3042
          %v3114 = vunpack.c.l.b16 %v3043
          %v3115 = vunpack.c.h.b16 %v3043
          %v3116 = vunpack.c.l.b16 %v3044
          %v3117 = vunpack.c.l.b16 %v3045
          %v3118 = vunpack.c.h.b16 %v3045
          %v3119 = vunpack.c.l.b16 %v3046
          %v3120 = vunpack.c.l.b16 %v3047
          %v3121 = vunpack.c.h.b16 %v3047
          %v3122 = vunpack.c.l.b16 %v3048
          %v3123 = vunpack.c.l.b16 %v3049
          %v3124 = vunpack.c.h.b16 %v3049
          %v3125 = vunpack.c.l.b16 %v3050
          %v3126 = vunpack.c.l.b16 %v3051
          %v3127 = vunpack.c.h.b16 %v3051
          %v3128 = vunpack.c.l.b16 %v3052
          %v3129 = vunpack.c.l.b16 %v3053
          %v3130 = vunpack.c.h.b16 %v3053
          %v3131 = vunpack.c.l.b16 %v3054
          %v3132 = vunpack.c.l.b16 %v3055
          %v3133 = vunpack.c.h.b16 %v3055
          %v3134 = vunpack.c.l.b16 %v3056
          %v3135 = vunpack.c.l.b16 %v3057
          %v3136 = vunpack.c.h.b16 %v3057
          %v3137 = vunpack.c.l.b16 %v3058
          %v3138 = vunpack.c.l.b16 %v3059
          %v3139 = vunpack.c.h.b16 %v3059
          %v3140 = vunpack.c.l.b16 %v3060
          %v3141 = vunpack.c.l.b16 %v3061
          %v3142 = vunpack.c.h.b16 %v3061
          %v3143 = vunpack.c.l.b16 %v3062
          %v3144 = vunpack.c.l.b16 %v3063
          %v3145 = vunpack.c.h.b16 %v3063
          %v3146 = vunpack.c.l.b16 %v3064
          %v3147 = vunpack.c.l.b16 %v3065
          %v3148 = vunpack.c.h.b16 %v3065
          %v3149 = vunpack.c.l.b16 %v3066
          %v3150 = vpack.c.b16 %v3105, %v3102
          %v3151 = vpack.c.b16 %v3106, %v3103
          %v3152 = vpack.c.b16 %v3107, %v3104
          %v3153 = vpack.c.b16 %v3111, %v3108
          %v3154 = vpack.c.b16 %v3112, %v3109
          %v3155 = vpack.c.b16 %v3113, %v3110
          %v3156 = vpack.c.b16 %v3117, %v3114
          %v3157 = vpack.c.b16 %v3118, %v3115
          %v3158 = vpack.c.b16 %v3119, %v3116
          %v3159 = vpack.c.b16 %v3123, %v3120
          %v3160 = vpack.c.b16 %v3124, %v3121
          %v3161 = vpack.c.b16 %v3125, %v3122
          %v3162 = vpack.c.b16 %v3129, %v3126
          %v3163 = vpack.c.b16 %v3130, %v3127
          %v3164 = vpack.c.b16 %v3131, %v3128
          %v3165 = vpack.c.b16 %v3135, %v3132
          %v3166 = vpack.c.b16 %v3136, %v3133
          %v3167 = vpack.c.b16 %v3137, %v3134
          %v3168 = vpack.c.b16 %v3141, %v3138
          %v3169 = vpack.c.b16 %v3142, %v3139
          %v3170 = vpack.c.b16 %v3143, %v3140
          %v3171 = vpack.c.b16 %v3147, %v3144
          %v3172 = vpack.c.b16 %v3148, %v3145
          %v3173 = vpack.c.b16 %v3149, %v3146
          %3198 = vmatpush.bf16.msra.mxu0 %v3171
          %3199 = vmatpush.bf16.msra.mxu0 %v3168
          %3200 = vmatpush.bf16.msra.mxu0 %v3165
          %3201 = vmatpush.bf16.msra.mxu0 %v3162
          %3202 = vmatpush.bf16.msra.mxu0 %v3159
          %3203 = vmatpush.bf16.msra.mxu0 %v3156
          %3204 = vmatpush.bf16.msra.mxu0 %v3153
          %3205 = vmatpush.bf16.msra.mxu0 %v3150
          %3206 = vmatmul.bf16.gmra.mxu0 %v3068
          %v3207 = vpop.f32.mrf.mxu0
          %v3208 = vadd.f32 0.0, %v3207
          %v3209 = vpop.f32.mrf.mxu0
          %3210 = vdwg.mxu0
          %3211 = vmatpush.bf16.msra.mxu0 %v3172
          %3212 = vmatpush.bf16.msra.mxu0 %v3169
          %3213 = vmatpush.bf16.msra.mxu0 %v3166
          %3214 = vmatpush.bf16.msra.mxu0 %v3163
          %3215 = vmatpush.bf16.msra.mxu0 %v3160
          %3216 = vmatpush.bf16.msra.mxu0 %v3157
          %3217 = vmatpush.bf16.msra.mxu0 %v3154
          %3218 = vmatpush.bf16.msra.mxu0 %v3151
          %3219 = vmatmul.bf16.gmra.mxu0 %v3068
          %v3220 = vpop.f32.mrf.mxu0
          %v3221 = vadd.f32 0.0, %v3220
          %v3222 = vpop.f32.mrf.mxu0
          %3223 = vdwg.mxu0
          %3224 = vmatpush.bf16.msra.mxu0 %v3173
          %3225 = vmatpush.bf16.msra.mxu0 %v3170
          %3226 = vmatpush.bf16.msra.mxu0 %v3167
          %3227 = vmatpush.bf16.msra.mxu0 %v3164
          %3228 = vmatpush.bf16.msra.mxu0 %v3161
          %3229 = vmatpush.bf16.msra.mxu0 %v3158
          %3230 = vmatpush.bf16.msra.mxu0 %v3155
          %3231 = vmatpush.bf16.msra.mxu0 %v3152
          %3232 = vmatmul.bf16.gmra.mxu0 %v3068
          %v3233 = vpop.f32.mrf.mxu0
          %v3234 = vadd.f32 0.0, %v3233
          %v3235 = vpop.f32.mrf.mxu0
          %3236 = vdwg.mxu0
          %v3238 = vrot.slane %v3208, 6
          %v3240 = vadd.f32 %v3031, %v3238
          %v3241 = vxor.u32 %v3240, 2147483648
          %v3242 = vmul.f32 %v3241, 1.442695
          %v3243 = vpow.pop %v3242
          %v3244 = vadd.f32 %v3243, 1.0
          %v3245 = vrcp.pop %v3244
          %v3246 = vmul.f32 %v3244, %v3245
          %v3247 = vsub.f32 1.0, %v3246
          %v3248 = vmul.f32 %v3245, %v3247
          %v3249 = vadd.f32 %v3245, %v3248
          %vm3250 = vweird.f32 %v3244
          %vm3251 = vweird.f32 %v3245
          %vm3252 = vmor %vm3250, %vm3251
          %v3253 = vsel %vm3252, %v3245, %v3249
          %v3254 = vand.u32 2147483647, %v3244
          %vm3255 = vcmp.eq.f32.partialorder %v3254, 8.507059e+37
          %v3256 = vand.u32 %v3244, 2147483648
          %v3257 = vor.u32 1.1754944e-38, %v3256
          %v3258 = vsel %vm3255, %v3257, %v3253
          %v3259 = vmul.f32 1.0, %v3258
          %v3261 = vrot.slane %v3221, 6
          %v3263 = vadd.f32 %v3032, %v3261
          %v3264 = vxor.u32 %v3263, 2147483648
          %v3265 = vmul.f32 %v3264, 1.442695
          %v3266 = vpow.pop %v3265
          %v3267 = vadd.f32 %v3266, 1.0
          %v3268 = vrcp.pop %v3267
          %v3269 = vmul.f32 %v3267, %v3268
          %v3270 = vsub.f32 1.0, %v3269
          %v3271 = vmul.f32 %v3268, %v3270
          %v3272 = vadd.f32 %v3268, %v3271
          %vm3273 = vweird.f32 %v3267
          %vm3274 = vweird.f32 %v3268
          %vm3275 = vmor %vm3273, %vm3274
          %v3276 = vsel %vm3275, %v3268, %v3272
          %v3277 = vand.u32 2147483647, %v3267
          %vm3278 = vcmp.eq.f32.partialorder %v3277, 8.507059e+37
          %v3279 = vand.u32 %v3267, 2147483648
          %v3280 = vor.u32 1.1754944e-38, %v3279
          %v3281 = vsel %vm3278, %v3280, %v3276
          %v3282 = vmul.f32 1.0, %v3281
          %v3283 = vadd.f32 %v3234, %v359
          %v3285 = vrot.slane %v3283, 6
          %v3287 = vmul.f32 %v3259, %v3285
          %v3288 = vadd.f32 %v3033, %v3287
          %v3289 = vtanh.pop %v3288
          %v3290 = vsub.f32 1.0, %v3282
          %v3291 = vmul.f32 %v3290, %v3289
          %v3293 = vrot.slane %v3027, 2
          %v3295 = vmul.f32 %v3282, %v3293
          %v3296 = vadd.f32 %v3291, %v3295
          %3297 = vst [vmem:[%s334 + $0x8] sm:$0xc] %v3296
          %v3298 = vld [vmem:[%s283 + $0xc] sm:$0x11]
          %v3299 = vld [vmem:[%s283 + $0x14] sm:$0x1]
          %v3300 = vunpack.c.l.bf16 %v3298
          %v3301 = vunpack.c.h.bf16 %v3298
          %v3302 = vunpack.c.l.bf16 %v3299
          %v3303 = vpack.c.bf16 %v3296, %v3296
          %v3304 = vld [vmem:[%s293] sm:$0xff]
          %v3305 = vld [vmem:[%s293 + $0x8] sm:$0xf]
          %v3306 = vld [vmem:[%s293 + $0xc] sm:$0xff]
          %v3307 = vld [vmem:[%s293 + $0x14] sm:$0xf]
          %v3308 = vld [vmem:[%s293 + $0x18] sm:$0xff]
          %v3309 = vld [vmem:[%s293 + $0x20] sm:$0xf]
          %v3310 = vld [vmem:[%s293 + $0x24] sm:$0xff]
          %v3311 = vld [vmem:[%s293 + $0x2c] sm:$0xf]
          %v3312 = vld [vmem:[%s293 + $0x30] sm:$0xff]
          %v3313 = vld [vmem:[%s293 + $0x38] sm:$0xf]
          %v3314 = vld [vmem:[%s293 + $0x3c] sm:$0xff]
          %v3315 = vld [vmem:[%s293 + $0x44] sm:$0xf]
          %v3316 = vld [vmem:[%s293 + $0x48] sm:$0xff]
          %v3317 = vld [vmem:[%s293 + $0x50] sm:$0xf]
          %v3318 = vld [vmem:[%s293 + $0x54] sm:$0xff]
          %v3319 = vld [vmem:[%s293 + $0x5c] sm:$0xf]
          %v3320 = vld [vmem:[%s293 + $0x60] sm:$0xff]
          %v3321 = vld [vmem:[%s293 + $0x68] sm:$0xf]
          %v3322 = vld [vmem:[%s293 + $0x6c] sm:$0xff]
          %v3323 = vld [vmem:[%s293 + $0x74] sm:$0xf]
          %v3324 = vld [vmem:[%s293 + $0x78] sm:$0xff]
          %v3325 = vld [vmem:[%s293 + $0x80] sm:$0xf]
          %v3326 = vld [vmem:[%s293 + $0x84] sm:$0xff]
          %v3327 = vld [vmem:[%s293 + $0x8c] sm:$0xf]
          %v3328 = vld [vmem:[%s293 + $0x90] sm:$0xff]
          %v3329 = vld [vmem:[%s293 + $0x98] sm:$0xf]
          %v3330 = vld [vmem:[%s293 + $0x9c] sm:$0xff]
          %v3331 = vld [vmem:[%s293 + $0xa4] sm:$0xf]
          %v3332 = vld [vmem:[%s293 + $0xa8] sm:$0xff]
          %v3333 = vld [vmem:[%s293 + $0xb0] sm:$0xf]
          %v3334 = vld [vmem:[%s293 + $0xb4] sm:$0xff]
          %v3335 = vld [vmem:[%s293 + $0xbc] sm:$0xf]
          %v3337 = vrot.slane %v3303, 1
          %v3371 = vunpack.c.l.b16 %v3304
          %v3372 = vunpack.c.h.b16 %v3304
          %v3373 = vunpack.c.l.b16 %v3305
          %v3374 = vunpack.c.l.b16 %v3306
          %v3375 = vunpack.c.h.b16 %v3306
          %v3376 = vunpack.c.l.b16 %v3307
          %v3377 = vunpack.c.l.b16 %v3308
          %v3378 = vunpack.c.h.b16 %v3308
          %v3379 = vunpack.c.l.b16 %v3309
          %v3380 = vunpack.c.l.b16 %v3310
          %v3381 = vunpack.c.h.b16 %v3310
          %v3382 = vunpack.c.l.b16 %v3311
          %v3383 = vunpack.c.l.b16 %v3312
          %v3384 = vunpack.c.h.b16 %v3312
          %v3385 = vunpack.c.l.b16 %v3313
          %v3386 = vunpack.c.l.b16 %v3314
          %v3387 = vunpack.c.h.b16 %v3314
          %v3388 = vunpack.c.l.b16 %v3315
          %v3389 = vunpack.c.l.b16 %v3316
          %v3390 = vunpack.c.h.b16 %v3316
          %v3391 = vunpack.c.l.b16 %v3317
          %v3392 = vunpack.c.l.b16 %v3318
          %v3393 = vunpack.c.h.b16 %v3318
          %v3394 = vunpack.c.l.b16 %v3319
          %v3395 = vunpack.c.l.b16 %v3320
          %v3396 = vunpack.c.h.b16 %v3320
          %v3397 = vunpack.c.l.b16 %v3321
          %v3398 = vunpack.c.l.b16 %v3322
          %v3399 = vunpack.c.h.b16 %v3322
          %v3400 = vunpack.c.l.b16 %v3323
          %v3401 = vunpack.c.l.b16 %v3324
          %v3402 = vunpack.c.h.b16 %v3324
          %v3403 = vunpack.c.l.b16 %v3325
          %v3404 = vunpack.c.l.b16 %v3326
          %v3405 = vunpack.c.h.b16 %v3326
          %v3406 = vunpack.c.l.b16 %v3327
          %v3407 = vunpack.c.l.b16 %v3328
          %v3408 = vunpack.c.h.b16 %v3328
          %v3409 = vunpack.c.l.b16 %v3329
          %v3410 = vunpack.c.l.b16 %v3330
          %v3411 = vunpack.c.h.b16 %v3330
          %v3412 = vunpack.c.l.b16 %v3331
          %v3413 = vunpack.c.l.b16 %v3332
          %v3414 = vunpack.c.h.b16 %v3332
          %v3415 = vunpack.c.l.b16 %v3333
          %v3416 = vunpack.c.l.b16 %v3334
          %v3417 = vunpack.c.h.b16 %v3334
          %v3418 = vunpack.c.l.b16 %v3335
          %v3419 = vpack.c.b16 %v3374, %v3371
          %v3420 = vpack.c.b16 %v3375, %v3372
          %v3421 = vpack.c.b16 %v3376, %v3373
          %v3422 = vpack.c.b16 %v3380, %v3377
          %v3423 = vpack.c.b16 %v3381, %v3378
          %v3424 = vpack.c.b16 %v3382, %v3379
          %v3425 = vpack.c.b16 %v3386, %v3383
          %v3426 = vpack.c.b16 %v3387, %v3384
          %v3427 = vpack.c.b16 %v3388, %v3385
          %v3428 = vpack.c.b16 %v3392, %v3389
          %v3429 = vpack.c.b16 %v3393, %v3390
          %v3430 = vpack.c.b16 %v3394, %v3391
          %v3431 = vpack.c.b16 %v3398, %v3395
          %v3432 = vpack.c.b16 %v3399, %v3396
          %v3433 = vpack.c.b16 %v3400, %v3397
          %v3434 = vpack.c.b16 %v3404, %v3401
          %v3435 = vpack.c.b16 %v3405, %v3402
          %v3436 = vpack.c.b16 %v3406, %v3403
          %v3437 = vpack.c.b16 %v3410, %v3407
          %v3438 = vpack.c.b16 %v3411, %v3408
          %v3439 = vpack.c.b16 %v3412, %v3409
          %v3440 = vpack.c.b16 %v3416, %v3413
          %v3441 = vpack.c.b16 %v3417, %v3414
          %v3442 = vpack.c.b16 %v3418, %v3415
          %3467 = vmatpush.bf16.msra.mxu0 %v3440
          %3468 = vmatpush.bf16.msra.mxu0 %v3437
          %3469 = vmatpush.bf16.msra.mxu0 %v3434
          %3470 = vmatpush.bf16.msra.mxu0 %v3431
          %3471 = vmatpush.bf16.msra.mxu0 %v3428
          %3472 = vmatpush.bf16.msra.mxu0 %v3425
          %3473 = vmatpush.bf16.msra.mxu0 %v3422
          %3474 = vmatpush.bf16.msra.mxu0 %v3419
          %3475 = vmatmul.bf16.gmra.mxu0 %v3337
          %v3476 = vpop.f32.mrf.mxu0
          %v3477 = vadd.f32 0.0, %v3476
          %v3478 = vpop.f32.mrf.mxu0
          %3479 = vdwg.mxu0
          %3480 = vmatpush.bf16.msra.mxu0 %v3441
          %3481 = vmatpush.bf16.msra.mxu0 %v3438
          %3482 = vmatpush.bf16.msra.mxu0 %v3435
          %3483 = vmatpush.bf16.msra.mxu0 %v3432
          %3484 = vmatpush.bf16.msra.mxu0 %v3429
          %3485 = vmatpush.bf16.msra.mxu0 %v3426
          %3486 = vmatpush.bf16.msra.mxu0 %v3423
          %3487 = vmatpush.bf16.msra.mxu0 %v3420
          %3488 = vmatmul.bf16.gmra.mxu0 %v3337
          %v3489 = vpop.f32.mrf.mxu0
          %v3490 = vadd.f32 0.0, %v3489
          %v3491 = vpop.f32.mrf.mxu0
          %3492 = vdwg.mxu0
          %3493 = vmatpush.bf16.msra.mxu0 %v3442
          %3494 = vmatpush.bf16.msra.mxu0 %v3439
          %3495 = vmatpush.bf16.msra.mxu0 %v3436
          %3496 = vmatpush.bf16.msra.mxu0 %v3433
          %3497 = vmatpush.bf16.msra.mxu0 %v3430
          %3498 = vmatpush.bf16.msra.mxu0 %v3427
          %3499 = vmatpush.bf16.msra.mxu0 %v3424
          %3500 = vmatpush.bf16.msra.mxu0 %v3421
          %3501 = vmatmul.bf16.gmra.mxu0 %v3337
          %v3502 = vpop.f32.mrf.mxu0
          %v3503 = vadd.f32 0.0, %v3502
          %v3504 = vpop.f32.mrf.mxu0
          %3505 = vdwg.mxu0
          %v3506 = vadd.f32 %v3300, %v3477
          %v3507 = vxor.u32 %v3506, 2147483648
          %v3508 = vmul.f32 %v3507, 1.442695
          %v3509 = vpow.pop %v3508
          %v3510 = vadd.f32 %v3509, 1.0
          %v3511 = vrcp.pop %v3510
          %v3512 = vmul.f32 %v3510, %v3511
          %v3513 = vsub.f32 1.0, %v3512
          %v3514 = vmul.f32 %v3511, %v3513
          %v3515 = vadd.f32 %v3511, %v3514
          %vm3516 = vweird.f32 %v3510
          %vm3517 = vweird.f32 %v3511
          %vm3518 = vmor %vm3516, %vm3517
          %v3519 = vsel %vm3518, %v3511, %v3515
          %v3520 = vand.u32 2147483647, %v3510
          %vm3521 = vcmp.eq.f32.partialorder %v3520, 8.507059e+37
          %v3522 = vand.u32 %v3510, 2147483648
          %v3523 = vor.u32 1.1754944e-38, %v3522
          %v3524 = vsel %vm3521, %v3523, %v3519
          %v3525 = vmul.f32 1.0, %v3524
          %v3526 = vadd.f32 %v3301, %v3490
          %v3527 = vxor.u32 %v3526, 2147483648
          %v3528 = vmul.f32 %v3527, 1.442695
          %v3529 = vpow.pop %v3528
          %v3530 = vadd.f32 %v3529, 1.0
          %v3531 = vrcp.pop %v3530
          %v3532 = vmul.f32 %v3530, %v3531
          %v3533 = vsub.f32 1.0, %v3532
          %v3534 = vmul.f32 %v3531, %v3533
          %v3535 = vadd.f32 %v3531, %v3534
          %vm3536 = vweird.f32 %v3530
          %vm3537 = vweird.f32 %v3531
          %vm3538 = vmor %vm3536, %vm3537
          %v3539 = vsel %vm3538, %v3531, %v3535
          %v3540 = vand.u32 2147483647, %v3530
          %vm3541 = vcmp.eq.f32.partialorder %v3540, 8.507059e+37
          %v3542 = vand.u32 %v3530, 2147483648
          %v3543 = vor.u32 1.1754944e-38, %v3542
          %v3544 = vsel %vm3541, %v3543, %v3539
          %v3545 = vmul.f32 1.0, %v3544
          %v3546 = vadd.f32 %v3503, %v359
          %v3547 = vmul.f32 %v3525, %v3546
          %v3548 = vadd.f32 %v3302, %v3547
          %v3549 = vtanh.pop %v3548
          %v3550 = vsub.f32 1.0, %v3545
          %v3551 = vmul.f32 %v3550, %v3549
          %v3553 = vrot.slane %v3296, 2
          %v3555 = vmul.f32 %v3545, %v3553
          %v3556 = vadd.f32 %v3551, %v3555
          %3557 = vst [vmem:[%s334 + $0x8] sm:$0x3] %v3556
          %v3558 = vld [vmem:[%s283] sm:$0x88]
          %v3559 = vld [vmem:[%s283 + $0x8] sm:$0x8]
          %v3560 = vunpack.c.l.bf16 %v3558
          %v3561 = vunpack.c.h.bf16 %v3558
          %v3562 = vunpack.c.l.bf16 %v3559
          %v3563 = vpack.c.bf16 %v3556, %v3556
          %v3564 = vld [vmem:[%s293] sm:$0xff]
          %v3565 = vld [vmem:[%s293 + $0x8] sm:$0xf]
          %v3566 = vld [vmem:[%s293 + $0xc] sm:$0xff]
          %v3567 = vld [vmem:[%s293 + $0x14] sm:$0xf]
          %v3568 = vld [vmem:[%s293 + $0x18] sm:$0xff]
          %v3569 = vld [vmem:[%s293 + $0x20] sm:$0xf]
          %v3570 = vld [vmem:[%s293 + $0x24] sm:$0xff]
          %v3571 = vld [vmem:[%s293 + $0x2c] sm:$0xf]
          %v3572 = vld [vmem:[%s293 + $0x30] sm:$0xff]
          %v3573 = vld [vmem:[%s293 + $0x38] sm:$0xf]
          %v3574 = vld [vmem:[%s293 + $0x3c] sm:$0xff]
          %v3575 = vld [vmem:[%s293 + $0x44] sm:$0xf]
          %v3576 = vld [vmem:[%s293 + $0x48] sm:$0xff]
          %v3577 = vld [vmem:[%s293 + $0x50] sm:$0xf]
          %v3578 = vld [vmem:[%s293 + $0x54] sm:$0xff]
          %v3579 = vld [vmem:[%s293 + $0x5c] sm:$0xf]
          %v3580 = vld [vmem:[%s293 + $0x60] sm:$0xff]
          %v3581 = vld [vmem:[%s293 + $0x68] sm:$0xf]
          %v3582 = vld [vmem:[%s293 + $0x6c] sm:$0xff]
          %v3583 = vld [vmem:[%s293 + $0x74] sm:$0xf]
          %v3584 = vld [vmem:[%s293 + $0x78] sm:$0xff]
          %v3585 = vld [vmem:[%s293 + $0x80] sm:$0xf]
          %v3586 = vld [vmem:[%s293 + $0x84] sm:$0xff]
          %v3587 = vld [vmem:[%s293 + $0x8c] sm:$0xf]
          %v3588 = vld [vmem:[%s293 + $0x90] sm:$0xff]
          %v3589 = vld [vmem:[%s293 + $0x98] sm:$0xf]
          %v3590 = vld [vmem:[%s293 + $0x9c] sm:$0xff]
          %v3591 = vld [vmem:[%s293 + $0xa4] sm:$0xf]
          %v3592 = vld [vmem:[%s293 + $0xa8] sm:$0xff]
          %v3593 = vld [vmem:[%s293 + $0xb0] sm:$0xf]
          %v3594 = vld [vmem:[%s293 + $0xb4] sm:$0xff]
          %v3595 = vld [vmem:[%s293 + $0xbc] sm:$0xf]
          %v3628 = vunpack.c.l.b16 %v3564
          %v3629 = vunpack.c.h.b16 %v3564
          %v3630 = vunpack.c.l.b16 %v3565
          %v3631 = vunpack.c.l.b16 %v3566
          %v3632 = vunpack.c.h.b16 %v3566
          %v3633 = vunpack.c.l.b16 %v3567
          %v3634 = vunpack.c.l.b16 %v3568
          %v3635 = vunpack.c.h.b16 %v3568
          %v3636 = vunpack.c.l.b16 %v3569
          %v3637 = vunpack.c.l.b16 %v3570
          %v3638 = vunpack.c.h.b16 %v3570
          %v3639 = vunpack.c.l.b16 %v3571
          %v3640 = vunpack.c.l.b16 %v3572
          %v3641 = vunpack.c.h.b16 %v3572
          %v3642 = vunpack.c.l.b16 %v3573
          %v3643 = vunpack.c.l.b16 %v3574
          %v3644 = vunpack.c.h.b16 %v3574
          %v3645 = vunpack.c.l.b16 %v3575
          %v3646 = vunpack.c.l.b16 %v3576
          %v3647 = vunpack.c.h.b16 %v3576
          %v3648 = vunpack.c.l.b16 %v3577
          %v3649 = vunpack.c.l.b16 %v3578
          %v3650 = vunpack.c.h.b16 %v3578
          %v3651 = vunpack.c.l.b16 %v3579
          %v3652 = vunpack.c.l.b16 %v3580
          %v3653 = vunpack.c.h.b16 %v3580
          %v3654 = vunpack.c.l.b16 %v3581
          %v3655 = vunpack.c.l.b16 %v3582
          %v3656 = vunpack.c.h.b16 %v3582
          %v3657 = vunpack.c.l.b16 %v3583
          %v3658 = vunpack.c.l.b16 %v3584
          %v3659 = vunpack.c.h.b16 %v3584
          %v3660 = vunpack.c.l.b16 %v3585
          %v3661 = vunpack.c.l.b16 %v3586
          %v3662 = vunpack.c.h.b16 %v3586
          %v3663 = vunpack.c.l.b16 %v3587
          %v3664 = vunpack.c.l.b16 %v3588
          %v3665 = vunpack.c.h.b16 %v3588
          %v3666 = vunpack.c.l.b16 %v3589
          %v3667 = vunpack.c.l.b16 %v3590
          %v3668 = vunpack.c.h.b16 %v3590
          %v3669 = vunpack.c.l.b16 %v3591
          %v3670 = vunpack.c.l.b16 %v3592
          %v3671 = vunpack.c.h.b16 %v3592
          %v3672 = vunpack.c.l.b16 %v3593
          %v3673 = vunpack.c.l.b16 %v3594
          %v3674 = vunpack.c.h.b16 %v3594
          %v3675 = vunpack.c.l.b16 %v3595
          %v3676 = vpack.c.b16 %v3631, %v3628
          %v3677 = vpack.c.b16 %v3632, %v3629
          %v3678 = vpack.c.b16 %v3633, %v3630
          %v3679 = vpack.c.b16 %v3637, %v3634
          %v3680 = vpack.c.b16 %v3638, %v3635
          %v3681 = vpack.c.b16 %v3639, %v3636
          %v3682 = vpack.c.b16 %v3643, %v3640
          %v3683 = vpack.c.b16 %v3644, %v3641
          %v3684 = vpack.c.b16 %v3645, %v3642
          %v3685 = vpack.c.b16 %v3649, %v3646
          %v3686 = vpack.c.b16 %v3650, %v3647
          %v3687 = vpack.c.b16 %v3651, %v3648
          %v3688 = vpack.c.b16 %v3655, %v3652
          %v3689 = vpack.c.b16 %v3656, %v3653
          %v3690 = vpack.c.b16 %v3657, %v3654
          %v3691 = vpack.c.b16 %v3661, %v3658
          %v3692 = vpack.c.b16 %v3662, %v3659
          %v3693 = vpack.c.b16 %v3663, %v3660
          %v3694 = vpack.c.b16 %v3667, %v3664
          %v3695 = vpack.c.b16 %v3668, %v3665
          %v3696 = vpack.c.b16 %v3669, %v3666
          %v3697 = vpack.c.b16 %v3673, %v3670
          %v3698 = vpack.c.b16 %v3674, %v3671
          %v3699 = vpack.c.b16 %v3675, %v3672
          %3724 = vmatpush.bf16.msra.mxu0 %v3697
          %3725 = vmatpush.bf16.msra.mxu0 %v3694
          %3726 = vmatpush.bf16.msra.mxu0 %v3691
          %3727 = vmatpush.bf16.msra.mxu0 %v3688
          %3728 = vmatpush.bf16.msra.mxu0 %v3685
          %3729 = vmatpush.bf16.msra.mxu0 %v3682
          %3730 = vmatpush.bf16.msra.mxu0 %v3679
          %3731 = vmatpush.bf16.msra.mxu0 %v3676
          %3732 = vmatmul.bf16.gmra.mxu0 %v3563
          %v3733 = vpop.f32.mrf.mxu0
          %v3734 = vadd.f32 0.0, %v3733
          %v3735 = vpop.f32.mrf.mxu0
          %3736 = vdwg.mxu0
          %3737 = vmatpush.bf16.msra.mxu0 %v3698
          %3738 = vmatpush.bf16.msra.mxu0 %v3695
          %3739 = vmatpush.bf16.msra.mxu0 %v3692
          %3740 = vmatpush.bf16.msra.mxu0 %v3689
          %3741 = vmatpush.bf16.msra.mxu0 %v3686
          %3742 = vmatpush.bf16.msra.mxu0 %v3683
          %3743 = vmatpush.bf16.msra.mxu0 %v3680
          %3744 = vmatpush.bf16.msra.mxu0 %v3677
          %3745 = vmatmul.bf16.gmra.mxu0 %v3563
          %v3746 = vpop.f32.mrf.mxu0
          %v3747 = vadd.f32 0.0, %v3746
          %v3748 = vpop.f32.mrf.mxu0
          %3749 = vdwg.mxu0
          %3750 = vmatpush.bf16.msra.mxu0 %v3699
          %3751 = vmatpush.bf16.msra.mxu0 %v3696
          %3752 = vmatpush.bf16.msra.mxu0 %v3693
          %3753 = vmatpush.bf16.msra.mxu0 %v3690
          %3754 = vmatpush.bf16.msra.mxu0 %v3687
          %3755 = vmatpush.bf16.msra.mxu0 %v3684
          %3756 = vmatpush.bf16.msra.mxu0 %v3681
          %3757 = vmatpush.bf16.msra.mxu0 %v3678
          %3758 = vmatmul.bf16.gmra.mxu0 %v3563
          %v3759 = vpop.f32.mrf.mxu0
          %v3760 = vadd.f32 0.0, %v3759
          %v3761 = vpop.f32.mrf.mxu0
          %3762 = vdwg.mxu0
          %v3764 = vrot.slane %v3734, 2
          %v3766 = vadd.f32 %v3560, %v3764
          %v3767 = vxor.u32 %v3766, 2147483648
          %v3768 = vmul.f32 %v3767, 1.442695
          %v3769 = vpow.pop %v3768
          %v3770 = vadd.f32 %v3769, 1.0
          %v3771 = vrcp.pop %v3770
          %v3772 = vmul.f32 %v3770, %v3771
          %v3773 = vsub.f32 1.0, %v3772
          %v3774 = vmul.f32 %v3771, %v3773
          %v3775 = vadd.f32 %v3771, %v3774
          %vm3776 = vweird.f32 %v3770
          %vm3777 = vweird.f32 %v3771
          %vm3778 = vmor %vm3776, %vm3777
          %v3779 = vsel %vm3778, %v3771, %v3775
          %v3780 = vand.u32 2147483647, %v3770
          %vm3781 = vcmp.eq.f32.partialorder %v3780, 8.507059e+37
          %v3782 = vand.u32 %v3770, 2147483648
          %v3783 = vor.u32 1.1754944e-38, %v3782
          %v3784 = vsel %vm3781, %v3783, %v3779
          %v3785 = vmul.f32 1.0, %v3784
          %v3787 = vrot.slane %v3747, 2
          %v3789 = vadd.f32 %v3561, %v3787
          %v3790 = vxor.u32 %v3789, 2147483648
          %v3791 = vmul.f32 %v3790, 1.442695
          %v3792 = vpow.pop %v3791
          %v3793 = vadd.f32 %v3792, 1.0
          %v3794 = vrcp.pop %v3793
          %v3795 = vmul.f32 %v3793, %v3794
          %v3796 = vsub.f32 1.0, %v3795
          %v3797 = vmul.f32 %v3794, %v3796
          %v3798 = vadd.f32 %v3794, %v3797
          %vm3799 = vweird.f32 %v3793
          %vm3800 = vweird.f32 %v3794
          %vm3801 = vmor %vm3799, %vm3800
          %v3802 = vsel %vm3801, %v3794, %v3798
          %v3803 = vand.u32 2147483647, %v3793
          %vm3804 = vcmp.eq.f32.partialorder %v3803, 8.507059e+37
          %v3805 = vand.u32 %v3793, 2147483648
          %v3806 = vor.u32 1.1754944e-38, %v3805
          %v3807 = vsel %vm3804, %v3806, %v3802
          %v3808 = vmul.f32 1.0, %v3807
          %v3809 = vadd.f32 %v3760, %v359
          %v3811 = vrot.slane %v3809, 2
          %v3813 = vmul.f32 %v3785, %v3811
          %v3814 = vadd.f32 %v3562, %v3813
          %v3815 = vtanh.pop %v3814
          %v3816 = vsub.f32 1.0, %v3808
          %v3817 = vmul.f32 %v3816, %v3815
          %v3819 = vrot.slane %v3556, 2
          %v3821 = vmul.f32 %v3808, %v3819
          %v3822 = vadd.f32 %v3817, %v3821
          %3823 = vst [vmem:[%s334] sm:$0xc0] %v3822
          %v3824 = vld [vmem:[%s283] sm:$0x44]
          %v3825 = vld [vmem:[%s283 + $0x8] sm:$0x4]
          %v3826 = vunpack.c.l.bf16 %v3824
          %v3827 = vunpack.c.h.bf16 %v3824
          %v3828 = vunpack.c.l.bf16 %v3825
          %v3829 = vpack.c.bf16 %v3822, %v3822
          %v3830 = vld [vmem:[%s293] sm:$0xff]
          %v3831 = vld [vmem:[%s293 + $0x8] sm:$0xf]
          %v3832 = vld [vmem:[%s293 + $0xc] sm:$0xff]
          %v3833 = vld [vmem:[%s293 + $0x14] sm:$0xf]
          %v3834 = vld [vmem:[%s293 + $0x18] sm:$0xff]
          %v3835 = vld [vmem:[%s293 + $0x20] sm:$0xf]
          %v3836 = vld [vmem:[%s293 + $0x24] sm:$0xff]
          %v3837 = vld [vmem:[%s293 + $0x2c] sm:$0xf]
          %v3838 = vld [vmem:[%s293 + $0x30] sm:$0xff]
          %v3839 = vld [vmem:[%s293 + $0x38] sm:$0xf]
          %v3840 = vld [vmem:[%s293 + $0x3c] sm:$0xff]
          %v3841 = vld [vmem:[%s293 + $0x44] sm:$0xf]
          %v3842 = vld [vmem:[%s293 + $0x48] sm:$0xff]
          %v3843 = vld [vmem:[%s293 + $0x50] sm:$0xf]
          %v3844 = vld [vmem:[%s293 + $0x54] sm:$0xff]
          %v3845 = vld [vmem:[%s293 + $0x5c] sm:$0xf]
          %v3846 = vld [vmem:[%s293 + $0x60] sm:$0xff]
          %v3847 = vld [vmem:[%s293 + $0x68] sm:$0xf]
          %v3848 = vld [vmem:[%s293 + $0x6c] sm:$0xff]
          %v3849 = vld [vmem:[%s293 + $0x74] sm:$0xf]
          %v3850 = vld [vmem:[%s293 + $0x78] sm:$0xff]
          %v3851 = vld [vmem:[%s293 + $0x80] sm:$0xf]
          %v3852 = vld [vmem:[%s293 + $0x84] sm:$0xff]
          %v3853 = vld [vmem:[%s293 + $0x8c] sm:$0xf]
          %v3854 = vld [vmem:[%s293 + $0x90] sm:$0xff]
          %v3855 = vld [vmem:[%s293 + $0x98] sm:$0xf]
          %v3856 = vld [vmem:[%s293 + $0x9c] sm:$0xff]
          %v3857 = vld [vmem:[%s293 + $0xa4] sm:$0xf]
          %v3858 = vld [vmem:[%s293 + $0xa8] sm:$0xff]
          %v3859 = vld [vmem:[%s293 + $0xb0] sm:$0xf]
          %v3860 = vld [vmem:[%s293 + $0xb4] sm:$0xff]
          %v3861 = vld [vmem:[%s293 + $0xbc] sm:$0xf]
          %v3863 = vrot.slane %v3829, 3
          %v3897 = vunpack.c.l.b16 %v3830
          %v3898 = vunpack.c.h.b16 %v3830
          %v3899 = vunpack.c.l.b16 %v3831
          %v3900 = vunpack.c.l.b16 %v3832
          %v3901 = vunpack.c.h.b16 %v3832
          %v3902 = vunpack.c.l.b16 %v3833
          %v3903 = vunpack.c.l.b16 %v3834
          %v3904 = vunpack.c.h.b16 %v3834
          %v3905 = vunpack.c.l.b16 %v3835
          %v3906 = vunpack.c.l.b16 %v3836
          %v3907 = vunpack.c.h.b16 %v3836
          %v3908 = vunpack.c.l.b16 %v3837
          %v3909 = vunpack.c.l.b16 %v3838
          %v3910 = vunpack.c.h.b16 %v3838
          %v3911 = vunpack.c.l.b16 %v3839
          %v3912 = vunpack.c.l.b16 %v3840
          %v3913 = vunpack.c.h.b16 %v3840
          %v3914 = vunpack.c.l.b16 %v3841
          %v3915 = vunpack.c.l.b16 %v3842
          %v3916 = vunpack.c.h.b16 %v3842
          %v3917 = vunpack.c.l.b16 %v3843
          %v3918 = vunpack.c.l.b16 %v3844
          %v3919 = vunpack.c.h.b16 %v3844
          %v3920 = vunpack.c.l.b16 %v3845
          %v3921 = vunpack.c.l.b16 %v3846
          %v3922 = vunpack.c.h.b16 %v3846
          %v3923 = vunpack.c.l.b16 %v3847
          %v3924 = vunpack.c.l.b16 %v3848
          %v3925 = vunpack.c.h.b16 %v3848
          %v3926 = vunpack.c.l.b16 %v3849
          %v3927 = vunpack.c.l.b16 %v3850
          %v3928 = vunpack.c.h.b16 %v3850
          %v3929 = vunpack.c.l.b16 %v3851
          %v3930 = vunpack.c.l.b16 %v3852
          %v3931 = vunpack.c.h.b16 %v3852
          %v3932 = vunpack.c.l.b16 %v3853
          %v3933 = vunpack.c.l.b16 %v3854
          %v3934 = vunpack.c.h.b16 %v3854
          %v3935 = vunpack.c.l.b16 %v3855
          %v3936 = vunpack.c.l.b16 %v3856
          %v3937 = vunpack.c.h.b16 %v3856
          %v3938 = vunpack.c.l.b16 %v3857
          %v3939 = vunpack.c.l.b16 %v3858
          %v3940 = vunpack.c.h.b16 %v3858
          %v3941 = vunpack.c.l.b16 %v3859
          %v3942 = vunpack.c.l.b16 %v3860
          %v3943 = vunpack.c.h.b16 %v3860
          %v3944 = vunpack.c.l.b16 %v3861
          %v3945 = vpack.c.b16 %v3900, %v3897
          %v3946 = vpack.c.b16 %v3901, %v3898
          %v3947 = vpack.c.b16 %v3902, %v3899
          %v3948 = vpack.c.b16 %v3906, %v3903
          %v3949 = vpack.c.b16 %v3907, %v3904
          %v3950 = vpack.c.b16 %v3908, %v3905
          %v3951 = vpack.c.b16 %v3912, %v3909
          %v3952 = vpack.c.b16 %v3913, %v3910
          %v3953 = vpack.c.b16 %v3914, %v3911
          %v3954 = vpack.c.b16 %v3918, %v3915
          %v3955 = vpack.c.b16 %v3919, %v3916
          %v3956 = vpack.c.b16 %v3920, %v3917
          %v3957 = vpack.c.b16 %v3924, %v3921
          %v3958 = vpack.c.b16 %v3925, %v3922
          %v3959 = vpack.c.b16 %v3926, %v3923
          %v3960 = vpack.c.b16 %v3930, %v3927
          %v3961 = vpack.c.b16 %v3931, %v3928
          %v3962 = vpack.c.b16 %v3932, %v3929
          %v3963 = vpack.c.b16 %v3936, %v3933
          %v3964 = vpack.c.b16 %v3937, %v3934
          %v3965 = vpack.c.b16 %v3938, %v3935
          %v3966 = vpack.c.b16 %v3942, %v3939
          %v3967 = vpack.c.b16 %v3943, %v3940
          %v3968 = vpack.c.b16 %v3944, %v3941
          %3993 = vmatpush.bf16.msra.mxu0 %v3966
          %3994 = vmatpush.bf16.msra.mxu0 %v3963
          %3995 = vmatpush.bf16.msra.mxu0 %v3960
          %3996 = vmatpush.bf16.msra.mxu0 %v3957
          %3997 = vmatpush.bf16.msra.mxu0 %v3954
          %3998 = vmatpush.bf16.msra.mxu0 %v3951
          %3999 = vmatpush.bf16.msra.mxu0 %v3948
          %4000 = vmatpush.bf16.msra.mxu0 %v3945
          %4001 = vmatmul.bf16.gmra.mxu0 %v3863
          %v4002 = vpop.f32.mrf.mxu0
          %v4003 = vadd.f32 0.0, %v4002
          %v4004 = vpop.f32.mrf.mxu0
          %4005 = vdwg.mxu0
          %4006 = vmatpush.bf16.msra.mxu0 %v3967
          %4007 = vmatpush.bf16.msra.mxu0 %v3964
          %4008 = vmatpush.bf16.msra.mxu0 %v3961
          %4009 = vmatpush.bf16.msra.mxu0 %v3958
          %4010 = vmatpush.bf16.msra.mxu0 %v3955
          %4011 = vmatpush.bf16.msra.mxu0 %v3952
          %4012 = vmatpush.bf16.msra.mxu0 %v3949
          %4013 = vmatpush.bf16.msra.mxu0 %v3946
          %4014 = vmatmul.bf16.gmra.mxu0 %v3863
          %v4015 = vpop.f32.mrf.mxu0
          %v4016 = vadd.f32 0.0, %v4015
          %v4017 = vpop.f32.mrf.mxu0
          %4018 = vdwg.mxu0
          %4019 = vmatpush.bf16.msra.mxu0 %v3968
          %4020 = vmatpush.bf16.msra.mxu0 %v3965
          %4021 = vmatpush.bf16.msra.mxu0 %v3962
          %4022 = vmatpush.bf16.msra.mxu0 %v3959
          %4023 = vmatpush.bf16.msra.mxu0 %v3956
          %4024 = vmatpush.bf16.msra.mxu0 %v3953
          %4025 = vmatpush.bf16.msra.mxu0 %v3950
          %4026 = vmatpush.bf16.msra.mxu0 %v3947
          %4027 = vmatmul.bf16.gmra.mxu0 %v3863
          %v4028 = vpop.f32.mrf.mxu0
          %v4029 = vadd.f32 0.0, %v4028
          %v4030 = vpop.f32.mrf.mxu0
          %4031 = vdwg.mxu0
          %v4033 = vrot.slane %v4003, 4
          %v4035 = vadd.f32 %v3826, %v4033
          %v4036 = vxor.u32 %v4035, 2147483648
          %v4037 = vmul.f32 %v4036, 1.442695
          %v4038 = vpow.pop %v4037
          %v4039 = vadd.f32 %v4038, 1.0
          %v4040 = vrcp.pop %v4039
          %v4041 = vmul.f32 %v4039, %v4040
          %v4042 = vsub.f32 1.0, %v4041
          %v4043 = vmul.f32 %v4040, %v4042
          %v4044 = vadd.f32 %v4040, %v4043
          %vm4045 = vweird.f32 %v4039
          %vm4046 = vweird.f32 %v4040
          %vm4047 = vmor %vm4045, %vm4046
          %v4048 = vsel %vm4047, %v4040, %v4044
          %v4049 = vand.u32 2147483647, %v4039
          %vm4050 = vcmp.eq.f32.partialorder %v4049, 8.507059e+37
          %v4051 = vand.u32 %v4039, 2147483648
          %v4052 = vor.u32 1.1754944e-38, %v4051
          %v4053 = vsel %vm4050, %v4052, %v4048
          %v4054 = vmul.f32 1.0, %v4053
          %v4056 = vrot.slane %v4016, 4
          %v4058 = vadd.f32 %v3827, %v4056
          %v4059 = vxor.u32 %v4058, 2147483648
          %v4060 = vmul.f32 %v4059, 1.442695
          %v4061 = vpow.pop %v4060
          %v4062 = vadd.f32 %v4061, 1.0
          %v4063 = vrcp.pop %v4062
          %v4064 = vmul.f32 %v4062, %v4063
          %v4065 = vsub.f32 1.0, %v4064
          %v4066 = vmul.f32 %v4063, %v4065
          %v4067 = vadd.f32 %v4063, %v4066
          %vm4068 = vweird.f32 %v4062
          %vm4069 = vweird.f32 %v4063
          %vm4070 = vmor %vm4068, %vm4069
          %v4071 = vsel %vm4070, %v4063, %v4067
          %v4072 = vand.u32 2147483647, %v4062
          %vm4073 = vcmp.eq.f32.partialorder %v4072, 8.507059e+37
          %v4074 = vand.u32 %v4062, 2147483648
          %v4075 = vor.u32 1.1754944e-38, %v4074
          %v4076 = vsel %vm4073, %v4075, %v4071
          %v4077 = vmul.f32 1.0, %v4076
          %v4078 = vadd.f32 %v4029, %v359
          %v4080 = vrot.slane %v4078, 4
          %v4082 = vmul.f32 %v4054, %v4080
          %v4083 = vadd.f32 %v3828, %v4082
          %v4084 = vtanh.pop %v4083
          %v4085 = vsub.f32 1.0, %v4077
          %v4086 = vmul.f32 %v4085, %v4084
          %v4088 = vrot.slane %v3822, 2
          %v4090 = vmul.f32 %v4077, %v4088
          %v4091 = vadd.f32 %v4086, %v4090
          %4092 = vst [vmem:[%s334] sm:$0x30] %v4091
          %v4093 = vld [vmem:[%s283] sm:$0x22]
          %v4094 = vld [vmem:[%s283 + $0x8] sm:$0x2]
          %v4095 = vunpack.c.l.bf16 %v4093
          %v4096 = vunpack.c.h.bf16 %v4093
          %v4097 = vunpack.c.l.bf16 %v4094
          %v4098 = vpack.c.bf16 %v4091, %v4091
          %v4099 = vld [vmem:[%s293] sm:$0xff]
          %v4100 = vld [vmem:[%s293 + $0x8] sm:$0xf]
          %v4101 = vld [vmem:[%s293 + $0xc] sm:$0xff]
          %v4102 = vld [vmem:[%s293 + $0x14] sm:$0xf]
          %v4103 = vld [vmem:[%s293 + $0x18] sm:$0xff]
          %v4104 = vld [vmem:[%s293 + $0x20] sm:$0xf]
          %v4105 = vld [vmem:[%s293 + $0x24] sm:$0xff]
          %v4106 = vld [vmem:[%s293 + $0x2c] sm:$0xf]
          %v4107 = vld [vmem:[%s293 + $0x30] sm:$0xff]
          %v4108 = vld [vmem:[%s293 + $0x38] sm:$0xf]
          %v4109 = vld [vmem:[%s293 + $0x3c] sm:$0xff]
          %v4110 = vld [vmem:[%s293 + $0x44] sm:$0xf]
          %v4111 = vld [vmem:[%s293 + $0x48] sm:$0xff]
          %v4112 = vld [vmem:[%s293 + $0x50] sm:$0xf]
          %v4113 = vld [vmem:[%s293 + $0x54] sm:$0xff]
          %v4114 = vld [vmem:[%s293 + $0x5c] sm:$0xf]
          %v4115 = vld [vmem:[%s293 + $0x60] sm:$0xff]
          %v4116 = vld [vmem:[%s293 + $0x68] sm:$0xf]
          %v4117 = vld [vmem:[%s293 + $0x6c] sm:$0xff]
          %v4118 = vld [vmem:[%s293 + $0x74] sm:$0xf]
          %v4119 = vld [vmem:[%s293 + $0x78] sm:$0xff]
          %v4120 = vld [vmem:[%s293 + $0x80] sm:$0xf]
          %v4121 = vld [vmem:[%s293 + $0x84] sm:$0xff]
          %v4122 = vld [vmem:[%s293 + $0x8c] sm:$0xf]
          %v4123 = vld [vmem:[%s293 + $0x90] sm:$0xff]
          %v4124 = vld [vmem:[%s293 + $0x98] sm:$0xf]
          %v4125 = vld [vmem:[%s293 + $0x9c] sm:$0xff]
          %v4126 = vld [vmem:[%s293 + $0xa4] sm:$0xf]
          %v4127 = vld [vmem:[%s293 + $0xa8] sm:$0xff]
          %v4128 = vld [vmem:[%s293 + $0xb0] sm:$0xf]
          %v4129 = vld [vmem:[%s293 + $0xb4] sm:$0xff]
          %v4130 = vld [vmem:[%s293 + $0xbc] sm:$0xf]
          %v4132 = vrot.slane %v4098, 2
          %v4166 = vunpack.c.l.b16 %v4099
          %v4167 = vunpack.c.h.b16 %v4099
          %v4168 = vunpack.c.l.b16 %v4100
          %v4169 = vunpack.c.l.b16 %v4101
          %v4170 = vunpack.c.h.b16 %v4101
          %v4171 = vunpack.c.l.b16 %v4102
          %v4172 = vunpack.c.l.b16 %v4103
          %v4173 = vunpack.c.h.b16 %v4103
          %v4174 = vunpack.c.l.b16 %v4104
          %v4175 = vunpack.c.l.b16 %v4105
          %v4176 = vunpack.c.h.b16 %v4105
          %v4177 = vunpack.c.l.b16 %v4106
          %v4178 = vunpack.c.l.b16 %v4107
          %v4179 = vunpack.c.h.b16 %v4107
          %v4180 = vunpack.c.l.b16 %v4108
          %v4181 = vunpack.c.l.b16 %v4109
          %v4182 = vunpack.c.h.b16 %v4109
          %v4183 = vunpack.c.l.b16 %v4110
          %v4184 = vunpack.c.l.b16 %v4111
          %v4185 = vunpack.c.h.b16 %v4111
          %v4186 = vunpack.c.l.b16 %v4112
          %v4187 = vunpack.c.l.b16 %v4113
          %v4188 = vunpack.c.h.b16 %v4113
          %v4189 = vunpack.c.l.b16 %v4114
          %v4190 = vunpack.c.l.b16 %v4115
          %v4191 = vunpack.c.h.b16 %v4115
          %v4192 = vunpack.c.l.b16 %v4116
          %v4193 = vunpack.c.l.b16 %v4117
          %v4194 = vunpack.c.h.b16 %v4117
          %v4195 = vunpack.c.l.b16 %v4118
          %v4196 = vunpack.c.l.b16 %v4119
          %v4197 = vunpack.c.h.b16 %v4119
          %v4198 = vunpack.c.l.b16 %v4120
          %v4199 = vunpack.c.l.b16 %v4121
          %v4200 = vunpack.c.h.b16 %v4121
          %v4201 = vunpack.c.l.b16 %v4122
          %v4202 = vunpack.c.l.b16 %v4123
          %v4203 = vunpack.c.h.b16 %v4123
          %v4204 = vunpack.c.l.b16 %v4124
          %v4205 = vunpack.c.l.b16 %v4125
          %v4206 = vunpack.c.h.b16 %v4125
          %v4207 = vunpack.c.l.b16 %v4126
          %v4208 = vunpack.c.l.b16 %v4127
          %v4209 = vunpack.c.h.b16 %v4127
          %v4210 = vunpack.c.l.b16 %v4128
          %v4211 = vunpack.c.l.b16 %v4129
          %v4212 = vunpack.c.h.b16 %v4129
          %v4213 = vunpack.c.l.b16 %v4130
          %v4214 = vpack.c.b16 %v4169, %v4166
          %v4215 = vpack.c.b16 %v4170, %v4167
          %v4216 = vpack.c.b16 %v4171, %v4168
          %v4217 = vpack.c.b16 %v4175, %v4172
          %v4218 = vpack.c.b16 %v4176, %v4173
          %v4219 = vpack.c.b16 %v4177, %v4174
          %v4220 = vpack.c.b16 %v4181, %v4178
          %v4221 = vpack.c.b16 %v4182, %v4179
          %v4222 = vpack.c.b16 %v4183, %v4180
          %v4223 = vpack.c.b16 %v4187, %v4184
          %v4224 = vpack.c.b16 %v4188, %v4185
          %v4225 = vpack.c.b16 %v4189, %v4186
          %v4226 = vpack.c.b16 %v4193, %v4190
          %v4227 = vpack.c.b16 %v4194, %v4191
          %v4228 = vpack.c.b16 %v4195, %v4192
          %v4229 = vpack.c.b16 %v4199, %v4196
          %v4230 = vpack.c.b16 %v4200, %v4197
          %v4231 = vpack.c.b16 %v4201, %v4198
          %v4232 = vpack.c.b16 %v4205, %v4202
          %v4233 = vpack.c.b16 %v4206, %v4203
          %v4234 = vpack.c.b16 %v4207, %v4204
          %v4235 = vpack.c.b16 %v4211, %v4208
          %v4236 = vpack.c.b16 %v4212, %v4209
          %v4237 = vpack.c.b16 %v4213, %v4210
          %4262 = vmatpush.bf16.msra.mxu0 %v4235
          %4263 = vmatpush.bf16.msra.mxu0 %v4232
          %4264 = vmatpush.bf16.msra.mxu0 %v4229
          %4265 = vmatpush.bf16.msra.mxu0 %v4226
          %4266 = vmatpush.bf16.msra.mxu0 %v4223
          %4267 = vmatpush.bf16.msra.mxu0 %v4220
          %4268 = vmatpush.bf16.msra.mxu0 %v4217
          %4269 = vmatpush.bf16.msra.mxu0 %v4214
          %4270 = vmatmul.bf16.gmra.mxu0 %v4132
          %v4271 = vpop.f32.mrf.mxu0
          %v4272 = vadd.f32 0.0, %v4271
          %v4273 = vpop.f32.mrf.mxu0
          %4274 = vdwg.mxu0
          %4275 = vmatpush.bf16.msra.mxu0 %v4236
          %4276 = vmatpush.bf16.msra.mxu0 %v4233
          %4277 = vmatpush.bf16.msra.mxu0 %v4230
          %4278 = vmatpush.bf16.msra.mxu0 %v4227
          %4279 = vmatpush.bf16.msra.mxu0 %v4224
          %4280 = vmatpush.bf16.msra.mxu0 %v4221
          %4281 = vmatpush.bf16.msra.mxu0 %v4218
          %4282 = vmatpush.bf16.msra.mxu0 %v4215
          %4283 = vmatmul.bf16.gmra.mxu0 %v4132
          %v4284 = vpop.f32.mrf.mxu0
          %v4285 = vadd.f32 0.0, %v4284
          %v4286 = vpop.f32.mrf.mxu0
          %4287 = vdwg.mxu0
          %4288 = vmatpush.bf16.msra.mxu0 %v4237
          %4289 = vmatpush.bf16.msra.mxu0 %v4234
          %4290 = vmatpush.bf16.msra.mxu0 %v4231
          %4291 = vmatpush.bf16.msra.mxu0 %v4228
          %4292 = vmatpush.bf16.msra.mxu0 %v4225
          %4293 = vmatpush.bf16.msra.mxu0 %v4222
          %4294 = vmatpush.bf16.msra.mxu0 %v4219
          %4295 = vmatpush.bf16.msra.mxu0 %v4216
          %4296 = vmatmul.bf16.gmra.mxu0 %v4132
          %v4297 = vpop.f32.mrf.mxu0
          %v4298 = vadd.f32 0.0, %v4297
          %v4299 = vpop.f32.mrf.mxu0
          %4300 = vdwg.mxu0
          %v4302 = vrot.slane %v4272, 6
          %v4304 = vadd.f32 %v4095, %v4302
          %v4305 = vxor.u32 %v4304, 2147483648
          %v4306 = vmul.f32 %v4305, 1.442695
          %v4307 = vpow.pop %v4306
          %v4308 = vadd.f32 %v4307, 1.0
          %v4309 = vrcp.pop %v4308
          %v4310 = vmul.f32 %v4308, %v4309
          %v4311 = vsub.f32 1.0, %v4310
          %v4312 = vmul.f32 %v4309, %v4311
          %v4313 = vadd.f32 %v4309, %v4312
          %vm4314 = vweird.f32 %v4308
          %vm4315 = vweird.f32 %v4309
          %vm4316 = vmor %vm4314, %vm4315
          %v4317 = vsel %vm4316, %v4309, %v4313
          %v4318 = vand.u32 2147483647, %v4308
          %vm4319 = vcmp.eq.f32.partialorder %v4318, 8.507059e+37
          %v4320 = vand.u32 %v4308, 2147483648
          %v4321 = vor.u32 1.1754944e-38, %v4320
          %v4322 = vsel %vm4319, %v4321, %v4317
          %v4323 = vmul.f32 1.0, %v4322
          %v4325 = vrot.slane %v4285, 6
          %v4327 = vadd.f32 %v4096, %v4325
          %v4328 = vxor.u32 %v4327, 2147483648
          %v4329 = vmul.f32 %v4328, 1.442695
          %v4330 = vpow.pop %v4329
          %v4331 = vadd.f32 %v4330, 1.0
          %v4332 = vrcp.pop %v4331
          %v4333 = vmul.f32 %v4331, %v4332
          %v4334 = vsub.f32 1.0, %v4333
          %v4335 = vmul.f32 %v4332, %v4334
          %v4336 = vadd.f32 %v4332, %v4335
          %vm4337 = vweird.f32 %v4331
          %vm4338 = vweird.f32 %v4332
          %vm4339 = vmor %vm4337, %vm4338
          %v4340 = vsel %vm4339, %v4332, %v4336
          %v4341 = vand.u32 2147483647, %v4331
          %vm4342 = vcmp.eq.f32.partialorder %v4341, 8.507059e+37
          %v4343 = vand.u32 %v4331, 2147483648
          %v4344 = vor.u32 1.1754944e-38, %v4343
          %v4345 = vsel %vm4342, %v4344, %v4340
          %v4346 = vmul.f32 1.0, %v4345
          %v4347 = vadd.f32 %v4298, %v359
          %v4349 = vrot.slane %v4347, 6
          %v4351 = vmul.f32 %v4323, %v4349
          %v4352 = vadd.f32 %v4097, %v4351
          %v4353 = vtanh.pop %v4352
          %v4354 = vsub.f32 1.0, %v4346
          %v4355 = vmul.f32 %v4354, %v4353
          %v4357 = vrot.slane %v4091, 2
          %v4359 = vmul.f32 %v4346, %v4357
          %v4360 = vadd.f32 %v4355, %v4359
          %4361 = vst [vmem:[%s334] sm:$0xc] %v4360
          %v4362 = vld [vmem:[%s283] sm:$0x11]
          %v4363 = vld [vmem:[%s283 + $0x8] sm:$0x1]
          %v4364 = vunpack.c.l.bf16 %v4362
          %v4365 = vunpack.c.h.bf16 %v4362
          %v4366 = vunpack.c.l.bf16 %v4363
          %v4367 = vpack.c.bf16 %v4360, %v4360
          %v4368 = vld [vmem:[%s293] sm:$0xff]
          %v4369 = vld [vmem:[%s293 + $0x8] sm:$0xf]
          %v4370 = vld [vmem:[%s293 + $0xc] sm:$0xff]
          %v4371 = vld [vmem:[%s293 + $0x14] sm:$0xf]
          %v4372 = vld [vmem:[%s293 + $0x18] sm:$0xff]
          %v4373 = vld [vmem:[%s293 + $0x20] sm:$0xf]
          %v4374 = vld [vmem:[%s293 + $0x24] sm:$0xff]
          %v4375 = vld [vmem:[%s293 + $0x2c] sm:$0xf]
          %v4376 = vld [vmem:[%s293 + $0x30] sm:$0xff]
          %v4377 = vld [vmem:[%s293 + $0x38] sm:$0xf]
          %v4378 = vld [vmem:[%s293 + $0x3c] sm:$0xff]
          %v4379 = vld [vmem:[%s293 + $0x44] sm:$0xf]
          %v4380 = vld [vmem:[%s293 + $0x48] sm:$0xff]
          %v4381 = vld [vmem:[%s293 + $0x50] sm:$0xf]
          %v4382 = vld [vmem:[%s293 + $0x54] sm:$0xff]
          %v4383 = vld [vmem:[%s293 + $0x5c] sm:$0xf]
          %v4384 = vld [vmem:[%s293 + $0x60] sm:$0xff]
          %v4385 = vld [vmem:[%s293 + $0x68] sm:$0xf]
          %v4386 = vld [vmem:[%s293 + $0x6c] sm:$0xff]
          %v4387 = vld [vmem:[%s293 + $0x74] sm:$0xf]
          %v4388 = vld [vmem:[%s293 + $0x78] sm:$0xff]
          %v4389 = vld [vmem:[%s293 + $0x80] sm:$0xf]
          %v4390 = vld [vmem:[%s293 + $0x84] sm:$0xff]
          %v4391 = vld [vmem:[%s293 + $0x8c] sm:$0xf]
          %v4392 = vld [vmem:[%s293 + $0x90] sm:$0xff]
          %v4393 = vld [vmem:[%s293 + $0x98] sm:$0xf]
          %v4394 = vld [vmem:[%s293 + $0x9c] sm:$0xff]
          %v4395 = vld [vmem:[%s293 + $0xa4] sm:$0xf]
          %v4396 = vld [vmem:[%s293 + $0xa8] sm:$0xff]
          %v4397 = vld [vmem:[%s293 + $0xb0] sm:$0xf]
          %v4398 = vld [vmem:[%s293 + $0xb4] sm:$0xff]
          %v4399 = vld [vmem:[%s293 + $0xbc] sm:$0xf]
          %v4401 = vrot.slane %v4367, 1
          %v4435 = vunpack.c.l.b16 %v4368
          %v4436 = vunpack.c.h.b16 %v4368
          %v4437 = vunpack.c.l.b16 %v4369
          %v4438 = vunpack.c.l.b16 %v4370
          %v4439 = vunpack.c.h.b16 %v4370
          %v4440 = vunpack.c.l.b16 %v4371
          %v4441 = vunpack.c.l.b16 %v4372
          %v4442 = vunpack.c.h.b16 %v4372
          %v4443 = vunpack.c.l.b16 %v4373
          %v4444 = vunpack.c.l.b16 %v4374
          %v4445 = vunpack.c.h.b16 %v4374
          %v4446 = vunpack.c.l.b16 %v4375
          %v4447 = vunpack.c.l.b16 %v4376
          %v4448 = vunpack.c.h.b16 %v4376
          %v4449 = vunpack.c.l.b16 %v4377
          %v4450 = vunpack.c.l.b16 %v4378
          %v4451 = vunpack.c.h.b16 %v4378
          %v4452 = vunpack.c.l.b16 %v4379
          %v4453 = vunpack.c.l.b16 %v4380
          %v4454 = vunpack.c.h.b16 %v4380
          %v4455 = vunpack.c.l.b16 %v4381
          %v4456 = vunpack.c.l.b16 %v4382
          %v4457 = vunpack.c.h.b16 %v4382
          %v4458 = vunpack.c.l.b16 %v4383
          %v4459 = vunpack.c.l.b16 %v4384
          %v4460 = vunpack.c.h.b16 %v4384
          %v4461 = vunpack.c.l.b16 %v4385
          %v4462 = vunpack.c.l.b16 %v4386
          %v4463 = vunpack.c.h.b16 %v4386
          %v4464 = vunpack.c.l.b16 %v4387
          %v4465 = vunpack.c.l.b16 %v4388
          %v4466 = vunpack.c.h.b16 %v4388
          %v4467 = vunpack.c.l.b16 %v4389
          %v4468 = vunpack.c.l.b16 %v4390
          %v4469 = vunpack.c.h.b16 %v4390
          %v4470 = vunpack.c.l.b16 %v4391
          %v4471 = vunpack.c.l.b16 %v4392
          %v4472 = vunpack.c.h.b16 %v4392
          %v4473 = vunpack.c.l.b16 %v4393
          %v4474 = vunpack.c.l.b16 %v4394
          %v4475 = vunpack.c.h.b16 %v4394
          %v4476 = vunpack.c.l.b16 %v4395
          %v4477 = vunpack.c.l.b16 %v4396
          %v4478 = vunpack.c.h.b16 %v4396
          %v4479 = vunpack.c.l.b16 %v4397
          %v4480 = vunpack.c.l.b16 %v4398
          %v4481 = vunpack.c.h.b16 %v4398
          %v4482 = vunpack.c.l.b16 %v4399
          %v4483 = vpack.c.b16 %v4438, %v4435
          %v4484 = vpack.c.b16 %v4439, %v4436
          %v4485 = vpack.c.b16 %v4440, %v4437
          %v4486 = vpack.c.b16 %v4444, %v4441
          %v4487 = vpack.c.b16 %v4445, %v4442
          %v4488 = vpack.c.b16 %v4446, %v4443
          %v4489 = vpack.c.b16 %v4450, %v4447
          %v4490 = vpack.c.b16 %v4451, %v4448
          %v4491 = vpack.c.b16 %v4452, %v4449
          %v4492 = vpack.c.b16 %v4456, %v4453
          %v4493 = vpack.c.b16 %v4457, %v4454
          %v4494 = vpack.c.b16 %v4458, %v4455
          %v4495 = vpack.c.b16 %v4462, %v4459
          %v4496 = vpack.c.b16 %v4463, %v4460
          %v4497 = vpack.c.b16 %v4464, %v4461
          %v4498 = vpack.c.b16 %v4468, %v4465
          %v4499 = vpack.c.b16 %v4469, %v4466
          %v4500 = vpack.c.b16 %v4470, %v4467
          %v4501 = vpack.c.b16 %v4474, %v4471
          %v4502 = vpack.c.b16 %v4475, %v4472
          %v4503 = vpack.c.b16 %v4476, %v4473
          %v4504 = vpack.c.b16 %v4480, %v4477
          %v4505 = vpack.c.b16 %v4481, %v4478
          %v4506 = vpack.c.b16 %v4482, %v4479
          %4531 = vmatpush.bf16.msra.mxu0 %v4504
          %4532 = vmatpush.bf16.msra.mxu0 %v4501
          %4533 = vmatpush.bf16.msra.mxu0 %v4498
          %4534 = vmatpush.bf16.msra.mxu0 %v4495
          %4535 = vmatpush.bf16.msra.mxu0 %v4492
          %4536 = vmatpush.bf16.msra.mxu0 %v4489
          %4537 = vmatpush.bf16.msra.mxu0 %v4486
          %4538 = vmatpush.bf16.msra.mxu0 %v4483
          %4539 = vmatmul.bf16.gmra.mxu0 %v4401
          %v4540 = vpop.f32.mrf.mxu0
          %v4541 = vadd.f32 0.0, %v4540
          %v4542 = vpop.f32.mrf.mxu0
          %4543 = vdwg.mxu0
          %4544 = vmatpush.bf16.msra.mxu0 %v4505
          %4545 = vmatpush.bf16.msra.mxu0 %v4502
          %4546 = vmatpush.bf16.msra.mxu0 %v4499
          %4547 = vmatpush.bf16.msra.mxu0 %v4496
          %4548 = vmatpush.bf16.msra.mxu0 %v4493
          %4549 = vmatpush.bf16.msra.mxu0 %v4490
          %4550 = vmatpush.bf16.msra.mxu0 %v4487
          %4551 = vmatpush.bf16.msra.mxu0 %v4484
          %4552 = vmatmul.bf16.gmra.mxu0 %v4401
          %v4553 = vpop.f32.mrf.mxu0
          %v4554 = vadd.f32 0.0, %v4553
          %v4555 = vpop.f32.mrf.mxu0
          %4556 = vdwg.mxu0
          %4557 = vmatpush.bf16.msra.mxu0 %v4506
          %4558 = vmatpush.bf16.msra.mxu0 %v4503
          %4559 = vmatpush.bf16.msra.mxu0 %v4500
          %4560 = vmatpush.bf16.msra.mxu0 %v4497
          %4561 = vmatpush.bf16.msra.mxu0 %v4494
          %4562 = vmatpush.bf16.msra.mxu0 %v4491
          %4563 = vmatpush.bf16.msra.mxu0 %v4488
          %4564 = vmatpush.bf16.msra.mxu0 %v4485
          %4565 = vmatmul.bf16.gmra.mxu0 %v4401
          %v4566 = vpop.f32.mrf.mxu0
          %v4567 = vadd.f32 0.0, %v4566
          %v4568 = vpop.f32.mrf.mxu0
          %4569 = vdwg.mxu0
          %v4570 = vadd.f32 %v4364, %v4541
          %v4571 = vxor.u32 %v4570, 2147483648
          %v4572 = vmul.f32 %v4571, 1.442695
          %v4573 = vpow.pop %v4572
          %v4574 = vadd.f32 %v4573, 1.0
          %v4575 = vrcp.pop %v4574
          %v4576 = vmul.f32 %v4574, %v4575
          %v4577 = vsub.f32 1.0, %v4576
          %v4578 = vmul.f32 %v4575, %v4577
          %v4579 = vadd.f32 %v4575, %v4578
          %vm4580 = vweird.f32 %v4574
          %vm4581 = vweird.f32 %v4575
          %vm4582 = vmor %vm4580, %vm4581
          %v4583 = vsel %vm4582, %v4575, %v4579
          %v4584 = vand.u32 2147483647, %v4574
          %vm4585 = vcmp.eq.f32.partialorder %v4584, 8.507059e+37
          %v4586 = vand.u32 %v4574, 2147483648
          %v4587 = vor.u32 1.1754944e-38, %v4586
          %v4588 = vsel %vm4585, %v4587, %v4583
          %v4589 = vmul.f32 1.0, %v4588
          %v4590 = vadd.f32 %v4365, %v4554
          %v4591 = vxor.u32 %v4590, 2147483648
          %v4592 = vmul.f32 %v4591, 1.442695
          %v4593 = vpow.pop %v4592
          %v4594 = vadd.f32 %v4593, 1.0
          %v4595 = vrcp.pop %v4594
          %v4596 = vmul.f32 %v4594, %v4595
          %v4597 = vsub.f32 1.0, %v4596
          %v4598 = vmul.f32 %v4595, %v4597
          %v4599 = vadd.f32 %v4595, %v4598
          %vm4600 = vweird.f32 %v4594
          %vm4601 = vweird.f32 %v4595
          %vm4602 = vmor %vm4600, %vm4601
          %v4603 = vsel %vm4602, %v4595, %v4599
          %v4604 = vand.u32 2147483647, %v4594
          %vm4605 = vcmp.eq.f32.partialorder %v4604, 8.507059e+37
          %v4606 = vand.u32 %v4594, 2147483648
          %v4607 = vor.u32 1.1754944e-38, %v4606
          %v4608 = vsel %vm4605, %v4607, %v4603
          %v4609 = vmul.f32 1.0, %v4608
          %v4610 = vadd.f32 %v4567, %v359
          %v4611 = vmul.f32 %v4589, %v4610
          %v4612 = vadd.f32 %v4366, %v4611
          %v4613 = vtanh.pop %v4612
          %v4614 = vsub.f32 1.0, %v4609
          %v4615 = vmul.f32 %v4614, %v4613
          %v4617 = vrot.slane %v4360, 2
          %v4619 = vmul.f32 %v4609, %v4617
          %v4620 = vadd.f32 %v4615, %v4619
          %4621 = vst [vmem:[%s334] sm:$0x3] %v4620
          %4622 = vst [vmem:[#allocation2] sm:$0x3] %v4620
        $region56: #{tpu_custom_call.1} parent=31 // pred_fallthru
          _
        // Predicated region
        $region57: #{tpu_custom_call.1} parent=31 // pred_check
          %p4623 = pneg %p352
        $region58: #{tpu_custom_call.1} parent=31 // pred_check_branch
          %4625 = sbr.rel (%p4623) target = $region60
        $region59: #{tpu_custom_call.1} parent=31 // pred_region
          %v4626 = vld [vmem:[#allocation2] sm:$0x3]
          %4627 = vst [vmem:[%s341] sm:$0x3] %v4626
        $region60: #{tpu_custom_call.1} parent=31 // pred_fallthru
          _
        %s4628 = sand.u32 %s146, 1
        %s4629 = scalar_lea.sflag [#allocation5], %s4628
        %s4630 = sand.u32 %s146, 1
        %s4631 = smul.addr %s4630, 16
        %s4632 = scalar_lea.vmem [#allocation9], %s4631
        %s4633 = sand.u32 %s172, 1
        %s4634 = scalar_lea.sflag [#allocation11], %s4633
        %s4635 = sand.u32 %s172, 1
        %s4636 = smul.addr %s4635, 2
        %s4637 = scalar_lea.vmem [#allocation10], %s4636
        // Predicated region
        $region61: #{tpu_custom_call.1} parent=31 // pred_check
          %p4638 = pneg %p156
        $region62: #{tpu_custom_call.1} parent=31 // pred_check_branch
          %4640 = sbr.rel (%p4638) target = $region64
        $region63: #{tpu_custom_call.1} parent=31 // pred_region
          %s4641 = smul.u32 %s33, 2
          %s4642 = ssub.s32 0, %s4641
          %s4643 = smul.u32 %s32, %s4642
          %s4644 = sadd.s32 %s33, %s4643
          %s4645 = smul.u32 2, %s4644
          %4647 = vsyncadd %s4629, 0
          %s4648 = smul.addr %s4645, 2
          %s4649 = sadd.s32 %s32, %s4648
          %s4650 = smul.addr %s4649, 8
          %s4651 = scalar_lea.hbm %s3, %s4650
          %s4652 = sshll.u32 %s4632, 4
          %s4653 = int_to_ptr.vmem [resolvable:$true] %s4652
          %s4654 = sshll.u32 %s4651, 4
          %s4655 = int_to_ptr.hbm [resolvable:$true] %s4654
          %4660 = dma.vmem_to_hbm [thread:$0]  %s4653, 256, %s4655, %s4629, 128, 256, 8
        $region64: #{tpu_custom_call.1} parent=31 // pred_fallthru
          _
        // Predicated region
        $region65: #{tpu_custom_call.1} parent=31 // pred_check
          %p4661 = pneg %p182
        $region66: #{tpu_custom_call.1} parent=31 // pred_check_branch
          %4663 = sbr.rel (%p4661) target = $region68
        $region67: #{tpu_custom_call.1} parent=31 // pred_region
          %4665 = vsyncadd %s4634, 0
          %s4666 = smul.addr %s32, 2
          %s4667 = scalar_lea.hbm %s4, %s4666
          %s4669 = sshll.u32 %s4637, 4
          %s4670 = int_to_ptr.vmem [resolvable:$true] %s4669
          %s4671 = sshll.u32 %s4667, 4
          %s4672 = int_to_ptr.hbm [resolvable:$true] %s4671
          %4674 = dma.vmem_to_hbm [thread:$0]  %s4670, 32, %s4672, %s4634
        $region68: #{tpu_custom_call.1} parent=31 // pred_fallthru
          _
      $region32: #{tpu_custom_call.1} parent=5 // pred_fallthru
        _
      %p4675 = scmp.le.s32.totalorder 2, %s23
      // Predicated region
      $region69: #{tpu_custom_call.1} parent=5 // pred_check
        %p4676 = pneg %p4675
      $region70: #{tpu_custom_call.1} parent=5 // pred_check_branch
        %4678 = sbr.rel (%p4676) target = $region72
      $region71: #{tpu_custom_call.1} parent=5 // pred_region
        %s4679 = ssub.s32 %s23, 2
        // Predicated region
        $region73: #{tpu_custom_call.1} parent=71 // pred_check
          %p4680 = pneg %p162
        $region74: #{tpu_custom_call.1} parent=71 // pred_check_branch
          %4682 = sbr.rel (%p4680) target = $region76
        $region75: #{tpu_custom_call.1} parent=71 // pred_region
          %s4683 = sand.u32 %s147, 1
          %s4684 = scalar_lea.sflag [#allocation5], %s4683
          %s4685 = sand.u32 %s147, 1
          %s4686 = smul.addr %s4685, 16
          %s4687 = scalar_lea.vmem [#allocation9], %s4686
          %4689 = dma.done %s4684, 256
        $region76: #{tpu_custom_call.1} parent=71 // pred_fallthru
          _
        // Predicated region
        $region77: #{tpu_custom_call.1} parent=71 // pred_check
          %p4690 = pneg %p188
        $region78: #{tpu_custom_call.1} parent=71 // pred_check_branch
          %4692 = sbr.rel (%p4690) target = $region80
        $region79: #{tpu_custom_call.1} parent=71 // pred_region
          %s4693 = sand.u32 %s173, 1
          %s4694 = scalar_lea.sflag [#allocation11], %s4693
          %s4695 = sand.u32 %s173, 1
          %s4696 = smul.addr %s4695, 2
          %s4697 = scalar_lea.vmem [#allocation10], %s4696
          %4699 = dma.done %s4694, 32
        $region80: #{tpu_custom_call.1} parent=71 // pred_fallthru
          _
      $region72: #{tpu_custom_call.1} parent=5 // pred_fallthru
        _
    $region6: #{tpu_custom_call.1} parent=1 // loop_footer
      %s27 = sadd.s32 1, %s23
    $region7: #{tpu_custom_call.1} parent=1 // loop_footer_branch
      %22 = sbr.rel target = $region3
    $region8: #{tpu_custom_call.1} parent=1 // loop_exit
      _
    %4700 = vsyncpa [#allocation4], 1
    %s4701 = scalar_lea.sflag [#allocation4], 1
    %4702 = vsyncpa %s4701, 1
    %4703 = vsyncpa [#allocation7], 1
    %s4704 = scalar_lea.sflag [#allocation7], 1
    %4705 = vsyncpa %s4704, 1
    %4706 = vsyncpa [#allocation5], 1
    %s4707 = scalar_lea.sflag [#allocation5], 1
    %4708 = vsyncpa %s4707, 1
    %4709 = vsyncpa [#allocation11], 1
    %s4710 = scalar_lea.sflag [#allocation11], 1
    %4711 = vsyncpa %s4710, 1

</llo_original>
